<compile_context>
chip_gen: v7x
topology: tpu7x:2x2x1
jax: 0.10.0
libtpu: 0.0.40
codegen_flags: <defaults>
</compile_context>

<pallas_src>
import functools
import math

import jax
import jax.numpy as jnp
import numpy as np
from jax.experimental import pallas as pl
from jax.experimental.pallas import tpu as pltpu

LANE = 128


def _round_up(a, b):
    return ((a + b - 1) // b) * b


def _cdiv(a, b):
    return -(-a // b)


def _adaptive_bounds(in_size, out_size):
    """PyTorch AdaptiveAvgPool2d cell bounds (may overlap when not divisible)."""
    return tuple(((i * in_size) // out_size, _cdiv((i + 1) * in_size, out_size))
                 for i in range(out_size))


# ---------------------------------------------------------------------------
# Fused Pallas kernel: conv (shifted matmuls) + bias + LeakyReLU + pool-accumulate
# (+ hoisted BN scale/shift on the last tile)
# ---------------------------------------------------------------------------
def _fused_conv_act_pool_kernel(x_ref, w_ref, b_ref, bn_ref, ph_ref, o_ref, *,
                                TH, W_out, C_in, kh, kw, stride, pool_w_bounds,
                                use_act, negative_slope, compute_dtype):
    # x_ref:  (1, Hp_pad, Wp, C_in)   padded NHWC input, resident per batch element
    # w_ref:  (kh*kw, C_in, C_pad)    spectrally-normalized weight (compute dtype)
    # b_ref:  (8, C_pad)              row 0 = conv bias (f32)
    # bn_ref: (8, PW*C_pad)           row0 = (BN scale)/w_len tiled, row1 = BN shift tiled
    # ph_ref: (1, PH, TH)             H-pool weights for this tile (compute dtype)
    # o_ref:  (1, PH, PW*C_pad)       pooled accumulator (f32), resident across tiles
    t = pl.program_id(1)
    s = stride
    TM = TH * W_out
    r0 = t * TH                                    # first output row of this tile

    # ---- conv as kh*kw shifted (TM, C_in) @ (C_in, C_pad) matmuls (fused im2col) ----
    acc = None
    for ki in range(kh):
        for kj in range(kw):
            if s == 1:
                xs = x_ref[0, pl.ds(r0 + ki, TH), pl.ds(kj, W_out), :]
            else:
                xs = x_ref[0, pl.ds(r0 * s + ki, TH, stride=s),
                           pl.ds(kj, W_out, stride=s), :]
            prod = jnp.dot(xs.reshape(TM, C_in), w_ref[ki * kw + kj],
                           preferred_element_type=jnp.float32)
            acc = prod if acc is None else acc + prod                 # (TM, C_pad) f32

    # ---- bias + LeakyReLU  (Dropout is identity in eval mode) ----
    z = acc + b_ref[0:1, :]
    if use_act:
        z = jnp.where(z >= 0, z, negative_slope * z)

    # ---- adaptive avg pool, factored:
    #      (a) static per-pool-column sums over W  (b) (PH, TH) weighted H reduction ----
    C_pad = z.shape[-1]
    z3 = z.reshape(TH, W_out, C_pad)
    cols = [jnp.sum(z3[:, ws:we, :], axis=1) for (ws, we) in pool_w_bounds]
    wp = jnp.concatenate(cols, axis=-1).astype(compute_dtype)         # (TH, PW*C_pad)
    pooled = jnp.dot(ph_ref[0], wp,
                     preferred_element_type=jnp.float32)              # (PH, PW*C_pad)

    @pl.when(t == 0)
    def _():
        o_ref[...] = jnp.zeros_like(o_ref)

    o_ref[0] = o_ref[0] + pooled

    # ---- hoisted per-channel epilogue: (BN scale)/w_len and BN shift, applied once ----
    @pl.when(t == pl.num_programs(1) - 1)
    def _():
        o_ref[0] = o_ref[0] * bn_ref[0:1, :] + bn_ref[1:2, :]


# ---------------------------------------------------------------------------
# Tile planning with honest, generation-aware VMEM accounting
# ---------------------------------------------------------------------------
def _tile_plan(H_out, W_out, C_in, C_pad, PW, Hp, Wp, kh, kw, cd_size):
    try:
        vmem_cap = pltpu.get_tpu_info().vmem_capacity_bytes
    except Exception:
        vmem_cap = 64 * 1024 * 1024                                   # v7x-safe default
    if vmem_cap >= 128 * 1024 * 1024:                                  # v5e / v6e
        budget, vmem_limit, max_tm = 40 << 20, 100 << 20, 16384
    else:                                                              # v7x (64 MiB / TC)
        budget, vmem_limit, max_tm = 20 << 20, 48 << 20, 8192

    lane_cin = _round_up(C_in, LANE)
    # resident / double-buffered operands (lane & sublane padded sizes)
    fixed = 2 * (Hp + 8) * _round_up(Wp, 8) * lane_cin * cd_size       # input strip
    fixed += 2 * kh * kw * _round_up(C_in, 8) * C_pad * cd_size        # weights
    fixed += 2 * 8 * C_pad * 4                                         # bias block
    fixed += 4 * 8 * PW * C_pad * 4                                    # BN block + out acc
    fixed += 2 << 20                                                   # slack / temps
    # per output-row cost: f32 conv acc + activated copy + cd patch slice + pool bits
    per_row = W_out * (2 * C_pad * 4 + lane_cin * cd_size + C_pad * cd_size) + 64 * cd_size

    avail = budget - fixed
    if avail <= per_row * 8:
        # TODO(synk): strip-DMA the input (manual make_async_copy) instead of keeping the
        #             whole padded image resident when it no longer fits the VMEM budget.
        th_cap = 8
    else:
        th_cap = avail // per_row
    th_cap = min(th_cap, max(8, max_tm // max(W_out, 1)))
    th_cap = min(th_cap, _round_up(H_out, 8))
    th_cap = max(th_cap, 8)
    num_t = max(1, _cdiv(H_out, th_cap))
    TH = _round_up(_cdiv(H_out, num_t), 8)                             # balanced tiles
    return TH, num_t, vmem_limit


# ---------------------------------------------------------------------------
# Forward pass (glue in plain JAX, hot path in the fused Pallas kernel)
# ---------------------------------------------------------------------------
def sn_conv2d_norm_act_forward(x_nchw, params, *, stride, padding, pool_hw,
                               use_act=True, negative_slope=0.2,
                               use_norm=True, bn_eps=1e-5,
                               compute_dtype=jnp.bfloat16):
    W = params["weight"]                      # (C_out, C_in, kh, kw)
    b = params["bias"]                        # (C_out,)
    u = params["sn_u"]                        # (C_out,)
    C_out, C_in, kh, kw = W.shape
    N, _, H, Wd = x_nchw.shape
    s, p = stride, padding

    # ---- spectral norm: one power iteration (deterministic u) ----
    w_mat = W.reshape(C_out, -1)
    v = w_mat.T @ u
    v = v / (jnp.linalg.norm(v) + 1e-12)
    u_new = w_mat @ v
    u_new = u_new / (jnp.linalg.norm(u_new) + 1e-12)
    sigma = u_new @ (w_mat @ v)
    w_sn = W / sigma

    H_out = (H + 2 * p - kh) // s + 1
    W_out = (Wd + 2 * p - kw) // s + 1
    PH, PW = pool_hw
    C_pad = _round_up(C_out, LANE)
    Hp, Wp = H + 2 * p, Wd + 2 * p
    cd_size = jnp.dtype(compute_dtype).itemsize

    TH, num_t, vmem_limit = _tile_plan(H_out, W_out, C_in, C_pad, PW,
                                       Hp, Wp, kh, kw, cd_size)
    H_out_pad = num_t * TH
    Hp_pad = max(Hp, (H_out_pad - 1) * s + kh)          # keep padded-row reads in-bounds

    # ---- padded NHWC input (read exactly once per batch element by the kernel) ----
    x_nhwc = jnp.transpose(x_nchw, (0, 2, 3, 1))
    x_p = jnp.pad(x_nhwc, ((0, 0), (p, Hp_pad - H - p), (p, p), (0, 0)))
    x_p = x_p.astype(compute_dtype)

    # ---- weight: (kh*kw, C_in, C_pad), lane-padded C_out ----
    w_kc = jnp.transpose(w_sn, (2, 3, 1, 0)).reshape(kh * kw, C_in, C_out)
    w_kc = jnp.pad(w_kc, ((0, 0), (0, 0), (0, C_pad - C_out))).astype(compute_dtype)

    # ---- bias row block (f32) ----
    b_op = jnp.zeros((8, C_pad), jnp.float32).at[0, :C_out].set(b.astype(jnp.float32))

    # ---- pool cell bounds + hoisted BN / pool-scale epilogue block ----
    bounds_h = _adaptive_bounds(H_out, PH)
    bounds_w = _adaptive_bounds(W_out, PW)
    if use_norm:
        gamma, beta = params["bn_gamma"], params["bn_beta"]
        mean, var = params["bn_mean"], params["bn_var"]
        inv_std = 1.0 / jnp.sqrt(var + bn_eps)
        scale = gamma * inv_std
        shift = beta - mean * gamma * inv_std
    else:
        scale = jnp.ones((C_out,), jnp.float32)
        shift = jnp.zeros((C_out,), jnp.float32)
    scale_pad = jnp.zeros((C_pad,), jnp.float32).at[:C_out].set(scale.astype(jnp.float32))
    shift_pad = jnp.zeros((C_pad,), jnp.float32).at[:C_out].set(shift.astype(jnp.float32))
    wlen = jnp.asarray([we - ws for ws, we in bounds_w], jnp.float32)          # (PW,)
    bn_op = jnp.zeros((8, PW * C_pad), jnp.float32)
    bn_op = bn_op.at[0].set((scale_pad[None, :] / wlen[:, None]).reshape(-1))  # scale/w_len
    bn_op = bn_op.at[1].set(jnp.tile(shift_pad, PW))                           # shift

    # ---- per-tile H-pool weights (num_t, PH, TH); padded output rows get 0 weight ----
    ph_np = np.zeros((num_t, PH, TH), np.float32)
    for i, (hs, he) in enumerate(bounds_h):
        w_cell = 1.0 / (he - hs)
        for h in range(hs, he):
            ti, th = divmod(h, TH)
            ph_np[ti, i, th] = w_cell
    ph3 = jnp.asarray(ph_np, dtype=compute_dtype)

    kernel = functools.partial(
        _fused_conv_act_pool_kernel,
        TH=TH, W_out=W_out, C_in=C_in, kh=kh, kw=kw, stride=s,
        pool_w_bounds=bounds_w, use_act=use_act,
        negative_slope=negative_slope, compute_dtype=compute_dtype)

    pooled = pl.pallas_call(
        kernel,
        out_shape=jax.ShapeDtypeStruct((N, PH, PW * C_pad), jnp.float32),
        grid=(N, num_t),
        in_specs=[
            pl.BlockSpec((1, Hp_pad, Wp, C_in), lambda n, t: (n, 0, 0, 0)),
            pl.BlockSpec((kh * kw, C_in, C_pad), lambda n, t: (0, 0, 0)),
            pl.BlockSpec((8, C_pad), lambda n, t: (0, 0)),
            pl.BlockSpec((8, PW * C_pad), lambda n, t: (0, 0)),
            pl.BlockSpec((1, PH, TH), lambda n, t: (t, 0, 0)),
        ],
        out_specs=pl.BlockSpec((1, PH, PW * C_pad), lambda n, t: (n, 0, 0)),
        compiler_params=pltpu.CompilerParams(
            dimension_semantics=("parallel", "arbitrary"),
            vmem_limit_bytes=vmem_limit),
    )(x_p, w_kc, b_op, bn_op, ph3)

    # TODO(synk): for C_out >= 256 on v7x, add a parallel grid axis over 256-wide C_pad
    #             blocks so both TensorCores get work when N is small.
    pooled = pooled.reshape(N, PH, PW, C_pad)[:, :, :, :C_out]
    return jnp.transpose(pooled, (0, 3, 1, 2))            # NCHW (N, C_out, PH, PW)


# ---------------------------------------------------------------------------
# Pure-JAX reference (for correctness check)
# ---------------------------------------------------------------------------
def reference_forward(x, params, *, stride, padding, pool_hw,
                      use_act=True, negative_slope=0.2,
                      use_norm=True, bn_eps=1e-5):
    W, b, u = params["weight"], params["bias"], params["sn_u"]
    C_out = W.shape[0]
    w_mat = W.reshape(C_out, -1)
    v = w_mat.T @ u
    v = v / (jnp.linalg.norm(v) + 1e-12)
    u_new = w_mat @ v
    u_new = u_new / (jnp.linalg.norm(u_new) + 1e-12)
    sigma = u_new @ (w_mat @ v)
    w_sn = W / sigma

    out = jax.lax.conv_general_dilated(
        x, w_sn, (stride, stride), ((padding, padding), (padding, padding)),
        dimension_numbers=("NCHW", "OIHW", "NCHW"))
    out = out + b[None, :, None, None]
    if use_act:
        out = jnp.where(out >= 0, out, negative_slope * out)
    if use_norm:
        gamma, beta = params["bn_gamma"], params["bn_beta"]
        mean, var = params["bn_mean"], params["bn_var"]
        inv_std = 1.0 / jnp.sqrt(var + bn_eps)
        out = (out - mean[None, :, None, None]) * (gamma * inv_std)[None, :, None, None] \
              + beta[None, :, None, None]
    N, C, Ho, Wo = out.shape
    PH, PW = pool_hw
    rows = []
    for i in range(PH):
        hs, he = (i * Ho) // PH, -(-((i + 1) * Ho) // PH)
        cols = []
        for j in range(PW):
            ws, we = (j * Wo) // PW, -(-((j + 1) * Wo) // PW)
            cols.append(jnp.mean(out[:, :, hs:he, ws:we], axis=(2, 3)))
        rows.append(jnp.stack(cols, axis=-1))
    return jnp.stack(rows, axis=-2)  # (N, C, PH, PW)


# ---------------------------------------------------------------------------
if __name__ == "__main__":
    # module config: c_in=4, c_out=8, kernel=3, stride=1, padding=1,
    # pool_height=4, pool_width=4, act_fn=LeakyReLU(0.2), norm_fn=BatchNorm2d
    key = jax.random.PRNGKey(0)
    k_x, k_w, k_b, k_u, k_g, k_be, k_m, k_v = jax.random.split(key, 8)

    N, C_in, H, Wd = 2, 4, 16, 16
    C_out, kh, kw = 8, 3, 3
    stride, padding = 1, 1
    pool_hw = (4, 4)

    fan_in = C_in * kh * kw
    bound = 1.0 / math.sqrt(fan_in)
    params = {
        "weight": jax.random.uniform(k_w, (C_out, C_in, kh, kw), jnp.float32,
                                     -bound, bound),
        "bias": jax.random.uniform(k_b, (C_out,), jnp.float32, -bound, bound),
        "sn_u": jax.random.normal(k_u, (C_out,), jnp.float32),
        "bn_gamma": 1.0 + 0.1 * jax.random.normal(k_g, (C_out,), jnp.float32),
        "bn_beta": 0.1 * jax.random.normal(k_be, (C_out,), jnp.float32),
        "bn_mean": 0.1 * jax.random.normal(k_m, (C_out,), jnp.float32),
        "bn_var": 1.0 + 0.1 * jax.random.uniform(k_v, (C_out,), jnp.float32),
    }
    x = jax.random.normal(k_x, (N, C_in, H, Wd), jnp.float32)

    ref = jax.block_until_ready(reference_forward(
        x, params, stride=stride, padding=padding, pool_hw=pool_hw,
        use_act=True, negative_slope=0.2, use_norm=True))

    # Strict check: f32 MXU inputs.
    out_f32 = jax.block_until_ready(sn_conv2d_norm_act_forward(
        x, params, stride=stride, padding=padding, pool_hw=pool_hw,
        use_act=True, negative_slope=0.2, use_norm=True,
        compute_dtype=jnp.float32))
    assert out_f32.shape == (N, C_out, pool_hw[0], pool_hw[1]), out_f32.shape
    assert jnp.allclose(out_f32, ref, rtol=1e-4, atol=1e-4), \
        float(jnp.max(jnp.abs(out_f32 - ref)))

    # Fast path (default on all generations): bf16 MXU inputs, f32 accumulation.
    out_bf16 = jax.block_until_ready(sn_conv2d_norm_act_forward(
        x, params, stride=stride, padding=padding, pool_hw=pool_hw,
        use_act=True, negative_slope=0.2, use_norm=True,
        compute_dtype=jnp.bfloat16))
    assert out_bf16.shape == (N, C_out, pool_hw[0], pool_hw[1]), out_bf16.shape
    assert jnp.allclose(out_bf16, ref, rtol=2e-2, atol=2e-2), \
        float(jnp.max(jnp.abs(out_bf16 - ref)))

    print("KERNEL_OK")
</pallas_src>

<mosaic_0001>
module attributes {stable_mosaic.version = 11 : i64} {
  func.func @_fused_conv_act_pool_kernel(%arg0: i32, %arg1: i32, %arg2: memref<1x18x18x4xf32, #tpu.memory_space<vmem>>, %arg3: memref<9x4x128xf32, #tpu.memory_space<vmem>>, %arg4: memref<8x128xf32, #tpu.memory_space<vmem>>, %arg5: memref<8x512xf32, #tpu.memory_space<vmem>>, %arg6: memref<1x4x16xf32, #tpu.memory_space<vmem>>, %arg7: memref<1x4x512xf32, #tpu.memory_space<vmem>>) attributes {dimension_semantics = [#tpu.dimension_semantics<parallel>, #tpu.dimension_semantics<arbitrary>], iteration_bounds = array<i64: 2, 1>, scalar_prefetch = 0 : i64, scratch_operands = 0 : i64, tpu.core_type = #tpu.core_type<tc>, window_params = [{transform_indices = @transform_0, window_bounds = array<i64: 1, 18, 18, 4>}, {pipeline_mode = #tpu.pipeline_mode<synchronous>, transform_indices = @transform_1, window_bounds = array<i64: 9, 4, 128>}, {pipeline_mode = #tpu.pipeline_mode<synchronous>, transform_indices = @transform_2, window_bounds = array<i64: 8, 128>}, {pipeline_mode = #tpu.pipeline_mode<synchronous>, transform_indices = @transform_3, window_bounds = array<i64: 8, 512>}, {transform_indices = @transform_4, window_bounds = array<i64: 1, 4, 16>}, {transform_indices = @transform_5, window_bounds = array<i64: 1, 4, 512>}]} {
    %c16_i32 = arith.constant 16 : i32
    %0 = arith.muli %arg1, %c16_i32 : i32
    %c0_i32 = arith.constant 0 : i32
    %1 = arith.addi %0, %c0_i32 : i32
    %c0 = arith.constant 0 : index
    %2 = arith.index_cast %1 : i32 to index
    %c0_0 = arith.constant 0 : index
    %c0_1 = arith.constant 0 : index
    %3 = vector.load %arg2[%c0, %2, %c0_0, %c0_1] : memref<1x18x18x4xf32, #tpu.memory_space<vmem>>, vector<1x16x16x4xf32>
    %4 = vector.shape_cast %3 : vector<1x16x16x4xf32> to vector<16x16x4xf32>
    %5 = vector.shape_cast %4 : vector<16x16x4xf32> to vector<256x4xf32>
    %c0_2 = arith.constant 0 : index
    %c0_3 = arith.constant 0 : index
    %c0_4 = arith.constant 0 : index
    %6 = vector.load %arg3[%c0_2, %c0_3, %c0_4] : memref<9x4x128xf32, #tpu.memory_space<vmem>>, vector<1x4x128xf32>
    %7 = vector.shape_cast %6 : vector<1x4x128xf32> to vector<4x128xf32>
    %cst = arith.constant dense<0.000000e+00> : vector<256x128xf32>
    %8 = tpu.matmul %5, %7, %cst {dimension_numbers = #tpu.dot_dimension_numbers<[1], [0], [0], [1], [0, 0, 1, 1], [], []>} : vector<256x4xf32>, vector<4x128xf32>, vector<256x128xf32> -> vector<256x128xf32>
    %c0_i32_5 = arith.constant 0 : i32
    %9 = arith.addi %0, %c0_i32_5 : i32
    %c0_6 = arith.constant 0 : index
    %10 = arith.index_cast %9 : i32 to index
    %c1 = arith.constant 1 : index
    %c0_7 = arith.constant 0 : index
    %11 = vector.load %arg2[%c0_6, %10, %c1, %c0_7] : memref<1x18x18x4xf32, #tpu.memory_space<vmem>>, vector<1x16x16x4xf32>
    %12 = vector.shape_cast %11 : vector<1x16x16x4xf32> to vector<16x16x4xf32>
    %13 = vector.shape_cast %12 : vector<16x16x4xf32> to vector<256x4xf32>
    %c1_8 = arith.constant 1 : index
    %c0_9 = arith.constant 0 : index
    %c0_10 = arith.constant 0 : index
    %14 = vector.load %arg3[%c1_8, %c0_9, %c0_10] : memref<9x4x128xf32, #tpu.memory_space<vmem>>, vector<1x4x128xf32>
    %15 = vector.shape_cast %14 : vector<1x4x128xf32> to vector<4x128xf32>
    %cst_11 = arith.constant dense<0.000000e+00> : vector<256x128xf32>
    %16 = tpu.matmul %13, %15, %cst_11 {dimension_numbers = #tpu.dot_dimension_numbers<[1], [0], [0], [1], [0, 0, 1, 1], [], []>} : vector<256x4xf32>, vector<4x128xf32>, vector<256x128xf32> -> vector<256x128xf32>
    %17 = arith.addf %8, %16 : vector<256x128xf32>
    %c0_i32_12 = arith.constant 0 : i32
    %18 = arith.addi %0, %c0_i32_12 : i32
    %c0_13 = arith.constant 0 : index
    %19 = arith.index_cast %18 : i32 to index
    %c2 = arith.constant 2 : index
    %c0_14 = arith.constant 0 : index
    %20 = vector.load %arg2[%c0_13, %19, %c2, %c0_14] : memref<1x18x18x4xf32, #tpu.memory_space<vmem>>, vector<1x16x16x4xf32>
    %21 = vector.shape_cast %20 : vector<1x16x16x4xf32> to vector<16x16x4xf32>
    %22 = vector.shape_cast %21 : vector<16x16x4xf32> to vector<256x4xf32>
    %c2_15 = arith.constant 2 : index
    %c0_16 = arith.constant 0 : index
    %c0_17 = arith.constant 0 : index
    %23 = vector.load %arg3[%c2_15, %c0_16, %c0_17] : memref<9x4x128xf32, #tpu.memory_space<vmem>>, vector<1x4x128xf32>
    %24 = vector.shape_cast %23 : vector<1x4x128xf32> to vector<4x128xf32>
    %cst_18 = arith.constant dense<0.000000e+00> : vector<256x128xf32>
    %25 = tpu.matmul %22, %24, %cst_18 {dimension_numbers = #tpu.dot_dimension_numbers<[1], [0], [0], [1], [0, 0, 1, 1], [], []>} : vector<256x4xf32>, vector<4x128xf32>, vector<256x128xf32> -> vector<256x128xf32>
    %26 = arith.addf %17, %25 : vector<256x128xf32>
    %c1_i32 = arith.constant 1 : i32
    %27 = arith.addi %0, %c1_i32 : i32
    %c0_19 = arith.constant 0 : index
    %28 = arith.index_cast %27 : i32 to index
    %c0_20 = arith.constant 0 : index
    %c0_21 = arith.constant 0 : index
    %29 = vector.load %arg2[%c0_19, %28, %c0_20, %c0_21] : memref<1x18x18x4xf32, #tpu.memory_space<vmem>>, vector<1x16x16x4xf32>
    %30 = vector.shape_cast %29 : vector<1x16x16x4xf32> to vector<16x16x4xf32>
    %31 = vector.shape_cast %30 : vector<16x16x4xf32> to vector<256x4xf32>
    %c3 = arith.constant 3 : index
    %c0_22 = arith.constant 0 : index
    %c0_23 = arith.constant 0 : index
    %32 = vector.load %arg3[%c3, %c0_22, %c0_23] : memref<9x4x128xf32, #tpu.memory_space<vmem>>, vector<1x4x128xf32>
    %33 = vector.shape_cast %32 : vector<1x4x128xf32> to vector<4x128xf32>
    %cst_24 = arith.constant dense<0.000000e+00> : vector<256x128xf32>
    %34 = tpu.matmul %31, %33, %cst_24 {dimension_numbers = #tpu.dot_dimension_numbers<[1], [0], [0], [1], [0, 0, 1, 1], [], []>} : vector<256x4xf32>, vector<4x128xf32>, vector<256x128xf32> -> vector<256x128xf32>
    %35 = arith.addf %26, %34 : vector<256x128xf32>
    %c1_i32_25 = arith.constant 1 : i32
    %36 = arith.addi %0, %c1_i32_25 : i32
    %c0_26 = arith.constant 0 : index
    %37 = arith.index_cast %36 : i32 to index
    %c1_27 = arith.constant 1 : index
    %c0_28 = arith.constant 0 : index
    %38 = vector.load %arg2[%c0_26, %37, %c1_27, %c0_28] : memref<1x18x18x4xf32, #tpu.memory_space<vmem>>, vector<1x16x16x4xf32>
    %39 = vector.shape_cast %38 : vector<1x16x16x4xf32> to vector<16x16x4xf32>
    %40 = vector.shape_cast %39 : vector<16x16x4xf32> to vector<256x4xf32>
    %c4 = arith.constant 4 : index
    %c0_29 = arith.constant 0 : index
    %c0_30 = arith.constant 0 : index
    %41 = vector.load %arg3[%c4, %c0_29, %c0_30] : memref<9x4x128xf32, #tpu.memory_space<vmem>>, vector<1x4x128xf32>
    %42 = vector.shape_cast %41 : vector<1x4x128xf32> to vector<4x128xf32>
    %cst_31 = arith.constant dense<0.000000e+00> : vector<256x128xf32>
    %43 = tpu.matmul %40, %42, %cst_31 {dimension_numbers = #tpu.dot_dimension_numbers<[1], [0], [0], [1], [0, 0, 1, 1], [], []>} : vector<256x4xf32>, vector<4x128xf32>, vector<256x128xf32> -> vector<256x128xf32>
    %44 = arith.addf %35, %43 : vector<256x128xf32>
    %c1_i32_32 = arith.constant 1 : i32
    %45 = arith.addi %0, %c1_i32_32 : i32
    %c0_33 = arith.constant 0 : index
    %46 = arith.index_cast %45 : i32 to index
    %c2_34 = arith.constant 2 : index
    %c0_35 = arith.constant 0 : index
    %47 = vector.load %arg2[%c0_33, %46, %c2_34, %c0_35] : memref<1x18x18x4xf32, #tpu.memory_space<vmem>>, vector<1x16x16x4xf32>
    %48 = vector.shape_cast %47 : vector<1x16x16x4xf32> to vector<16x16x4xf32>
    %49 = vector.shape_cast %48 : vector<16x16x4xf32> to vector<256x4xf32>
    %c5 = arith.constant 5 : index
    %c0_36 = arith.constant 0 : index
    %c0_37 = arith.constant 0 : index
    %50 = vector.load %arg3[%c5, %c0_36, %c0_37] : memref<9x4x128xf32, #tpu.memory_space<vmem>>, vector<1x4x128xf32>
    %51 = vector.shape_cast %50 : vector<1x4x128xf32> to vector<4x128xf32>
    %cst_38 = arith.constant dense<0.000000e+00> : vector<256x128xf32>
    %52 = tpu.matmul %49, %51, %cst_38 {dimension_numbers = #tpu.dot_dimension_numbers<[1], [0], [0], [1], [0, 0, 1, 1], [], []>} : vector<256x4xf32>, vector<4x128xf32>, vector<256x128xf32> -> vector<256x128xf32>
    %53 = arith.addf %44, %52 : vector<256x128xf32>
    %c2_i32 = arith.constant 2 : i32
    %54 = arith.addi %0, %c2_i32 : i32
    %c0_39 = arith.constant 0 : index
    %55 = arith.index_cast %54 : i32 to index
    %c0_40 = arith.constant 0 : index
    %c0_41 = arith.constant 0 : index
    %56 = vector.load %arg2[%c0_39, %55, %c0_40, %c0_41] : memref<1x18x18x4xf32, #tpu.memory_space<vmem>>, vector<1x16x16x4xf32>
    %57 = vector.shape_cast %56 : vector<1x16x16x4xf32> to vector<16x16x4xf32>
    %58 = vector.shape_cast %57 : vector<16x16x4xf32> to vector<256x4xf32>
    %c6 = arith.constant 6 : index
    %c0_42 = arith.constant 0 : index
    %c0_43 = arith.constant 0 : index
    %59 = vector.load %arg3[%c6, %c0_42, %c0_43] : memref<9x4x128xf32, #tpu.memory_space<vmem>>, vector<1x4x128xf32>
    %60 = vector.shape_cast %59 : vector<1x4x128xf32> to vector<4x128xf32>
    %cst_44 = arith.constant dense<0.000000e+00> : vector<256x128xf32>
    %61 = tpu.matmul %58, %60, %cst_44 {dimension_numbers = #tpu.dot_dimension_numbers<[1], [0], [0], [1], [0, 0, 1, 1], [], []>} : vector<256x4xf32>, vector<4x128xf32>, vector<256x128xf32> -> vector<256x128xf32>
    %62 = arith.addf %53, %61 : vector<256x128xf32>
    %c2_i32_45 = arith.constant 2 : i32
    %63 = arith.addi %0, %c2_i32_45 : i32
    %c0_46 = arith.constant 0 : index
    %64 = arith.index_cast %63 : i32 to index
    %c1_47 = arith.constant 1 : index
    %c0_48 = arith.constant 0 : index
    %65 = vector.load %arg2[%c0_46, %64, %c1_47, %c0_48] : memref<1x18x18x4xf32, #tpu.memory_space<vmem>>, vector<1x16x16x4xf32>
    %66 = vector.shape_cast %65 : vector<1x16x16x4xf32> to vector<16x16x4xf32>
    %67 = vector.shape_cast %66 : vector<16x16x4xf32> to vector<256x4xf32>
    %c7 = arith.constant 7 : index
    %c0_49 = arith.constant 0 : index
    %c0_50 = arith.constant 0 : index
    %68 = vector.load %arg3[%c7, %c0_49, %c0_50] : memref<9x4x128xf32, #tpu.memory_space<vmem>>, vector<1x4x128xf32>
    %69 = vector.shape_cast %68 : vector<1x4x128xf32> to vector<4x128xf32>
    %cst_51 = arith.constant dense<0.000000e+00> : vector<256x128xf32>
    %70 = tpu.matmul %67, %69, %cst_51 {dimension_numbers = #tpu.dot_dimension_numbers<[1], [0], [0], [1], [0, 0, 1, 1], [], []>} : vector<256x4xf32>, vector<4x128xf32>, vector<256x128xf32> -> vector<256x128xf32>
    %71 = arith.addf %62, %70 : vector<256x128xf32>
    %c2_i32_52 = arith.constant 2 : i32
    %72 = arith.addi %0, %c2_i32_52 : i32
    %c0_53 = arith.constant 0 : index
    %73 = arith.index_cast %72 : i32 to index
    %c2_54 = arith.constant 2 : index
    %c0_55 = arith.constant 0 : index
    %74 = vector.load %arg2[%c0_53, %73, %c2_54, %c0_55] : memref<1x18x18x4xf32, #tpu.memory_space<vmem>>, vector<1x16x16x4xf32>
    %75 = vector.shape_cast %74 : vector<1x16x16x4xf32> to vector<16x16x4xf32>
    %76 = vector.shape_cast %75 : vector<16x16x4xf32> to vector<256x4xf32>
    %c8 = arith.constant 8 : index
    %c0_56 = arith.constant 0 : index
    %c0_57 = arith.constant 0 : index
    %77 = vector.load %arg3[%c8, %c0_56, %c0_57] : memref<9x4x128xf32, #tpu.memory_space<vmem>>, vector<1x4x128xf32>
    %78 = vector.shape_cast %77 : vector<1x4x128xf32> to vector<4x128xf32>
    %cst_58 = arith.constant dense<0.000000e+00> : vector<256x128xf32>
    %79 = tpu.matmul %76, %78, %cst_58 {dimension_numbers = #tpu.dot_dimension_numbers<[1], [0], [0], [1], [0, 0, 1, 1], [], []>} : vector<256x4xf32>, vector<4x128xf32>, vector<256x128xf32> -> vector<256x128xf32>
    %80 = arith.addf %71, %79 : vector<256x128xf32>
    %c0_59 = arith.constant 0 : index
    %c0_60 = arith.constant 0 : index
    %81 = vector.load %arg4[%c0_59, %c0_60] : memref<8x128xf32, #tpu.memory_space<vmem>>, vector<1x128xf32>
    %82 = vector.broadcast %81 : vector<1x128xf32> to vector<256x128xf32>
    %83 = arith.addf %80, %82 : vector<256x128xf32>
    %cst_61 = arith.constant 0.000000e+00 : f32
    %84 = vector.broadcast %cst_61 : f32 to vector<256x128xf32>
    %85 = arith.cmpf oge, %83, %84 : vector<256x128xf32>
    %cst_62 = arith.constant 2.000000e-01 : f32
    %86 = vector.broadcast %cst_62 : f32 to vector<256x128xf32>
    %87 = arith.mulf %86, %83 : vector<256x128xf32>
    %88 = arith.select %85, %83, %87 : vector<256x128xi1>, vector<256x128xf32>
    %89 = vector.shape_cast %88 : vector<256x128xf32> to vector<16x16x128xf32>
    %90 = vector.extract_strided_slice %89 {offsets = [0, 0, 0], sizes = [16, 4, 128], strides = [1, 1, 1]} : vector<16x16x128xf32> to vector<16x4x128xf32>
    %cst_63 = arith.constant dense<0.000000e+00> : vector<16x128xf32>
    %91 = vector.multi_reduction <add>, %90, %cst_63 [1] : vector<16x4x128xf32> to vector<16x128xf32>
    %92 = vector.extract_strided_slice %89 {offsets = [0, 4, 0], sizes = [16, 4, 128], strides = [1, 1, 1]} : vector<16x16x128xf32> to vector<16x4x128xf32>
    %cst_64 = arith.constant dense<0.000000e+00> : vector<16x128xf32>
    %93 = vector.multi_reduction <add>, %92, %cst_64 [1] : vector<16x4x128xf32> to vector<16x128xf32>
    %94 = vector.extract_strided_slice %89 {offsets = [0, 8, 0], sizes = [16, 4, 128], strides = [1, 1, 1]} : vector<16x16x128xf32> to vector<16x4x128xf32>
    %cst_65 = arith.constant dense<0.000000e+00> : vector<16x128xf32>
    %95 = vector.multi_reduction <add>, %94, %cst_65 [1] : vector<16x4x128xf32> to vector<16x128xf32>
    %96 = vector.extract_strided_slice %89 {offsets = [0, 12, 0], sizes = [16, 4, 128], strides = [1, 1, 1]} : vector<16x16x128xf32> to vector<16x4x128xf32>
    %cst_66 = arith.constant dense<0.000000e+00> : vector<16x128xf32>
    %97 = vector.multi_reduction <add>, %96, %cst_66 [1] : vector<16x4x128xf32> to vector<16x128xf32>
    %98 = tpu.concatenate %91, %93, %95, %97 in 1 : vector<16x128xf32>, vector<16x128xf32>, vector<16x128xf32>, vector<16x128xf32> -> vector<16x512xf32>
    %c0_67 = arith.constant 0 : index
    %c0_68 = arith.constant 0 : index
    %c0_69 = arith.constant 0 : index
    %99 = vector.load %arg6[%c0_67, %c0_68, %c0_69] : memref<1x4x16xf32, #tpu.memory_space<vmem>>, vector<1x4x16xf32>
    %100 = vector.shape_cast %99 : vector<1x4x16xf32> to vector<4x16xf32>
    %cst_70 = arith.constant dense<0.000000e+00> : vector<4x512xf32>
    %101 = tpu.matmul %100, %98, %cst_70 {dimension_numbers = #tpu.dot_dimension_numbers<[1], [0], [0], [1], [0, 0, 1, 1], [], []>} : vector<4x16xf32>, vector<16x512xf32>, vector<4x512xf32> -> vector<4x512xf32>
    %c0_i32_71 = arith.constant 0 : i32
    %102 = arith.cmpi eq, %arg1, %c0_i32_71 : i32
    %103 = arith.extui %102 : i1 to i32
    %c0_i32_72 = arith.constant 0 : i32
    %104 = arith.cmpi ne, %103, %c0_i32_72 : i32
    scf.if %104 {
      %cst_81 = arith.constant 0.000000e+00 : f32
      %114 = vector.broadcast %cst_81 : f32 to vector<1x4x512xf32>
      %c0_82 = arith.constant 0 : index
      %c0_83 = arith.constant 0 : index
      %c0_84 = arith.constant 0 : index
      %115 = vector.load %arg7[%c0_82, %c0_83, %c0_84] : memref<1x4x512xf32, #tpu.memory_space<vmem>>, vector<1x4x512xf32>
      tpu.vector_store %arg7[%c0_82, %c0_83, %c0_84], %114 {strides = array<i32>} : memref<1x4x512xf32, #tpu.memory_space<vmem>>, vector<1x4x512xf32>,
    } else {
    }
    %c0_73 = arith.constant 0 : index
    %c0_74 = arith.constant 0 : index
    %c0_75 = arith.constant 0 : index
    %105 = vector.load %arg7[%c0_73, %c0_74, %c0_75] : memref<1x4x512xf32, #tpu.memory_space<vmem>>, vector<1x4x512xf32>
    %106 = vector.shape_cast %105 : vector<1x4x512xf32> to vector<4x512xf32>
    %107 = arith.addf %106, %101 : vector<4x512xf32>
    %c0_76 = arith.constant 0 : index
    %c0_77 = arith.constant 0 : index
    %c0_78 = arith.constant 0 : index
    %108 = vector.load %arg7[%c0_76, %c0_77, %c0_78] : memref<1x4x512xf32, #tpu.memory_space<vmem>>, vector<1x4x512xf32>
    %109 = vector.shape_cast %108 : vector<1x4x512xf32> to vector<4x512xf32>
    %110 = vector.shape_cast %107 : vector<4x512xf32> to vector<1x4x512xf32>
    tpu.vector_store %arg7[%c0_76, %c0_77, %c0_78], %110 {strides = array<i32>} : memref<1x4x512xf32, #tpu.memory_space<vmem>>, vector<1x4x512xf32>,
    %c0_i32_79 = arith.constant 0 : i32
    %111 = arith.cmpi eq, %arg1, %c0_i32_79 : i32
    %112 = arith.extui %111 : i1 to i32
    %c0_i32_80 = arith.constant 0 : i32
    %113 = arith.cmpi ne, %112, %c0_i32_80 : i32
    scf.if %113 {
      %c0_81 = arith.constant 0 : index
      %c0_82 = arith.constant 0 : index
      %c0_83 = arith.constant 0 : index
      %114 = vector.load %arg7[%c0_81, %c0_82, %c0_83] : memref<1x4x512xf32, #tpu.memory_space<vmem>>, vector<1x4x512xf32>
      %115 = vector.shape_cast %114 : vector<1x4x512xf32> to vector<4x512xf32>
      %c0_84 = arith.constant 0 : index
      %c0_85 = arith.constant 0 : index
      %116 = vector.load %arg5[%c0_84, %c0_85] : memref<8x512xf32, #tpu.memory_space<vmem>>, vector<1x512xf32>
      %117 = vector.broadcast %116 : vector<1x512xf32> to vector<4x512xf32>
      %118 = arith.mulf %115, %117 : vector<4x512xf32>
      %c1_86 = arith.constant 1 : index
      %c0_87 = arith.constant 0 : index
      %119 = vector.load %arg5[%c1_86, %c0_87] : memref<8x512xf32, #tpu.memory_space<vmem>>, vector<1x512xf32>
      %120 = vector.broadcast %119 : vector<1x512xf32> to vector<4x512xf32>
      %121 = arith.addf %118, %120 : vector<4x512xf32>
      %c0_88 = arith.constant 0 : index
      %c0_89 = arith.constant 0 : index
      %c0_90 = arith.constant 0 : index
      %122 = vector.load %arg7[%c0_88, %c0_89, %c0_90] : memref<1x4x512xf32, #tpu.memory_space<vmem>>, vector<1x4x512xf32>
      %123 = vector.shape_cast %122 : vector<1x4x512xf32> to vector<4x512xf32>
      %124 = vector.shape_cast %121 : vector<4x512xf32> to vector<1x4x512xf32>
      tpu.vector_store %arg7[%c0_88, %c0_89, %c0_90], %124 {strides = array<i32>} : memref<1x4x512xf32, #tpu.memory_space<vmem>>, vector<1x4x512xf32>,
    } else {
    }
    return
  }
  func.func @transform_0(%arg0: i32, %arg1: i32) -> (i32, i32, i32, i32) {
    %c0_i32 = arith.constant 0 : i32
    %c0_i32_0 = arith.constant 0 : i32
    %c0_i32_1 = arith.constant 0 : i32
    %c0_i32_2 = arith.constant 0 : i32
    return %arg0, %c0_i32, %c0_i32_0, %c0_i32_1 : i32, i32, i32, i32
  }
  func.func @transform_1(%arg0: i32, %arg1: i32) -> (i32, i32, i32) {
    %c0_i32 = arith.constant 0 : i32
    %c0_i32_0 = arith.constant 0 : i32
    %c0_i32_1 = arith.constant 0 : i32
    %c0_i32_2 = arith.constant 0 : i32
    return %c0_i32, %c0_i32_0, %c0_i32_1 : i32, i32, i32
  }
  func.func @transform_2(%arg0: i32, %arg1: i32) -> (i32, i32) {
    %c0_i32 = arith.constant 0 : i32
    %c0_i32_0 = arith.constant 0 : i32
    %c0_i32_1 = arith.constant 0 : i32
    return %c0_i32, %c0_i32_0 : i32, i32
  }
  func.func @transform_3(%arg0: i32, %arg1: i32) -> (i32, i32) {
    %c0_i32 = arith.constant 0 : i32
    %c0_i32_0 = arith.constant 0 : i32
    %c0_i32_1 = arith.constant 0 : i32
    return %c0_i32, %c0_i32_0 : i32, i32
  }
  func.func @transform_4(%arg0: i32, %arg1: i32) -> (i32, i32, i32) {
    %c0_i32 = arith.constant 0 : i32
    %c0_i32_0 = arith.constant 0 : i32
    %c0_i32_1 = arith.constant 0 : i32
    return %arg1, %c0_i32, %c0_i32_0 : i32, i32, i32
  }
  func.func @transform_5(%arg0: i32, %arg1: i32) -> (i32, i32, i32) {
    %c0_i32 = arith.constant 0 : i32
    %c0_i32_0 = arith.constant 0 : i32
    %c0_i32_1 = arith.constant 0 : i32
    return %arg0, %c0_i32, %c0_i32_0 : i32, i32, i32
  }
}

</mosaic_0001>

<llo_original>
// kernel: tpu_custom_call.1
$region0: #{tpu_custom_call.1}
  #allocation0 [shape = 'u32[]', space=smem, size = 0x4, offset = 0x4, fixed_abs, tag = 'smem constant byte address 0x4 - core index']
  #allocation1 [shape = 'u32[144,128]{1,0:T(1,128)}', space=vmem, size = 0x12000, scoped, tag = 'internal scratch']
  %s0 = inlined_call_operand.vmem [shape: f32[2,18,18,4], index: 0, kind: input, shape index: {}]
  %s1 = inlined_call_operand.vmem [shape: f32[9,4,128], index: 1, kind: input, shape index: {}]
  %s2 = inlined_call_operand.vmem [shape: f32[8,128], index: 2, kind: input, shape index: {}]
  %s3 = inlined_call_operand.vmem [shape: f32[8,512], index: 3, kind: input, shape index: {}]
  %s4 = inlined_call_operand.vmem [shape: f32[1,4,16], index: 4, kind: input, shape index: {}]
  %s5 = inlined_call_operand.hbm [shape: f32[2,4,512], index: 5, kind: output, shape index: {}]
  %s6 = sld [smem:[#allocation0]]
  $region61: #{tpu_custom_call.1} parent=0
    _
  %s8 = ssub.s32 1, %s6
  %s9 = scalar_select 0, %s8, %s6
  $region1: #{tpu_custom_call.1} parent=0
    #allocation2 [shape = 'u8[16384]{0}', space=vmem, size = 0x4000, scoped, tag = 'output window, operand 0']
    #allocation3 [shape = 's32[2]{0}', space=sflag, size = 0x8, scoped, tag = 'scoped memory for tpu_custom_call.1']
    %10 = vsyncpa [#allocation3], 0
    %s11 = scalar_lea.sflag [#allocation3], 1
    %12 = vsyncpa %s11, 0
    loop: start=0, step=1, limit=4
    $region2: #{tpu_custom_call.1} parent=1 // loop_pre_header
      _
    $region3: #{tpu_custom_call.1} parent=1 // loop_header
      %s14 = sphi 0, %s18
      %p15 = scmp.ge.s32.totalorder %s14, 4
      %s21 = sphi 0, %s33
      %s22 = sphi 0, %s29
      %s23 = sphi 0, %s21
      %s24 = sphi 0, %s22
      %s25 = sphi 0, %s23
      %s26 = sphi 0, %s24
      %s36 = sphi 0, %s38
      %s39 = sphi 0, %s36
      %s40 = sphi 0, %s39
      %s56 = sphi 0, %s40
      %s60 = sphi 0, %s60
      %s62 = sphi 0, %s60
      %s63 = sphi 0, %s62
      %s77 = sphi 0, %s63
      %s81 = sphi 0, %s81
      %s83 = sphi 0, %s81
      %s84 = sphi 0, %s83
      %s98 = sphi 0, %s84
      %s102 = sphi 0, %s102
      %s104 = sphi 0, %s102
      %s105 = sphi 0, %s104
      %s119 = sphi 0, %s105
      %s125 = sphi 0, %s127
      %s128 = sphi 0, %s125
      %s129 = sphi 0, %s128
      %s145 = sphi 0, %s129
      %s151 = sphi 0, %s153
      %s154 = sphi 0, %s151
      %s155 = sphi 0, %s154
      %s171 = sphi 0, %s155
    $region4: #{tpu_custom_call.1} parent=1 // loop_header_branch
      %17 = sbr.rel (%p15) target = $region8
    $region5: #{tpu_custom_call.1} parent=1 // loop_body
      %s19 = ssub.s32 %s14, 1
      %s20 = ssub.s32 %s14, 2
      %s27 = sadd.s32 1, %s22
      %p28 = scmp.ge.s32.totalorder %s27, 1
      %s29 = scalar_select %p28, 0, %s27
      %s30 = sadd.s32 1, %s21
      %s31 = scalar_select %p28, %s30, %s21
      %p32 = scmp.ge.s32.totalorder %s31, 2
      %s33 = scalar_select %p32, 0, %s31
      %s34 = ssub.s32 %s21, %s33
      %p35 = scmp.eq.s32.totalorder %s34, 0
      %s37 = sadd.s32 %s36, 1
      %s38 = scalar_select %p35, %s36, %s37
      %p41 = pneg %p35
      %p42 = scmp.eq.s32.totalorder %s14, 1
      %p43 = por %p41, %p42
      %p44 = scmp.ne.s32.totalorder %s36, %s39
      %p45 = scmp.eq.s32.totalorder %s14, 0
      %p46 = por %p44, %p45
      %p47 = scmp.ne.s32.totalorder %s36, %s39
      %p48 = scmp.eq.s32.totalorder %s19, 1
      %p49 = por %p47, %p48
      %p50 = scmp.ne.s32.totalorder %s39, %s40
      %p51 = scmp.eq.s32.totalorder %s19, 0
      %p52 = por %p50, %p51
      %p53 = scmp.ne.s32.totalorder %s39, %s40
      %p54 = scmp.eq.s32.totalorder %s20, 1
      %p55 = por %p53, %p54
      %p57 = scmp.ne.s32.totalorder %s40, %s56
      %p58 = scmp.eq.s32.totalorder %s20, 0
      %p59 = por %p57, %p58
      %s61 = sadd.s32 %s60, 1
      %p64 = scmp.eq.s32.totalorder %s14, 1
      %p65 = scmp.ne.s32.totalorder %s60, %s62
      %p66 = scmp.eq.s32.totalorder %s14, 0
      %p67 = por %p65, %p66
      %p68 = scmp.ne.s32.totalorder %s60, %s62
      %p69 = scmp.eq.s32.totalorder %s19, 1
      %p70 = por %p68, %p69
      %p71 = scmp.ne.s32.totalorder %s62, %s63
      %p72 = scmp.eq.s32.totalorder %s19, 0
      %p73 = por %p71, %p72
      %p74 = scmp.ne.s32.totalorder %s62, %s63
      %p75 = scmp.eq.s32.totalorder %s20, 1
      %p76 = por %p74, %p75
      %p78 = scmp.ne.s32.totalorder %s63, %s77
      %p79 = scmp.eq.s32.totalorder %s20, 0
      %p80 = por %p78, %p79
      %s82 = sadd.s32 %s81, 1
      %p85 = scmp.eq.s32.totalorder %s14, 1
      %p86 = scmp.ne.s32.totalorder %s81, %s83
      %p87 = scmp.eq.s32.totalorder %s14, 0
      %p88 = por %p86, %p87
      %p89 = scmp.ne.s32.totalorder %s81, %s83
      %p90 = scmp.eq.s32.totalorder %s19, 1
      %p91 = por %p89, %p90
      %p92 = scmp.ne.s32.totalorder %s83, %s84
      %p93 = scmp.eq.s32.totalorder %s19, 0
      %p94 = por %p92, %p93
      %p95 = scmp.ne.s32.totalorder %s83, %s84
      %p96 = scmp.eq.s32.totalorder %s20, 1
      %p97 = por %p95, %p96
      %p99 = scmp.ne.s32.totalorder %s84, %s98
      %p100 = scmp.eq.s32.totalorder %s20, 0
      %p101 = por %p99, %p100
      %s103 = sadd.s32 %s102, 1
      %p106 = scmp.eq.s32.totalorder %s14, 1
      %p107 = scmp.ne.s32.totalorder %s102, %s104
      %p108 = scmp.eq.s32.totalorder %s14, 0
      %p109 = por %p107, %p108
      %p110 = scmp.ne.s32.totalorder %s102, %s104
      %p111 = scmp.eq.s32.totalorder %s19, 1
      %p112 = por %p110, %p111
      %p113 = scmp.ne.s32.totalorder %s104, %s105
      %p114 = scmp.eq.s32.totalorder %s19, 0
      %p115 = por %p113, %p114
      %p116 = scmp.ne.s32.totalorder %s104, %s105
      %p117 = scmp.eq.s32.totalorder %s20, 1
      %p118 = por %p116, %p117
      %p120 = scmp.ne.s32.totalorder %s105, %s119
      %p121 = scmp.eq.s32.totalorder %s20, 0
      %p122 = por %p120, %p121
      %s123 = ssub.s32 %s22, %s29
      %p124 = scmp.eq.s32.totalorder %s123, 0
      %s126 = sadd.s32 %s125, 1
      %s127 = scalar_select %p124, %s125, %s126
      %p130 = pneg %p124
      %p131 = scmp.eq.s32.totalorder %s14, 1
      %p132 = por %p130, %p131
      %p133 = scmp.ne.s32.totalorder %s125, %s128
      %p134 = scmp.eq.s32.totalorder %s14, 0
      %p135 = por %p133, %p134
      %p136 = scmp.ne.s32.totalorder %s125, %s128
      %p137 = scmp.eq.s32.totalorder %s19, 1
      %p138 = por %p136, %p137
      %p139 = scmp.ne.s32.totalorder %s128, %s129
      %p140 = scmp.eq.s32.totalorder %s19, 0
      %p141 = por %p139, %p140
      %p142 = scmp.ne.s32.totalorder %s128, %s129
      %p143 = scmp.eq.s32.totalorder %s20, 1
      %p144 = por %p142, %p143
      %p146 = scmp.ne.s32.totalorder %s129, %s145
      %p147 = scmp.eq.s32.totalorder %s20, 0
      %p148 = por %p146, %p147
      %s149 = ssub.s32 %s21, %s33
      %p150 = scmp.eq.s32.totalorder %s149, 0
      %s152 = sadd.s32 %s151, 1
      %s153 = scalar_select %p150, %s151, %s152
      %p156 = pneg %p150
      %p157 = scmp.eq.s32.totalorder %s14, 1
      %p158 = por %p156, %p157
      %p159 = scmp.ne.s32.totalorder %s151, %s154
      %p160 = scmp.eq.s32.totalorder %s14, 0
      %p161 = por %p159, %p160
      %p162 = scmp.ne.s32.totalorder %s151, %s154
      %p163 = scmp.eq.s32.totalorder %s19, 1
      %p164 = por %p162, %p163
      %p165 = scmp.ne.s32.totalorder %s154, %s155
      %p166 = scmp.eq.s32.totalorder %s19, 0
      %p167 = por %p165, %p166
      %p168 = scmp.ne.s32.totalorder %s154, %s155
      %p169 = scmp.eq.s32.totalorder %s20, 1
      %p170 = por %p168, %p169
      %p172 = scmp.ne.s32.totalorder %s155, %s171
      %p173 = scmp.eq.s32.totalorder %s20, 0
      %p174 = por %p172, %p173
      %p175 = scmp.le.s32.totalorder 1, %s14
      %p176 = scmp.lt.s32.totalorder %s14, 3
      %p177 = pnand %p175, %p176
      %p178 = pneg %p177
      // Predicated region
      $region9: #{tpu_custom_call.1} parent=5 // pred_check
        _
      $region10: #{tpu_custom_call.1} parent=5 // pred_check_branch
        %180 = sbr.rel (%p177) target = $region12
      $region11: #{tpu_custom_call.1} parent=5 // pred_region
        %s181 = ssub.s32 %s14, 1
        // Predicated region
        $region13: #{tpu_custom_call.1} parent=11 // pred_check
          %p182 = pneg %p73
        $region14: #{tpu_custom_call.1} parent=11 // pred_check_branch
          %184 = sbr.rel (%p182) target = $region16
        $region15: #{tpu_custom_call.1} parent=11 // pred_region
          _
        $region16: #{tpu_custom_call.1} parent=11 // pred_fallthru
          _
        // Predicated region
        $region17: #{tpu_custom_call.1} parent=11 // pred_check
          %p185 = pneg %p94
        $region18: #{tpu_custom_call.1} parent=11 // pred_check_branch
          %187 = sbr.rel (%p185) target = $region20
        $region19: #{tpu_custom_call.1} parent=11 // pred_region
          _
        $region20: #{tpu_custom_call.1} parent=11 // pred_fallthru
          _
        // Predicated region
        $region21: #{tpu_custom_call.1} parent=11 // pred_check
          %p188 = pneg %p115
        $region22: #{tpu_custom_call.1} parent=11 // pred_check_branch
          %190 = sbr.rel (%p188) target = $region24
        $region23: #{tpu_custom_call.1} parent=11 // pred_region
          _
        $region24: #{tpu_custom_call.1} parent=11 // pred_fallthru
          _
        // Predicated region
        $region25: #{tpu_custom_call.1} parent=11 // pred_check
          %p191 = pneg %p141
        $region26: #{tpu_custom_call.1} parent=11 // pred_check_branch
          %193 = sbr.rel (%p191) target = $region28
        $region27: #{tpu_custom_call.1} parent=11 // pred_region
          %p194 = scmp.lt.s32.totalorder %s24, 0
          %s195 = scalar_select %p194, %s24, 0
          %s196 = smul.addr %s195, 4
          %s197 = scalar_lea.vmem %s4, %s196
        $region28: #{tpu_custom_call.1} parent=11 // pred_fallthru
          _
      $region12: #{tpu_custom_call.1} parent=5 // pred_fallthru
        _
      %p198 = scmp.lt.s32.totalorder %s14, 2
      // Predicated region
      $region29: #{tpu_custom_call.1} parent=5 // pred_check
        %p199 = pneg %p198
      $region30: #{tpu_custom_call.1} parent=5 // pred_check_branch
        %201 = sbr.rel (%p199) target = $region32
      $region31: #{tpu_custom_call.1} parent=5 // pred_region
        // Predicated region
        $region33: #{tpu_custom_call.1} parent=31 // pred_check
          %p202 = pneg %p46
        $region34: #{tpu_custom_call.1} parent=31 // pred_check_branch
          %204 = sbr.rel (%p202) target = $region36
        $region35: #{tpu_custom_call.1} parent=31 // pred_region
          %p205 = scmp.lt.s32.totalorder %s21, 1
          %s206 = scalar_select %p205, %s21, 1
          %s207 = smul.addr %s206, 54
          %s208 = smul.addr %s207, 8
          %s209 = scalar_lea.vmem %s0, %s208
        $region36: #{tpu_custom_call.1} parent=31 // pred_fallthru
          _
      $region32: #{tpu_custom_call.1} parent=5 // pred_fallthru
        _
      %p210 = scmp.le.s32.totalorder 1, %s14
      %p211 = scmp.lt.s32.totalorder %s14, 3
      %p212 = pnand %p210, %p211
      %p213 = pneg %p212
      // Predicated region
      $region37: #{tpu_custom_call.1} parent=5 // pred_check
        _
      $region38: #{tpu_custom_call.1} parent=5 // pred_check_branch
        %215 = sbr.rel (%p212) target = $region40
      $region39: #{tpu_custom_call.1} parent=5 // pred_region
        %s216 = ssub.s32 %s14, 1
        %p217 = scmp.lt.s32.totalorder %s23, 1
        %s218 = scalar_select %p217, %s23, 1
        %s219 = smul.addr %s218, 54
        %s220 = smul.addr %s219, 8
        %s221 = scalar_lea.vmem %s0, %s220
        %p222 = pneg %p52
        %p223 = pneg %p49
        %p224 = pneg %p73
        %p225 = pneg %p70
        %p226 = pneg %p94
        %p227 = pneg %p91
        %p228 = pneg %p115
        %p229 = pneg %p112
        %p230 = scmp.lt.s32.totalorder %s24, 0
        %s231 = scalar_select %p230, %s24, 0
        %s232 = smul.addr %s231, 4
        %s233 = scalar_lea.vmem %s4, %s232
        %p234 = pneg %p141
        %p235 = pneg %p138
        %p236 = pneg %p167
        %p237 = pneg %p164
        %s238 = sand.u32 %s154, 1
        %s239 = scalar_lea.sflag [#allocation3], %s238
        %s240 = sand.u32 %s154, 1
        %s241 = smul.addr %s240, 16
        %s242 = scalar_lea.vmem [#allocation2], %s241
        %p243 = scmp.lt.s32.totalorder %s23, 1
        %s244 = scalar_select %p243, %s23, 1
        %s245 = smul.addr %s244, 54
        %s246 = smul.addr %s245, 8
        %s247 = scalar_lea.vmem %s0, %s246
        %p248 = scmp.lt.s32.totalorder %s24, 0
        %s249 = scalar_select %p248, %s24, 0
        %s250 = smul.addr %s249, 4
        %s251 = scalar_lea.vmem %s4, %s250
        %s252 = smul.u32 %s24, 16
        %s253 = smul.u32 %s252, 24
        %s254 = scalar_lea.vmem %s247, %s253
        %v255 = vld [vmem:[%s254] sm:$0xff]
        %v256 = vld [vmem:[%s254 + $0x8] sm:$0xff]
        %v257 = vld [vmem:[%s254 + $0x18] sm:$0xff]
        %v258 = vld [vmem:[%s254 + $0x20] sm:$0xff]
        %v259 = vld [vmem:[%s254 + $0x30] sm:$0xff]
        %v260 = vld [vmem:[%s254 + $0x38] sm:$0xff]
        %v261 = vld [vmem:[%s254 + $0x48] sm:$0xff]
        %v262 = vld [vmem:[%s254 + $0x50] sm:$0xff]
        %v263 = vld [vmem:[%s254 + $0x60] sm:$0xff]
        %v264 = vld [vmem:[%s254 + $0x68] sm:$0xff]
        %v265 = vld [vmem:[%s254 + $0x78] sm:$0xff]
        %v266 = vld [vmem:[%s254 + $0x80] sm:$0xff]
        %v267 = vld [vmem:[%s254 + $0x90] sm:$0xff]
        %v268 = vld [vmem:[%s254 + $0x98] sm:$0xff]
        %v269 = vld [vmem:[%s254 + $0xa8] sm:$0xff]
        %v270 = vld [vmem:[%s254 + $0xb0] sm:$0xff]
        %v271 = vld [vmem:[%s254 + $0xc0] sm:$0xff]
        %v272 = vld [vmem:[%s254 + $0xc8] sm:$0xff]
        %v273 = vld [vmem:[%s254 + $0xd8] sm:$0xff]
        %v274 = vld [vmem:[%s254 + $0xe0] sm:$0xff]
        %v275 = vld [vmem:[%s254 + $0xf0] sm:$0xff]
        %v276 = vld [vmem:[%s254 + $0xf8] sm:$0xff]
        %v277 = vld [vmem:[%s254 + $0x108] sm:$0xff]
        %v278 = vld [vmem:[%s254 + $0x110] sm:$0xff]
        %v279 = vld [vmem:[%s254 + $0x120] sm:$0xff]
        %v280 = vld [vmem:[%s254 + $0x128] sm:$0xff]
        %v281 = vld [vmem:[%s254 + $0x138] sm:$0xff]
        %v282 = vld [vmem:[%s254 + $0x140] sm:$0xff]
        %v283 = vld [vmem:[%s254 + $0x150] sm:$0xff]
        %v284 = vld [vmem:[%s254 + $0x158] sm:$0xff]
        %v285 = vld [vmem:[%s254 + $0x168] sm:$0xff]
        %v286 = vld [vmem:[%s254 + $0x170] sm:$0xff]
        %v287 = vld [vmem:[%s1] sm:$0xf]
        %v288 = vld [vmem:[%s254 + $0x1] sm:$0xff]
        %v289 = vld [vmem:[%s254 + $0x9] sm:$0xff]
        %v290 = vld [vmem:[%s254 + $0x19] sm:$0xff]
        %v291 = vld [vmem:[%s254 + $0x21] sm:$0xff]
        %v292 = vld [vmem:[%s254 + $0x31] sm:$0xff]
        %v293 = vld [vmem:[%s254 + $0x39] sm:$0xff]
        %v294 = vld [vmem:[%s254 + $0x49] sm:$0xff]
        %v295 = vld [vmem:[%s254 + $0x51] sm:$0xff]
        %v296 = vld [vmem:[%s254 + $0x61] sm:$0xff]
        %v297 = vld [vmem:[%s254 + $0x69] sm:$0xff]
        %v298 = vld [vmem:[%s254 + $0x79] sm:$0xff]
        %v299 = vld [vmem:[%s254 + $0x81] sm:$0xff]
        %v300 = vld [vmem:[%s254 + $0x91] sm:$0xff]
        %v301 = vld [vmem:[%s254 + $0x99] sm:$0xff]
        %v302 = vld [vmem:[%s254 + $0xa9] sm:$0xff]
        %v303 = vld [vmem:[%s254 + $0xb1] sm:$0xff]
        %v304 = vld [vmem:[%s254 + $0xc1] sm:$0xff]
        %v305 = vld [vmem:[%s254 + $0xc9] sm:$0xff]
        %v306 = vld [vmem:[%s254 + $0xd9] sm:$0xff]
        %v307 = vld [vmem:[%s254 + $0xe1] sm:$0xff]
        %v308 = vld [vmem:[%s254 + $0xf1] sm:$0xff]
        %v309 = vld [vmem:[%s254 + $0xf9] sm:$0xff]
        %v310 = vld [vmem:[%s254 + $0x109] sm:$0xff]
        %v311 = vld [vmem:[%s254 + $0x111] sm:$0xff]
        %v312 = vld [vmem:[%s254 + $0x121] sm:$0xff]
        %v313 = vld [vmem:[%s254 + $0x129] sm:$0xff]
        %v314 = vld [vmem:[%s254 + $0x139] sm:$0xff]
        %v315 = vld [vmem:[%s254 + $0x141] sm:$0xff]
        %v316 = vld [vmem:[%s254 + $0x151] sm:$0xff]
        %v317 = vld [vmem:[%s254 + $0x159] sm:$0xff]
        %v318 = vld [vmem:[%s254 + $0x169] sm:$0xff]
        %v319 = vld [vmem:[%s254 + $0x171] sm:$0xff]
        %s320 = scalar_lea.vmem %s1, 4
        %v321 = vld [vmem:[%s320] sm:$0xf]
        %vm322 = vcmask 31744
        %v324 = vsel %vm322, %v288, 0
        %v327 = vsel %vm322, %v289, 0
        %v330 = vsel %vm322, %v290, 0
        %v333 = vsel %vm322, %v291, 0
        %v336 = vsel %vm322, %v292, 0
        %v339 = vsel %vm322, %v293, 0
        %v342 = vsel %vm322, %v294, 0
        %v345 = vsel %vm322, %v295, 0
        %v348 = vsel %vm322, %v296, 0
        %v351 = vsel %vm322, %v297, 0
        %v354 = vsel %vm322, %v298, 0
        %v357 = vsel %vm322, %v299, 0
        %v360 = vsel %vm322, %v300, 0
        %v363 = vsel %vm322, %v301, 0
        %v366 = vsel %vm322, %v302, 0
        %v369 = vsel %vm322, %v303, 0
        %v372 = vsel %vm322, %v304, 0
        %v375 = vsel %vm322, %v305, 0
        %v378 = vsel %vm322, %v306, 0
        %v381 = vsel %vm322, %v307, 0
        %v384 = vsel %vm322, %v308, 0
        %v387 = vsel %vm322, %v309, 0
        %v390 = vsel %vm322, %v310, 0
        %v393 = vsel %vm322, %v311, 0
        %v396 = vsel %vm322, %v312, 0
        %v399 = vsel %vm322, %v313, 0
        %v402 = vsel %vm322, %v314, 0
        %v405 = vsel %vm322, %v315, 0
        %v408 = vsel %vm322, %v316, 0
        %v411 = vsel %vm322, %v317, 0
        %v414 = vsel %vm322, %v318, 0
        %v417 = vsel %vm322, %v319, 0
        %vm419 = vcmask 1043456
        %v421 = vsel %vm419, %v321, 0
        %423 = vmatprep.subr.mxu0 0.0
        %424 = vmatpush1.msra.mxu0 %v421
        %425 = vmatprep.subr.mxu0 0.0
        %426 = vmatpush1.msra.mxu0 0.0
        %427 = vmatprep.subr.mxu0 0.0
        %428 = vmatpush1.msra.mxu0 0.0
        %429 = vmatprep.subr.mxu0 0.0
        %430 = vmatpush1.msra.mxu0 0.0
        %431 = vmatprep.subr.mxu0 0.0
        %432 = vmatpush1.msra.mxu0 0.0
        %433 = vmatprep.subr.mxu0 0.0
        %434 = vmatpush1.msra.mxu0 0.0
        %435 = vmatprep.subr.mxu0 0.0
        %436 = vmatpush1.msra.mxu0 0.0
        %437 = vmatprep.subr.mxu0 0.0
        %438 = vmatpush1.msra.mxu0 0.0
        %439 = vmatprep.subr.mxu0 0.0
        %440 = vmatpush1.msra.mxu0 0.0
        %441 = vmatprep.subr.mxu0 0.0
        %442 = vmatpush1.msra.mxu0 0.0
        %443 = vmatprep.subr.mxu0 0.0
        %444 = vmatpush1.msra.mxu0 0.0
        %445 = vmatprep.subr.mxu0 0.0
        %446 = vmatpush1.msra.mxu0 0.0
        %447 = vmatprep.subr.mxu0 0.0
        %448 = vmatpush1.msra.mxu0 0.0
        %449 = vmatprep.subr.mxu0 0.0
        %450 = vmatpush1.msra.mxu0 0.0
        %451 = vmatprep.subr.mxu0 0.0
        %452 = vmatpush1.msra.mxu0 0.0
        %453 = vmatprep.subr.mxu0 0.0
        %454 = vmatpush1.msra.mxu0 0.0
        %455 = vmatprep.subr.mxu0 0.0
        %456 = vmatpush1.msra.mxu0 0.0
        %457 = vmatprep.subr.mxu0 0.0
        %458 = vmatpush1.msra.mxu0 0.0
        %459 = vmatprep.subr.mxu0 0.0
        %460 = vmatpush1.msra.mxu0 0.0
        %461 = vmatprep.subr.mxu0 0.0
        %462 = vmatpush1.msra.mxu0 0.0
        %463 = vmatprep.subr.mxu0 0.0
        %464 = vmatpush1.msra.mxu0 0.0
        %465 = vmatprep.subr.mxu0 0.0
        %466 = vmatpush1.msra.mxu0 0.0
        %467 = vmatprep.subr.mxu0 0.0
        %468 = vmatpush1.msra.mxu0 0.0
        %469 = vmatprep.subr.mxu0 0.0
        %470 = vmatpush1.msra.mxu0 0.0
        %471 = vmatprep.subr.mxu0 0.0
        %472 = vmatpush1.msra.mxu0 0.0
        %473 = vmatprep.subr.mxu0 0.0
        %474 = vmatpush1.msra.mxu0 0.0
        %475 = vmatprep.subr.mxu0 0.0
        %476 = vmatpush1.msra.mxu0 0.0
        %477 = vmatprep.subr.mxu0 0.0
        %478 = vmatpush1.msra.mxu0 0.0
        %479 = vmatprep.subr.mxu0 0.0
        %480 = vmatpush1.msra.mxu0 0.0
        %481 = vmatprep.subr.mxu0 0.0
        %482 = vmatpush1.msra.mxu0 0.0
        %483 = vmatprep.subr.mxu0 0.0
        %484 = vmatpush1.msra.mxu0 0.0
        %485 = vmatprep.subr.mxu0 0.0
        %486 = vmatpush1.msra.mxu0 0.0
        %487 = vmatprep.mubr.f32.mxu0 0.0
        %488 = vmatmul.mubr.f32.gmra.mrb[0].mxu0 %v324
        %v489 = vpop.f32.mrb[0].mxu0
        %v490 = vadd.f32 0.0, %v489
        %v491 = vpop.f32.mrb[0].mxu0
        %492 = vmatprep.mubr.f32.mxu0 0.0
        %493 = vmatmul.mubr.f32.gmra.mrb[0].mxu0 %v327
        %v494 = vpop.f32.mrb[0].mxu0
        %v495 = vadd.f32 0.0, %v494
        %v496 = vpop.f32.mrb[0].mxu0
        %497 = vmatprep.mubr.f32.mxu0 0.0
        %498 = vmatmul.mubr.f32.gmra.mrb[0].mxu0 %v330
        %v499 = vpop.f32.mrb[0].mxu0
        %v500 = vadd.f32 0.0, %v499
        %v501 = vpop.f32.mrb[0].mxu0
        %502 = vmatprep.mubr.f32.mxu0 0.0
        %503 = vmatmul.mubr.f32.gmra.mrb[0].mxu0 %v333
        %v504 = vpop.f32.mrb[0].mxu0
        %v505 = vadd.f32 0.0, %v504
        %v506 = vpop.f32.mrb[0].mxu0
        %507 = vmatprep.mubr.f32.mxu0 0.0
        %508 = vmatmul.mubr.f32.gmra.mrb[0].mxu0 %v336
        %v509 = vpop.f32.mrb[0].mxu0
        %v510 = vadd.f32 0.0, %v509
        %v511 = vpop.f32.mrb[0].mxu0
        %512 = vmatprep.mubr.f32.mxu0 0.0
        %513 = vmatmul.mubr.f32.gmra.mrb[0].mxu0 %v339
        %v514 = vpop.f32.mrb[0].mxu0
        %v515 = vadd.f32 0.0, %v514
        %v516 = vpop.f32.mrb[0].mxu0
        %517 = vmatprep.mubr.f32.mxu0 0.0
        %518 = vmatmul.mubr.f32.gmra.mrb[0].mxu0 %v342
        %v519 = vpop.f32.mrb[0].mxu0
        %v520 = vadd.f32 0.0, %v519
        %v521 = vpop.f32.mrb[0].mxu0
        %522 = vmatprep.mubr.f32.mxu0 0.0
        %523 = vmatmul.mubr.f32.gmra.mrb[0].mxu0 %v345
        %v524 = vpop.f32.mrb[0].mxu0
        %v525 = vadd.f32 0.0, %v524
        %v526 = vpop.f32.mrb[0].mxu0
        %527 = vmatprep.mubr.f32.mxu0 0.0
        %528 = vmatmul.mubr.f32.gmra.mrb[0].mxu0 %v348
        %v529 = vpop.f32.mrb[0].mxu0
        %v530 = vadd.f32 0.0, %v529
        %v531 = vpop.f32.mrb[0].mxu0
        %532 = vmatprep.mubr.f32.mxu0 0.0
        %533 = vmatmul.mubr.f32.gmra.mrb[0].mxu0 %v351
        %v534 = vpop.f32.mrb[0].mxu0
        %v535 = vadd.f32 0.0, %v534
        %v536 = vpop.f32.mrb[0].mxu0
        %537 = vmatprep.mubr.f32.mxu0 0.0
        %538 = vmatmul.mubr.f32.gmra.mrb[0].mxu0 %v354
        %v539 = vpop.f32.mrb[0].mxu0
        %v540 = vadd.f32 0.0, %v539
        %v541 = vpop.f32.mrb[0].mxu0
        %542 = vmatprep.mubr.f32.mxu0 0.0
        %543 = vmatmul.mubr.f32.gmra.mrb[0].mxu0 %v357
        %v544 = vpop.f32.mrb[0].mxu0
        %v545 = vadd.f32 0.0, %v544
        %v546 = vpop.f32.mrb[0].mxu0
        %547 = vmatprep.mubr.f32.mxu0 0.0
        %548 = vmatmul.mubr.f32.gmra.mrb[0].mxu0 %v360
        %v549 = vpop.f32.mrb[0].mxu0
        %v550 = vadd.f32 0.0, %v549
        %v551 = vpop.f32.mrb[0].mxu0
        %552 = vmatprep.mubr.f32.mxu0 0.0
        %553 = vmatmul.mubr.f32.gmra.mrb[0].mxu0 %v363
        %v554 = vpop.f32.mrb[0].mxu0
        %v555 = vadd.f32 0.0, %v554
        %v556 = vpop.f32.mrb[0].mxu0
        %557 = vmatprep.mubr.f32.mxu0 0.0
        %558 = vmatmul.mubr.f32.gmra.mrb[0].mxu0 %v366
        %v559 = vpop.f32.mrb[0].mxu0
        %v560 = vadd.f32 0.0, %v559
        %v561 = vpop.f32.mrb[0].mxu0
        %562 = vmatprep.mubr.f32.mxu0 0.0
        %563 = vmatmul.mubr.f32.gmra.mrb[0].mxu0 %v369
        %v564 = vpop.f32.mrb[0].mxu0
        %v565 = vadd.f32 0.0, %v564
        %v566 = vpop.f32.mrb[0].mxu0
        %567 = vmatprep.mubr.f32.mxu0 0.0
        %568 = vmatmul.mubr.f32.gmra.mrb[0].mxu0 %v372
        %v569 = vpop.f32.mrb[0].mxu0
        %v570 = vadd.f32 0.0, %v569
        %v571 = vpop.f32.mrb[0].mxu0
        %572 = vmatprep.mubr.f32.mxu0 0.0
        %573 = vmatmul.mubr.f32.gmra.mrb[0].mxu0 %v375
        %v574 = vpop.f32.mrb[0].mxu0
        %v575 = vadd.f32 0.0, %v574
        %v576 = vpop.f32.mrb[0].mxu0
        %577 = vmatprep.mubr.f32.mxu0 0.0
        %578 = vmatmul.mubr.f32.gmra.mrb[0].mxu0 %v378
        %v579 = vpop.f32.mrb[0].mxu0
        %v580 = vadd.f32 0.0, %v579
        %v581 = vpop.f32.mrb[0].mxu0
        %582 = vmatprep.mubr.f32.mxu0 0.0
        %583 = vmatmul.mubr.f32.gmra.mrb[0].mxu0 %v381
        %v584 = vpop.f32.mrb[0].mxu0
        %v585 = vadd.f32 0.0, %v584
        %v586 = vpop.f32.mrb[0].mxu0
        %587 = vmatprep.mubr.f32.mxu0 0.0
        %588 = vmatmul.mubr.f32.gmra.mrb[0].mxu0 %v384
        %v589 = vpop.f32.mrb[0].mxu0
        %v590 = vadd.f32 0.0, %v589
        %v591 = vpop.f32.mrb[0].mxu0
        %592 = vmatprep.mubr.f32.mxu0 0.0
        %593 = vmatmul.mubr.f32.gmra.mrb[0].mxu0 %v387
        %v594 = vpop.f32.mrb[0].mxu0
        %v595 = vadd.f32 0.0, %v594
        %v596 = vpop.f32.mrb[0].mxu0
        %597 = vmatprep.mubr.f32.mxu0 0.0
        %598 = vmatmul.mubr.f32.gmra.mrb[0].mxu0 %v390
        %v599 = vpop.f32.mrb[0].mxu0
        %v600 = vadd.f32 0.0, %v599
        %v601 = vpop.f32.mrb[0].mxu0
        %602 = vmatprep.mubr.f32.mxu0 0.0
        %603 = vmatmul.mubr.f32.gmra.mrb[0].mxu0 %v393
        %v604 = vpop.f32.mrb[0].mxu0
        %v605 = vadd.f32 0.0, %v604
        %v606 = vpop.f32.mrb[0].mxu0
        %607 = vmatprep.mubr.f32.mxu0 0.0
        %608 = vmatmul.mubr.f32.gmra.mrb[0].mxu0 %v396
        %v609 = vpop.f32.mrb[0].mxu0
        %v610 = vadd.f32 0.0, %v609
        %v611 = vpop.f32.mrb[0].mxu0
        %612 = vmatprep.mubr.f32.mxu0 0.0
        %613 = vmatmul.mubr.f32.gmra.mrb[0].mxu0 %v399
        %v614 = vpop.f32.mrb[0].mxu0
        %v615 = vadd.f32 0.0, %v614
        %v616 = vpop.f32.mrb[0].mxu0
        %617 = vmatprep.mubr.f32.mxu0 0.0
        %618 = vmatmul.mubr.f32.gmra.mrb[0].mxu0 %v402
        %v619 = vpop.f32.mrb[0].mxu0
        %v620 = vadd.f32 0.0, %v619
        %v621 = vpop.f32.mrb[0].mxu0
        %622 = vmatprep.mubr.f32.mxu0 0.0
        %623 = vmatmul.mubr.f32.gmra.mrb[0].mxu0 %v405
        %v624 = vpop.f32.mrb[0].mxu0
        %v625 = vadd.f32 0.0, %v624
        %v626 = vpop.f32.mrb[0].mxu0
        %627 = vmatprep.mubr.f32.mxu0 0.0
        %628 = vmatmul.mubr.f32.gmra.mrb[0].mxu0 %v408
        %v629 = vpop.f32.mrb[0].mxu0
        %v630 = vadd.f32 0.0, %v629
        %v631 = vpop.f32.mrb[0].mxu0
        %632 = vmatprep.mubr.f32.mxu0 0.0
        %633 = vmatmul.mubr.f32.gmra.mrb[0].mxu0 %v411
        %v634 = vpop.f32.mrb[0].mxu0
        %v635 = vadd.f32 0.0, %v634
        %v636 = vpop.f32.mrb[0].mxu0
        %637 = vmatprep.mubr.f32.mxu0 0.0
        %638 = vmatmul.mubr.f32.gmra.mrb[0].mxu0 %v414
        %v639 = vpop.f32.mrb[0].mxu0
        %v640 = vadd.f32 0.0, %v639
        %v641 = vpop.f32.mrb[0].mxu0
        %642 = vmatprep.mubr.f32.mxu0 0.0
        %643 = vmatmul.mubr.f32.gmra.mrb[0].mxu0 %v417
        %v644 = vpop.f32.mrb[0].mxu0
        %v645 = vadd.f32 0.0, %v644
        %v646 = vpop.f32.mrb[0].mxu0
        %647 = vdwg.mxu0
        %v649 = vsel %vm322, %v255, 0
        %v652 = vsel %vm322, %v256, 0
        %v655 = vsel %vm322, %v257, 0
        %v658 = vsel %vm322, %v258, 0
        %v661 = vsel %vm322, %v259, 0
        %v664 = vsel %vm322, %v260, 0
        %v667 = vsel %vm322, %v261, 0
        %v670 = vsel %vm322, %v262, 0
        %v673 = vsel %vm322, %v263, 0
        %v676 = vsel %vm322, %v264, 0
        %v679 = vsel %vm322, %v265, 0
        %v682 = vsel %vm322, %v266, 0
        %v685 = vsel %vm322, %v267, 0
        %v688 = vsel %vm322, %v268, 0
        %v691 = vsel %vm322, %v269, 0
        %v694 = vsel %vm322, %v270, 0
        %v697 = vsel %vm322, %v271, 0
        %v700 = vsel %vm322, %v272, 0
        %v703 = vsel %vm322, %v273, 0
        %v706 = vsel %vm322, %v274, 0
        %v709 = vsel %vm322, %v275, 0
        %v712 = vsel %vm322, %v276, 0
        %v715 = vsel %vm322, %v277, 0
        %v718 = vsel %vm322, %v278, 0
        %v721 = vsel %vm322, %v279, 0
        %v724 = vsel %vm322, %v280, 0
        %v727 = vsel %vm322, %v281, 0
        %v730 = vsel %vm322, %v282, 0
        %v733 = vsel %vm322, %v283, 0
        %v736 = vsel %vm322, %v284, 0
        %v739 = vsel %vm322, %v285, 0
        %v742 = vsel %vm322, %v286, 0
        %v745 = vsel %vm419, %v287, 0
        %747 = vmatprep.subr.mxu0 0.0
        %748 = vmatpush1.msra.mxu0 %v745
        %749 = vmatprep.subr.mxu0 0.0
        %750 = vmatpush1.msra.mxu0 0.0
        %751 = vmatprep.subr.mxu0 0.0
        %752 = vmatpush1.msra.mxu0 0.0
        %753 = vmatprep.subr.mxu0 0.0
        %754 = vmatpush1.msra.mxu0 0.0
        %755 = vmatprep.subr.mxu0 0.0
        %756 = vmatpush1.msra.mxu0 0.0
        %757 = vmatprep.subr.mxu0 0.0
        %758 = vmatpush1.msra.mxu0 0.0
        %759 = vmatprep.subr.mxu0 0.0
        %760 = vmatpush1.msra.mxu0 0.0
        %761 = vmatprep.subr.mxu0 0.0
        %762 = vmatpush1.msra.mxu0 0.0
        %763 = vmatprep.subr.mxu0 0.0
        %764 = vmatpush1.msra.mxu0 0.0
        %765 = vmatprep.subr.mxu0 0.0
        %766 = vmatpush1.msra.mxu0 0.0
        %767 = vmatprep.subr.mxu0 0.0
        %768 = vmatpush1.msra.mxu0 0.0
        %769 = vmatprep.subr.mxu0 0.0
        %770 = vmatpush1.msra.mxu0 0.0
        %771 = vmatprep.subr.mxu0 0.0
        %772 = vmatpush1.msra.mxu0 0.0
        %773 = vmatprep.subr.mxu0 0.0
        %774 = vmatpush1.msra.mxu0 0.0
        %775 = vmatprep.subr.mxu0 0.0
        %776 = vmatpush1.msra.mxu0 0.0
        %777 = vmatprep.subr.mxu0 0.0
        %778 = vmatpush1.msra.mxu0 0.0
        %779 = vmatprep.subr.mxu0 0.0
        %780 = vmatpush1.msra.mxu0 0.0
        %781 = vmatprep.subr.mxu0 0.0
        %782 = vmatpush1.msra.mxu0 0.0
        %783 = vmatprep.subr.mxu0 0.0
        %784 = vmatpush1.msra.mxu0 0.0
        %785 = vmatprep.subr.mxu0 0.0
        %786 = vmatpush1.msra.mxu0 0.0
        %787 = vmatprep.subr.mxu0 0.0
        %788 = vmatpush1.msra.mxu0 0.0
        %789 = vmatprep.subr.mxu0 0.0
        %790 = vmatpush1.msra.mxu0 0.0
        %791 = vmatprep.subr.mxu0 0.0
        %792 = vmatpush1.msra.mxu0 0.0
        %793 = vmatprep.subr.mxu0 0.0
        %794 = vmatpush1.msra.mxu0 0.0
        %795 = vmatprep.subr.mxu0 0.0
        %796 = vmatpush1.msra.mxu0 0.0
        %797 = vmatprep.subr.mxu0 0.0
        %798 = vmatpush1.msra.mxu0 0.0
        %799 = vmatprep.subr.mxu0 0.0
        %800 = vmatpush1.msra.mxu0 0.0
        %801 = vmatprep.subr.mxu0 0.0
        %802 = vmatpush1.msra.mxu0 0.0
        %803 = vmatprep.subr.mxu0 0.0
        %804 = vmatpush1.msra.mxu0 0.0
        %805 = vmatprep.subr.mxu0 0.0
        %806 = vmatpush1.msra.mxu0 0.0
        %807 = vmatprep.subr.mxu0 0.0
        %808 = vmatpush1.msra.mxu0 0.0
        %809 = vmatprep.subr.mxu0 0.0
        %810 = vmatpush1.msra.mxu0 0.0
        %811 = vmatprep.mubr.f32.mxu0 0.0
        %812 = vmatmul.mubr.f32.gmra.mrb[0].mxu0 %v649
        %v813 = vpop.f32.mrb[0].mxu0
        %v814 = vadd.f32 %v490, %v813
        %v815 = vpop.f32.mrb[0].mxu0
        %816 = vmatprep.mubr.f32.mxu0 0.0
        %817 = vmatmul.mubr.f32.gmra.mrb[0].mxu0 %v652
        %v818 = vpop.f32.mrb[0].mxu0
        %v819 = vadd.f32 %v495, %v818
        %v820 = vpop.f32.mrb[0].mxu0
        %821 = vmatprep.mubr.f32.mxu0 0.0
        %822 = vmatmul.mubr.f32.gmra.mrb[0].mxu0 %v655
        %v823 = vpop.f32.mrb[0].mxu0
        %v824 = vadd.f32 %v500, %v823
        %v825 = vpop.f32.mrb[0].mxu0
        %826 = vmatprep.mubr.f32.mxu0 0.0
        %827 = vmatmul.mubr.f32.gmra.mrb[0].mxu0 %v658
        %v828 = vpop.f32.mrb[0].mxu0
        %v829 = vadd.f32 %v505, %v828
        %v830 = vpop.f32.mrb[0].mxu0
        %831 = vmatprep.mubr.f32.mxu0 0.0
        %832 = vmatmul.mubr.f32.gmra.mrb[0].mxu0 %v661
        %v833 = vpop.f32.mrb[0].mxu0
        %v834 = vadd.f32 %v510, %v833
        %v835 = vpop.f32.mrb[0].mxu0
        %836 = vmatprep.mubr.f32.mxu0 0.0
        %837 = vmatmul.mubr.f32.gmra.mrb[0].mxu0 %v664
        %v838 = vpop.f32.mrb[0].mxu0
        %v839 = vadd.f32 %v515, %v838
        %v840 = vpop.f32.mrb[0].mxu0
        %841 = vmatprep.mubr.f32.mxu0 0.0
        %842 = vmatmul.mubr.f32.gmra.mrb[0].mxu0 %v667
        %v843 = vpop.f32.mrb[0].mxu0
        %v844 = vadd.f32 %v520, %v843
        %v845 = vpop.f32.mrb[0].mxu0
        %846 = vmatprep.mubr.f32.mxu0 0.0
        %847 = vmatmul.mubr.f32.gmra.mrb[0].mxu0 %v670
        %v848 = vpop.f32.mrb[0].mxu0
        %v849 = vadd.f32 %v525, %v848
        %v850 = vpop.f32.mrb[0].mxu0
        %851 = vmatprep.mubr.f32.mxu0 0.0
        %852 = vmatmul.mubr.f32.gmra.mrb[0].mxu0 %v673
        %v853 = vpop.f32.mrb[0].mxu0
        %v854 = vadd.f32 %v530, %v853
        %v855 = vpop.f32.mrb[0].mxu0
        %856 = vmatprep.mubr.f32.mxu0 0.0
        %857 = vmatmul.mubr.f32.gmra.mrb[0].mxu0 %v676
        %v858 = vpop.f32.mrb[0].mxu0
        %v859 = vadd.f32 %v535, %v858
        %v860 = vpop.f32.mrb[0].mxu0
        %861 = vmatprep.mubr.f32.mxu0 0.0
        %862 = vmatmul.mubr.f32.gmra.mrb[0].mxu0 %v679
        %v863 = vpop.f32.mrb[0].mxu0
        %v864 = vadd.f32 %v540, %v863
        %v865 = vpop.f32.mrb[0].mxu0
        %866 = vmatprep.mubr.f32.mxu0 0.0
        %867 = vmatmul.mubr.f32.gmra.mrb[0].mxu0 %v682
        %v868 = vpop.f32.mrb[0].mxu0
        %v869 = vadd.f32 %v545, %v868
        %v870 = vpop.f32.mrb[0].mxu0
        %871 = vmatprep.mubr.f32.mxu0 0.0
        %872 = vmatmul.mubr.f32.gmra.mrb[0].mxu0 %v685
        %v873 = vpop.f32.mrb[0].mxu0
        %v874 = vadd.f32 %v550, %v873
        %v875 = vpop.f32.mrb[0].mxu0
        %876 = vmatprep.mubr.f32.mxu0 0.0
        %877 = vmatmul.mubr.f32.gmra.mrb[0].mxu0 %v688
        %v878 = vpop.f32.mrb[0].mxu0
        %v879 = vadd.f32 %v555, %v878
        %v880 = vpop.f32.mrb[0].mxu0
        %881 = vmatprep.mubr.f32.mxu0 0.0
        %882 = vmatmul.mubr.f32.gmra.mrb[0].mxu0 %v691
        %v883 = vpop.f32.mrb[0].mxu0
        %v884 = vadd.f32 %v560, %v883
        %v885 = vpop.f32.mrb[0].mxu0
        %886 = vmatprep.mubr.f32.mxu0 0.0
        %887 = vmatmul.mubr.f32.gmra.mrb[0].mxu0 %v694
        %v888 = vpop.f32.mrb[0].mxu0
        %v889 = vadd.f32 %v565, %v888
        %v890 = vpop.f32.mrb[0].mxu0
        %891 = vmatprep.mubr.f32.mxu0 0.0
        %892 = vmatmul.mubr.f32.gmra.mrb[0].mxu0 %v697
        %v893 = vpop.f32.mrb[0].mxu0
        %v894 = vadd.f32 %v570, %v893
        %v895 = vpop.f32.mrb[0].mxu0
        %896 = vmatprep.mubr.f32.mxu0 0.0
        %897 = vmatmul.mubr.f32.gmra.mrb[0].mxu0 %v700
        %v898 = vpop.f32.mrb[0].mxu0
        %v899 = vadd.f32 %v575, %v898
        %v900 = vpop.f32.mrb[0].mxu0
        %901 = vmatprep.mubr.f32.mxu0 0.0
        %902 = vmatmul.mubr.f32.gmra.mrb[0].mxu0 %v703
        %v903 = vpop.f32.mrb[0].mxu0
        %v904 = vadd.f32 %v580, %v903
        %v905 = vpop.f32.mrb[0].mxu0
        %906 = vmatprep.mubr.f32.mxu0 0.0
        %907 = vmatmul.mubr.f32.gmra.mrb[0].mxu0 %v706
        %v908 = vpop.f32.mrb[0].mxu0
        %v909 = vadd.f32 %v585, %v908
        %v910 = vpop.f32.mrb[0].mxu0
        %911 = vmatprep.mubr.f32.mxu0 0.0
        %912 = vmatmul.mubr.f32.gmra.mrb[0].mxu0 %v709
        %v913 = vpop.f32.mrb[0].mxu0
        %v914 = vadd.f32 %v590, %v913
        %v915 = vpop.f32.mrb[0].mxu0
        %916 = vmatprep.mubr.f32.mxu0 0.0
        %917 = vmatmul.mubr.f32.gmra.mrb[0].mxu0 %v712
        %v918 = vpop.f32.mrb[0].mxu0
        %v919 = vadd.f32 %v595, %v918
        %v920 = vpop.f32.mrb[0].mxu0
        %921 = vmatprep.mubr.f32.mxu0 0.0
        %922 = vmatmul.mubr.f32.gmra.mrb[0].mxu0 %v715
        %v923 = vpop.f32.mrb[0].mxu0
        %v924 = vadd.f32 %v600, %v923
        %v925 = vpop.f32.mrb[0].mxu0
        %926 = vmatprep.mubr.f32.mxu0 0.0
        %927 = vmatmul.mubr.f32.gmra.mrb[0].mxu0 %v718
        %v928 = vpop.f32.mrb[0].mxu0
        %v929 = vadd.f32 %v605, %v928
        %v930 = vpop.f32.mrb[0].mxu0
        %931 = vmatprep.mubr.f32.mxu0 0.0
        %932 = vmatmul.mubr.f32.gmra.mrb[0].mxu0 %v721
        %v933 = vpop.f32.mrb[0].mxu0
        %v934 = vadd.f32 %v610, %v933
        %v935 = vpop.f32.mrb[0].mxu0
        %936 = vmatprep.mubr.f32.mxu0 0.0
        %937 = vmatmul.mubr.f32.gmra.mrb[0].mxu0 %v724
        %v938 = vpop.f32.mrb[0].mxu0
        %v939 = vadd.f32 %v615, %v938
        %v940 = vpop.f32.mrb[0].mxu0
        %941 = vmatprep.mubr.f32.mxu0 0.0
        %942 = vmatmul.mubr.f32.gmra.mrb[0].mxu0 %v727
        %v943 = vpop.f32.mrb[0].mxu0
        %v944 = vadd.f32 %v620, %v943
        %v945 = vpop.f32.mrb[0].mxu0
        %946 = vmatprep.mubr.f32.mxu0 0.0
        %947 = vmatmul.mubr.f32.gmra.mrb[0].mxu0 %v730
        %v948 = vpop.f32.mrb[0].mxu0
        %v949 = vadd.f32 %v625, %v948
        %v950 = vpop.f32.mrb[0].mxu0
        %951 = vmatprep.mubr.f32.mxu0 0.0
        %952 = vmatmul.mubr.f32.gmra.mrb[0].mxu0 %v733
        %v953 = vpop.f32.mrb[0].mxu0
        %v954 = vadd.f32 %v630, %v953
        %v955 = vpop.f32.mrb[0].mxu0
        %956 = vmatprep.mubr.f32.mxu0 0.0
        %957 = vmatmul.mubr.f32.gmra.mrb[0].mxu0 %v736
        %v958 = vpop.f32.mrb[0].mxu0
        %v959 = vadd.f32 %v635, %v958
        %v960 = vpop.f32.mrb[0].mxu0
        %961 = vmatprep.mubr.f32.mxu0 0.0
        %962 = vmatmul.mubr.f32.gmra.mrb[0].mxu0 %v739
        %v963 = vpop.f32.mrb[0].mxu0
        %v964 = vadd.f32 %v640, %v963
        %v965 = vpop.f32.mrb[0].mxu0
        %966 = vmatprep.mubr.f32.mxu0 0.0
        %967 = vmatmul.mubr.f32.gmra.mrb[0].mxu0 %v742
        %v968 = vpop.f32.mrb[0].mxu0
        %v969 = vadd.f32 %v645, %v968
        %v970 = vpop.f32.mrb[0].mxu0
        %971 = vdwg.mxu0
        %v972 = vld [vmem:[%s254 + $0x2] sm:$0xff]
        %v973 = vld [vmem:[%s254 + $0xa] sm:$0xff]
        %v974 = vld [vmem:[%s254 + $0x1a] sm:$0xff]
        %v975 = vld [vmem:[%s254 + $0x22] sm:$0xff]
        %v976 = vld [vmem:[%s254 + $0x32] sm:$0xff]
        %v977 = vld [vmem:[%s254 + $0x3a] sm:$0xff]
        %v978 = vld [vmem:[%s254 + $0x4a] sm:$0xff]
        %v979 = vld [vmem:[%s254 + $0x52] sm:$0xff]
        %v980 = vld [vmem:[%s254 + $0x62] sm:$0xff]
        %v981 = vld [vmem:[%s254 + $0x6a] sm:$0xff]
        %v982 = vld [vmem:[%s254 + $0x7a] sm:$0xff]
        %v983 = vld [vmem:[%s254 + $0x82] sm:$0xff]
        %v984 = vld [vmem:[%s254 + $0x92] sm:$0xff]
        %v985 = vld [vmem:[%s254 + $0x9a] sm:$0xff]
        %v986 = vld [vmem:[%s254 + $0xaa] sm:$0xff]
        %v987 = vld [vmem:[%s254 + $0xb2] sm:$0xff]
        %v988 = vld [vmem:[%s254 + $0xc2] sm:$0xff]
        %v989 = vld [vmem:[%s254 + $0xca] sm:$0xff]
        %v990 = vld [vmem:[%s254 + $0xda] sm:$0xff]
        %v991 = vld [vmem:[%s254 + $0xe2] sm:$0xff]
        %v992 = vld [vmem:[%s254 + $0xf2] sm:$0xff]
        %v993 = vld [vmem:[%s254 + $0xfa] sm:$0xff]
        %v994 = vld [vmem:[%s254 + $0x10a] sm:$0xff]
        %v995 = vld [vmem:[%s254 + $0x112] sm:$0xff]
        %v996 = vld [vmem:[%s254 + $0x122] sm:$0xff]
        %v997 = vld [vmem:[%s254 + $0x12a] sm:$0xff]
        %v998 = vld [vmem:[%s254 + $0x13a] sm:$0xff]
        %v999 = vld [vmem:[%s254 + $0x142] sm:$0xff]
        %v1000 = vld [vmem:[%s254 + $0x152] sm:$0xff]
        %v1001 = vld [vmem:[%s254 + $0x15a] sm:$0xff]
        %v1002 = vld [vmem:[%s254 + $0x16a] sm:$0xff]
        %v1003 = vld [vmem:[%s254 + $0x172] sm:$0xff]
        %s1004 = scalar_lea.vmem %s1, 8
        %v1005 = vld [vmem:[%s1004] sm:$0xf]
        %v1007 = vsel %vm322, %v972, 0
        %v1010 = vsel %vm322, %v973, 0
        %v1013 = vsel %vm322, %v974, 0
        %v1016 = vsel %vm322, %v975, 0
        %v1019 = vsel %vm322, %v976, 0
        %v1022 = vsel %vm322, %v977, 0
        %v1025 = vsel %vm322, %v978, 0
        %v1028 = vsel %vm322, %v979, 0
        %v1031 = vsel %vm322, %v980, 0
        %v1034 = vsel %vm322, %v981, 0
        %v1037 = vsel %vm322, %v982, 0
        %v1040 = vsel %vm322, %v983, 0
        %v1043 = vsel %vm322, %v984, 0
        %v1046 = vsel %vm322, %v985, 0
        %v1049 = vsel %vm322, %v986, 0
        %v1052 = vsel %vm322, %v987, 0
        %v1055 = vsel %vm322, %v988, 0
        %v1058 = vsel %vm322, %v989, 0
        %v1061 = vsel %vm322, %v990, 0
        %v1064 = vsel %vm322, %v991, 0
        %v1067 = vsel %vm322, %v992, 0
        %v1070 = vsel %vm322, %v993, 0
        %v1073 = vsel %vm322, %v994, 0
        %v1076 = vsel %vm322, %v995, 0
        %v1079 = vsel %vm322, %v996, 0
        %v1082 = vsel %vm322, %v997, 0
        %v1085 = vsel %vm322, %v998, 0
        %v1088 = vsel %vm322, %v999, 0
        %v1091 = vsel %vm322, %v1000, 0
        %v1094 = vsel %vm322, %v1001, 0
        %v1097 = vsel %vm322, %v1002, 0
        %v1100 = vsel %vm322, %v1003, 0
        %v1103 = vsel %vm419, %v1005, 0
        %1105 = vmatprep.subr.mxu0 0.0
        %1106 = vmatpush1.msra.mxu0 %v1103
        %1107 = vmatprep.subr.mxu0 0.0
        %1108 = vmatpush1.msra.mxu0 0.0
        %1109 = vmatprep.subr.mxu0 0.0
        %1110 = vmatpush1.msra.mxu0 0.0
        %1111 = vmatprep.subr.mxu0 0.0
        %1112 = vmatpush1.msra.mxu0 0.0
        %1113 = vmatprep.subr.mxu0 0.0
        %1114 = vmatpush1.msra.mxu0 0.0
        %1115 = vmatprep.subr.mxu0 0.0
        %1116 = vmatpush1.msra.mxu0 0.0
        %1117 = vmatprep.subr.mxu0 0.0
        %1118 = vmatpush1.msra.mxu0 0.0
        %1119 = vmatprep.subr.mxu0 0.0
        %1120 = vmatpush1.msra.mxu0 0.0
        %1121 = vmatprep.subr.mxu0 0.0
        %1122 = vmatpush1.msra.mxu0 0.0
        %1123 = vmatprep.subr.mxu0 0.0
        %1124 = vmatpush1.msra.mxu0 0.0
        %1125 = vmatprep.subr.mxu0 0.0
        %1126 = vmatpush1.msra.mxu0 0.0
        %1127 = vmatprep.subr.mxu0 0.0
        %1128 = vmatpush1.msra.mxu0 0.0
        %1129 = vmatprep.subr.mxu0 0.0
        %1130 = vmatpush1.msra.mxu0 0.0
        %1131 = vmatprep.subr.mxu0 0.0
        %1132 = vmatpush1.msra.mxu0 0.0
        %1133 = vmatprep.subr.mxu0 0.0
        %1134 = vmatpush1.msra.mxu0 0.0
        %1135 = vmatprep.subr.mxu0 0.0
        %1136 = vmatpush1.msra.mxu0 0.0
        %1137 = vmatprep.subr.mxu0 0.0
        %1138 = vmatpush1.msra.mxu0 0.0
        %1139 = vmatprep.subr.mxu0 0.0
        %1140 = vmatpush1.msra.mxu0 0.0
        %1141 = vmatprep.subr.mxu0 0.0
        %1142 = vmatpush1.msra.mxu0 0.0
        %1143 = vmatprep.subr.mxu0 0.0
        %1144 = vmatpush1.msra.mxu0 0.0
        %1145 = vmatprep.subr.mxu0 0.0
        %1146 = vmatpush1.msra.mxu0 0.0
        %1147 = vmatprep.subr.mxu0 0.0
        %1148 = vmatpush1.msra.mxu0 0.0
        %1149 = vmatprep.subr.mxu0 0.0
        %1150 = vmatpush1.msra.mxu0 0.0
        %1151 = vmatprep.subr.mxu0 0.0
        %1152 = vmatpush1.msra.mxu0 0.0
        %1153 = vmatprep.subr.mxu0 0.0
        %1154 = vmatpush1.msra.mxu0 0.0
        %1155 = vmatprep.subr.mxu0 0.0
        %1156 = vmatpush1.msra.mxu0 0.0
        %1157 = vmatprep.subr.mxu0 0.0
        %1158 = vmatpush1.msra.mxu0 0.0
        %1159 = vmatprep.subr.mxu0 0.0
        %1160 = vmatpush1.msra.mxu0 0.0
        %1161 = vmatprep.subr.mxu0 0.0
        %1162 = vmatpush1.msra.mxu0 0.0
        %1163 = vmatprep.subr.mxu0 0.0
        %1164 = vmatpush1.msra.mxu0 0.0
        %1165 = vmatprep.subr.mxu0 0.0
        %1166 = vmatpush1.msra.mxu0 0.0
        %1167 = vmatprep.subr.mxu0 0.0
        %1168 = vmatpush1.msra.mxu0 0.0
        %1169 = vmatprep.mubr.f32.mxu0 0.0
        %1170 = vmatmul.mubr.f32.gmra.mrb[0].mxu0 %v1007
        %v1171 = vpop.f32.mrb[0].mxu0
        %v1172 = vadd.f32 0.0, %v1171
        %v1173 = vpop.f32.mrb[0].mxu0
        %1174 = vmatprep.mubr.f32.mxu0 0.0
        %1175 = vmatmul.mubr.f32.gmra.mrb[0].mxu0 %v1010
        %v1176 = vpop.f32.mrb[0].mxu0
        %v1177 = vadd.f32 0.0, %v1176
        %v1178 = vpop.f32.mrb[0].mxu0
        %1179 = vmatprep.mubr.f32.mxu0 0.0
        %1180 = vmatmul.mubr.f32.gmra.mrb[0].mxu0 %v1013
        %v1181 = vpop.f32.mrb[0].mxu0
        %v1182 = vadd.f32 0.0, %v1181
        %v1183 = vpop.f32.mrb[0].mxu0
        %1184 = vmatprep.mubr.f32.mxu0 0.0
        %1185 = vmatmul.mubr.f32.gmra.mrb[0].mxu0 %v1016
        %v1186 = vpop.f32.mrb[0].mxu0
        %v1187 = vadd.f32 0.0, %v1186
        %v1188 = vpop.f32.mrb[0].mxu0
        %1189 = vmatprep.mubr.f32.mxu0 0.0
        %1190 = vmatmul.mubr.f32.gmra.mrb[0].mxu0 %v1019
        %v1191 = vpop.f32.mrb[0].mxu0
        %v1192 = vadd.f32 0.0, %v1191
        %v1193 = vpop.f32.mrb[0].mxu0
        %1194 = vmatprep.mubr.f32.mxu0 0.0
        %1195 = vmatmul.mubr.f32.gmra.mrb[0].mxu0 %v1022
        %v1196 = vpop.f32.mrb[0].mxu0
        %v1197 = vadd.f32 0.0, %v1196
        %v1198 = vpop.f32.mrb[0].mxu0
        %1199 = vmatprep.mubr.f32.mxu0 0.0
        %1200 = vmatmul.mubr.f32.gmra.mrb[0].mxu0 %v1025
        %v1201 = vpop.f32.mrb[0].mxu0
        %v1202 = vadd.f32 0.0, %v1201
        %v1203 = vpop.f32.mrb[0].mxu0
        %1204 = vmatprep.mubr.f32.mxu0 0.0
        %1205 = vmatmul.mubr.f32.gmra.mrb[0].mxu0 %v1028
        %v1206 = vpop.f32.mrb[0].mxu0
        %v1207 = vadd.f32 0.0, %v1206
        %v1208 = vpop.f32.mrb[0].mxu0
        %1209 = vmatprep.mubr.f32.mxu0 0.0
        %1210 = vmatmul.mubr.f32.gmra.mrb[0].mxu0 %v1031
        %v1211 = vpop.f32.mrb[0].mxu0
        %v1212 = vadd.f32 0.0, %v1211
        %v1213 = vpop.f32.mrb[0].mxu0
        %1214 = vmatprep.mubr.f32.mxu0 0.0
        %1215 = vmatmul.mubr.f32.gmra.mrb[0].mxu0 %v1034
        %v1216 = vpop.f32.mrb[0].mxu0
        %v1217 = vadd.f32 0.0, %v1216
        %v1218 = vpop.f32.mrb[0].mxu0
        %1219 = vmatprep.mubr.f32.mxu0 0.0
        %1220 = vmatmul.mubr.f32.gmra.mrb[0].mxu0 %v1037
        %v1221 = vpop.f32.mrb[0].mxu0
        %v1222 = vadd.f32 0.0, %v1221
        %v1223 = vpop.f32.mrb[0].mxu0
        %1224 = vmatprep.mubr.f32.mxu0 0.0
        %1225 = vmatmul.mubr.f32.gmra.mrb[0].mxu0 %v1040
        %v1226 = vpop.f32.mrb[0].mxu0
        %v1227 = vadd.f32 0.0, %v1226
        %v1228 = vpop.f32.mrb[0].mxu0
        %1229 = vmatprep.mubr.f32.mxu0 0.0
        %1230 = vmatmul.mubr.f32.gmra.mrb[0].mxu0 %v1043
        %v1231 = vpop.f32.mrb[0].mxu0
        %v1232 = vadd.f32 0.0, %v1231
        %v1233 = vpop.f32.mrb[0].mxu0
        %1234 = vmatprep.mubr.f32.mxu0 0.0
        %1235 = vmatmul.mubr.f32.gmra.mrb[0].mxu0 %v1046
        %v1236 = vpop.f32.mrb[0].mxu0
        %v1237 = vadd.f32 0.0, %v1236
        %v1238 = vpop.f32.mrb[0].mxu0
        %1239 = vmatprep.mubr.f32.mxu0 0.0
        %1240 = vmatmul.mubr.f32.gmra.mrb[0].mxu0 %v1049
        %v1241 = vpop.f32.mrb[0].mxu0
        %v1242 = vadd.f32 0.0, %v1241
        %v1243 = vpop.f32.mrb[0].mxu0
        %1244 = vmatprep.mubr.f32.mxu0 0.0
        %1245 = vmatmul.mubr.f32.gmra.mrb[0].mxu0 %v1052
        %v1246 = vpop.f32.mrb[0].mxu0
        %v1247 = vadd.f32 0.0, %v1246
        %v1248 = vpop.f32.mrb[0].mxu0
        %1249 = vmatprep.mubr.f32.mxu0 0.0
        %1250 = vmatmul.mubr.f32.gmra.mrb[0].mxu0 %v1055
        %v1251 = vpop.f32.mrb[0].mxu0
        %v1252 = vadd.f32 0.0, %v1251
        %v1253 = vpop.f32.mrb[0].mxu0
        %1254 = vmatprep.mubr.f32.mxu0 0.0
        %1255 = vmatmul.mubr.f32.gmra.mrb[0].mxu0 %v1058
        %v1256 = vpop.f32.mrb[0].mxu0
        %v1257 = vadd.f32 0.0, %v1256
        %v1258 = vpop.f32.mrb[0].mxu0
        %1259 = vmatprep.mubr.f32.mxu0 0.0
        %1260 = vmatmul.mubr.f32.gmra.mrb[0].mxu0 %v1061
        %v1261 = vpop.f32.mrb[0].mxu0
        %v1262 = vadd.f32 0.0, %v1261
        %v1263 = vpop.f32.mrb[0].mxu0
        %1264 = vmatprep.mubr.f32.mxu0 0.0
        %1265 = vmatmul.mubr.f32.gmra.mrb[0].mxu0 %v1064
        %v1266 = vpop.f32.mrb[0].mxu0
        %v1267 = vadd.f32 0.0, %v1266
        %v1268 = vpop.f32.mrb[0].mxu0
        %1269 = vmatprep.mubr.f32.mxu0 0.0
        %1270 = vmatmul.mubr.f32.gmra.mrb[0].mxu0 %v1067
        %v1271 = vpop.f32.mrb[0].mxu0
        %v1272 = vadd.f32 0.0, %v1271
        %v1273 = vpop.f32.mrb[0].mxu0
        %1274 = vmatprep.mubr.f32.mxu0 0.0
        %1275 = vmatmul.mubr.f32.gmra.mrb[0].mxu0 %v1070
        %v1276 = vpop.f32.mrb[0].mxu0
        %v1277 = vadd.f32 0.0, %v1276
        %v1278 = vpop.f32.mrb[0].mxu0
        %1279 = vmatprep.mubr.f32.mxu0 0.0
        %1280 = vmatmul.mubr.f32.gmra.mrb[0].mxu0 %v1073
        %v1281 = vpop.f32.mrb[0].mxu0
        %v1282 = vadd.f32 0.0, %v1281
        %v1283 = vpop.f32.mrb[0].mxu0
        %1284 = vmatprep.mubr.f32.mxu0 0.0
        %1285 = vmatmul.mubr.f32.gmra.mrb[0].mxu0 %v1076
        %v1286 = vpop.f32.mrb[0].mxu0
        %v1287 = vadd.f32 0.0, %v1286
        %v1288 = vpop.f32.mrb[0].mxu0
        %1289 = vmatprep.mubr.f32.mxu0 0.0
        %1290 = vmatmul.mubr.f32.gmra.mrb[0].mxu0 %v1079
        %v1291 = vpop.f32.mrb[0].mxu0
        %v1292 = vadd.f32 0.0, %v1291
        %v1293 = vpop.f32.mrb[0].mxu0
        %1294 = vmatprep.mubr.f32.mxu0 0.0
        %1295 = vmatmul.mubr.f32.gmra.mrb[0].mxu0 %v1082
        %v1296 = vpop.f32.mrb[0].mxu0
        %v1297 = vadd.f32 0.0, %v1296
        %v1298 = vpop.f32.mrb[0].mxu0
        %1299 = vmatprep.mubr.f32.mxu0 0.0
        %1300 = vmatmul.mubr.f32.gmra.mrb[0].mxu0 %v1085
        %v1301 = vpop.f32.mrb[0].mxu0
        %v1302 = vadd.f32 0.0, %v1301
        %v1303 = vpop.f32.mrb[0].mxu0
        %1304 = vmatprep.mubr.f32.mxu0 0.0
        %1305 = vmatmul.mubr.f32.gmra.mrb[0].mxu0 %v1088
        %v1306 = vpop.f32.mrb[0].mxu0
        %v1307 = vadd.f32 0.0, %v1306
        %v1308 = vpop.f32.mrb[0].mxu0
        %1309 = vmatprep.mubr.f32.mxu0 0.0
        %1310 = vmatmul.mubr.f32.gmra.mrb[0].mxu0 %v1091
        %v1311 = vpop.f32.mrb[0].mxu0
        %v1312 = vadd.f32 0.0, %v1311
        %v1313 = vpop.f32.mrb[0].mxu0
        %1314 = vmatprep.mubr.f32.mxu0 0.0
        %1315 = vmatmul.mubr.f32.gmra.mrb[0].mxu0 %v1094
        %v1316 = vpop.f32.mrb[0].mxu0
        %v1317 = vadd.f32 0.0, %v1316
        %v1318 = vpop.f32.mrb[0].mxu0
        %1319 = vmatprep.mubr.f32.mxu0 0.0
        %1320 = vmatmul.mubr.f32.gmra.mrb[0].mxu0 %v1097
        %v1321 = vpop.f32.mrb[0].mxu0
        %v1322 = vadd.f32 0.0, %v1321
        %v1323 = vpop.f32.mrb[0].mxu0
        %1324 = vmatprep.mubr.f32.mxu0 0.0
        %1325 = vmatmul.mubr.f32.gmra.mrb[0].mxu0 %v1100
        %v1326 = vpop.f32.mrb[0].mxu0
        %v1327 = vadd.f32 0.0, %v1326
        %v1328 = vpop.f32.mrb[0].mxu0
        %1329 = vdwg.mxu0
        %v1330 = vadd.f32 %v814, %v1172
        %v1331 = vadd.f32 %v819, %v1177
        %v1332 = vadd.f32 %v824, %v1182
        %v1333 = vadd.f32 %v829, %v1187
        %v1334 = vadd.f32 %v834, %v1192
        %v1335 = vadd.f32 %v839, %v1197
        %v1336 = vadd.f32 %v844, %v1202
        %v1337 = vadd.f32 %v849, %v1207
        %v1338 = vadd.f32 %v854, %v1212
        %v1339 = vadd.f32 %v859, %v1217
        %v1340 = vadd.f32 %v864, %v1222
        %v1341 = vadd.f32 %v869, %v1227
        %v1342 = vadd.f32 %v874, %v1232
        %v1343 = vadd.f32 %v879, %v1237
        %v1344 = vadd.f32 %v884, %v1242
        %v1345 = vadd.f32 %v889, %v1247
        %v1346 = vadd.f32 %v894, %v1252
        %v1347 = vadd.f32 %v899, %v1257
        %v1348 = vadd.f32 %v904, %v1262
        %v1349 = vadd.f32 %v909, %v1267
        %v1350 = vadd.f32 %v914, %v1272
        %v1351 = vadd.f32 %v919, %v1277
        %v1352 = vadd.f32 %v924, %v1282
        %v1353 = vadd.f32 %v929, %v1287
        %v1354 = vadd.f32 %v934, %v1292
        %v1355 = vadd.f32 %v939, %v1297
        %v1356 = vadd.f32 %v944, %v1302
        %v1357 = vadd.f32 %v949, %v1307
        %v1358 = vadd.f32 %v954, %v1312
        %v1359 = vadd.f32 %v959, %v1317
        %v1360 = vadd.f32 %v964, %v1322
        %v1361 = vadd.f32 %v969, %v1327
        %s1362 = sadd.s32 %s252, 1
        %s1363 = smul.u32 %s1362, 24
        %s1364 = scalar_lea.vmem %s247, %s1363
        %v1365 = vld [vmem:[%s1364] sm:$0xff]
        %v1366 = vld [vmem:[%s1364 + $0x8] sm:$0xff]
        %v1367 = vld [vmem:[%s1364 + $0x18] sm:$0xff]
        %v1368 = vld [vmem:[%s1364 + $0x20] sm:$0xff]
        %v1369 = vld [vmem:[%s1364 + $0x30] sm:$0xff]
        %v1370 = vld [vmem:[%s1364 + $0x38] sm:$0xff]
        %v1371 = vld [vmem:[%s1364 + $0x48] sm:$0xff]
        %v1372 = vld [vmem:[%s1364 + $0x50] sm:$0xff]
        %v1373 = vld [vmem:[%s1364 + $0x60] sm:$0xff]
        %v1374 = vld [vmem:[%s1364 + $0x68] sm:$0xff]
        %v1375 = vld [vmem:[%s1364 + $0x78] sm:$0xff]
        %v1376 = vld [vmem:[%s1364 + $0x80] sm:$0xff]
        %v1377 = vld [vmem:[%s1364 + $0x90] sm:$0xff]
        %v1378 = vld [vmem:[%s1364 + $0x98] sm:$0xff]
        %v1379 = vld [vmem:[%s1364 + $0xa8] sm:$0xff]
        %v1380 = vld [vmem:[%s1364 + $0xb0] sm:$0xff]
        %v1381 = vld [vmem:[%s1364 + $0xc0] sm:$0xff]
        %v1382 = vld [vmem:[%s1364 + $0xc8] sm:$0xff]
        %v1383 = vld [vmem:[%s1364 + $0xd8] sm:$0xff]
        %v1384 = vld [vmem:[%s1364 + $0xe0] sm:$0xff]
        %v1385 = vld [vmem:[%s1364 + $0xf0] sm:$0xff]
        %v1386 = vld [vmem:[%s1364 + $0xf8] sm:$0xff]
        %v1387 = vld [vmem:[%s1364 + $0x108] sm:$0xff]
        %v1388 = vld [vmem:[%s1364 + $0x110] sm:$0xff]
        %v1389 = vld [vmem:[%s1364 + $0x120] sm:$0xff]
        %v1390 = vld [vmem:[%s1364 + $0x128] sm:$0xff]
        %v1391 = vld [vmem:[%s1364 + $0x138] sm:$0xff]
        %v1392 = vld [vmem:[%s1364 + $0x140] sm:$0xff]
        %v1393 = vld [vmem:[%s1364 + $0x150] sm:$0xff]
        %v1394 = vld [vmem:[%s1364 + $0x158] sm:$0xff]
        %v1395 = vld [vmem:[%s1364 + $0x168] sm:$0xff]
        %v1396 = vld [vmem:[%s1364 + $0x170] sm:$0xff]
        %s1397 = scalar_lea.vmem %s1, 12
        %v1398 = vld [vmem:[%s1397] sm:$0xf]
        %v1400 = vsel %vm322, %v1365, 0
        %v1403 = vsel %vm322, %v1366, 0
        %v1406 = vsel %vm322, %v1367, 0
        %v1409 = vsel %vm322, %v1368, 0
        %v1412 = vsel %vm322, %v1369, 0
        %v1415 = vsel %vm322, %v1370, 0
        %v1418 = vsel %vm322, %v1371, 0
        %v1421 = vsel %vm322, %v1372, 0
        %v1424 = vsel %vm322, %v1373, 0
        %v1427 = vsel %vm322, %v1374, 0
        %v1430 = vsel %vm322, %v1375, 0
        %v1433 = vsel %vm322, %v1376, 0
        %v1436 = vsel %vm322, %v1377, 0
        %v1439 = vsel %vm322, %v1378, 0
        %v1442 = vsel %vm322, %v1379, 0
        %v1445 = vsel %vm322, %v1380, 0
        %v1448 = vsel %vm322, %v1381, 0
        %v1451 = vsel %vm322, %v1382, 0
        %v1454 = vsel %vm322, %v1383, 0
        %v1457 = vsel %vm322, %v1384, 0
        %v1460 = vsel %vm322, %v1385, 0
        %v1463 = vsel %vm322, %v1386, 0
        %v1466 = vsel %vm322, %v1387, 0
        %v1469 = vsel %vm322, %v1388, 0
        %v1472 = vsel %vm322, %v1389, 0
        %v1475 = vsel %vm322, %v1390, 0
        %v1478 = vsel %vm322, %v1391, 0
        %v1481 = vsel %vm322, %v1392, 0
        %v1484 = vsel %vm322, %v1393, 0
        %v1487 = vsel %vm322, %v1394, 0
        %v1490 = vsel %vm322, %v1395, 0
        %v1493 = vsel %vm322, %v1396, 0
        %v1496 = vsel %vm419, %v1398, 0
        %1498 = vmatprep.subr.mxu0 0.0
        %1499 = vmatpush1.msra.mxu0 %v1496
        %1500 = vmatprep.subr.mxu0 0.0
        %1501 = vmatpush1.msra.mxu0 0.0
        %1502 = vmatprep.subr.mxu0 0.0
        %1503 = vmatpush1.msra.mxu0 0.0
        %1504 = vmatprep.subr.mxu0 0.0
        %1505 = vmatpush1.msra.mxu0 0.0
        %1506 = vmatprep.subr.mxu0 0.0
        %1507 = vmatpush1.msra.mxu0 0.0
        %1508 = vmatprep.subr.mxu0 0.0
        %1509 = vmatpush1.msra.mxu0 0.0
        %1510 = vmatprep.subr.mxu0 0.0
        %1511 = vmatpush1.msra.mxu0 0.0
        %1512 = vmatprep.subr.mxu0 0.0
        %1513 = vmatpush1.msra.mxu0 0.0
        %1514 = vmatprep.subr.mxu0 0.0
        %1515 = vmatpush1.msra.mxu0 0.0
        %1516 = vmatprep.subr.mxu0 0.0
        %1517 = vmatpush1.msra.mxu0 0.0
        %1518 = vmatprep.subr.mxu0 0.0
        %1519 = vmatpush1.msra.mxu0 0.0
        %1520 = vmatprep.subr.mxu0 0.0
        %1521 = vmatpush1.msra.mxu0 0.0
        %1522 = vmatprep.subr.mxu0 0.0
        %1523 = vmatpush1.msra.mxu0 0.0
        %1524 = vmatprep.subr.mxu0 0.0
        %1525 = vmatpush1.msra.mxu0 0.0
        %1526 = vmatprep.subr.mxu0 0.0
        %1527 = vmatpush1.msra.mxu0 0.0
        %1528 = vmatprep.subr.mxu0 0.0
        %1529 = vmatpush1.msra.mxu0 0.0
        %1530 = vmatprep.subr.mxu0 0.0
        %1531 = vmatpush1.msra.mxu0 0.0
        %1532 = vmatprep.subr.mxu0 0.0
        %1533 = vmatpush1.msra.mxu0 0.0
        %1534 = vmatprep.subr.mxu0 0.0
        %1535 = vmatpush1.msra.mxu0 0.0
        %1536 = vmatprep.subr.mxu0 0.0
        %1537 = vmatpush1.msra.mxu0 0.0
        %1538 = vmatprep.subr.mxu0 0.0
        %1539 = vmatpush1.msra.mxu0 0.0
        %1540 = vmatprep.subr.mxu0 0.0
        %1541 = vmatpush1.msra.mxu0 0.0
        %1542 = vmatprep.subr.mxu0 0.0
        %1543 = vmatpush1.msra.mxu0 0.0
        %1544 = vmatprep.subr.mxu0 0.0
        %1545 = vmatpush1.msra.mxu0 0.0
        %1546 = vmatprep.subr.mxu0 0.0
        %1547 = vmatpush1.msra.mxu0 0.0
        %1548 = vmatprep.subr.mxu0 0.0
        %1549 = vmatpush1.msra.mxu0 0.0
        %1550 = vmatprep.subr.mxu0 0.0
        %1551 = vmatpush1.msra.mxu0 0.0
        %1552 = vmatprep.subr.mxu0 0.0
        %1553 = vmatpush1.msra.mxu0 0.0
        %1554 = vmatprep.subr.mxu0 0.0
        %1555 = vmatpush1.msra.mxu0 0.0
        %1556 = vmatprep.subr.mxu0 0.0
        %1557 = vmatpush1.msra.mxu0 0.0
        %1558 = vmatprep.subr.mxu0 0.0
        %1559 = vmatpush1.msra.mxu0 0.0
        %1560 = vmatprep.subr.mxu0 0.0
        %1561 = vmatpush1.msra.mxu0 0.0
        %1562 = vmatprep.mubr.f32.mxu0 0.0
        %1563 = vmatmul.mubr.f32.gmra.mrb[0].mxu0 %v1400
        %v1564 = vpop.f32.mrb[0].mxu0
        %v1565 = vadd.f32 0.0, %v1564
        %v1566 = vpop.f32.mrb[0].mxu0
        %1567 = vmatprep.mubr.f32.mxu0 0.0
        %1568 = vmatmul.mubr.f32.gmra.mrb[0].mxu0 %v1403
        %v1569 = vpop.f32.mrb[0].mxu0
        %v1570 = vadd.f32 0.0, %v1569
        %v1571 = vpop.f32.mrb[0].mxu0
        %1572 = vmatprep.mubr.f32.mxu0 0.0
        %1573 = vmatmul.mubr.f32.gmra.mrb[0].mxu0 %v1406
        %v1574 = vpop.f32.mrb[0].mxu0
        %v1575 = vadd.f32 0.0, %v1574
        %v1576 = vpop.f32.mrb[0].mxu0
        %1577 = vmatprep.mubr.f32.mxu0 0.0
        %1578 = vmatmul.mubr.f32.gmra.mrb[0].mxu0 %v1409
        %v1579 = vpop.f32.mrb[0].mxu0
        %v1580 = vadd.f32 0.0, %v1579
        %v1581 = vpop.f32.mrb[0].mxu0
        %1582 = vmatprep.mubr.f32.mxu0 0.0
        %1583 = vmatmul.mubr.f32.gmra.mrb[0].mxu0 %v1412
        %v1584 = vpop.f32.mrb[0].mxu0
        %v1585 = vadd.f32 0.0, %v1584
        %v1586 = vpop.f32.mrb[0].mxu0
        %1587 = vmatprep.mubr.f32.mxu0 0.0
        %1588 = vmatmul.mubr.f32.gmra.mrb[0].mxu0 %v1415
        %v1589 = vpop.f32.mrb[0].mxu0
        %v1590 = vadd.f32 0.0, %v1589
        %v1591 = vpop.f32.mrb[0].mxu0
        %1592 = vmatprep.mubr.f32.mxu0 0.0
        %1593 = vmatmul.mubr.f32.gmra.mrb[0].mxu0 %v1418
        %v1594 = vpop.f32.mrb[0].mxu0
        %v1595 = vadd.f32 0.0, %v1594
        %v1596 = vpop.f32.mrb[0].mxu0
        %1597 = vmatprep.mubr.f32.mxu0 0.0
        %1598 = vmatmul.mubr.f32.gmra.mrb[0].mxu0 %v1421
        %v1599 = vpop.f32.mrb[0].mxu0
        %v1600 = vadd.f32 0.0, %v1599
        %v1601 = vpop.f32.mrb[0].mxu0
        %1602 = vmatprep.mubr.f32.mxu0 0.0
        %1603 = vmatmul.mubr.f32.gmra.mrb[0].mxu0 %v1424
        %v1604 = vpop.f32.mrb[0].mxu0
        %v1605 = vadd.f32 0.0, %v1604
        %v1606 = vpop.f32.mrb[0].mxu0
        %1607 = vmatprep.mubr.f32.mxu0 0.0
        %1608 = vmatmul.mubr.f32.gmra.mrb[0].mxu0 %v1427
        %v1609 = vpop.f32.mrb[0].mxu0
        %v1610 = vadd.f32 0.0, %v1609
        %v1611 = vpop.f32.mrb[0].mxu0
        %1612 = vmatprep.mubr.f32.mxu0 0.0
        %1613 = vmatmul.mubr.f32.gmra.mrb[0].mxu0 %v1430
        %v1614 = vpop.f32.mrb[0].mxu0
        %v1615 = vadd.f32 0.0, %v1614
        %v1616 = vpop.f32.mrb[0].mxu0
        %1617 = vmatprep.mubr.f32.mxu0 0.0
        %1618 = vmatmul.mubr.f32.gmra.mrb[0].mxu0 %v1433
        %v1619 = vpop.f32.mrb[0].mxu0
        %v1620 = vadd.f32 0.0, %v1619
        %v1621 = vpop.f32.mrb[0].mxu0
        %1622 = vmatprep.mubr.f32.mxu0 0.0
        %1623 = vmatmul.mubr.f32.gmra.mrb[0].mxu0 %v1436
        %v1624 = vpop.f32.mrb[0].mxu0
        %v1625 = vadd.f32 0.0, %v1624
        %v1626 = vpop.f32.mrb[0].mxu0
        %1627 = vmatprep.mubr.f32.mxu0 0.0
        %1628 = vmatmul.mubr.f32.gmra.mrb[0].mxu0 %v1439
        %v1629 = vpop.f32.mrb[0].mxu0
        %v1630 = vadd.f32 0.0, %v1629
        %v1631 = vpop.f32.mrb[0].mxu0
        %1632 = vmatprep.mubr.f32.mxu0 0.0
        %1633 = vmatmul.mubr.f32.gmra.mrb[0].mxu0 %v1442
        %v1634 = vpop.f32.mrb[0].mxu0
        %v1635 = vadd.f32 0.0, %v1634
        %v1636 = vpop.f32.mrb[0].mxu0
        %1637 = vmatprep.mubr.f32.mxu0 0.0
        %1638 = vmatmul.mubr.f32.gmra.mrb[0].mxu0 %v1445
        %v1639 = vpop.f32.mrb[0].mxu0
        %v1640 = vadd.f32 0.0, %v1639
        %v1641 = vpop.f32.mrb[0].mxu0
        %1642 = vmatprep.mubr.f32.mxu0 0.0
        %1643 = vmatmul.mubr.f32.gmra.mrb[0].mxu0 %v1448
        %v1644 = vpop.f32.mrb[0].mxu0
        %v1645 = vadd.f32 0.0, %v1644
        %v1646 = vpop.f32.mrb[0].mxu0
        %1647 = vmatprep.mubr.f32.mxu0 0.0
        %1648 = vmatmul.mubr.f32.gmra.mrb[0].mxu0 %v1451
        %v1649 = vpop.f32.mrb[0].mxu0
        %v1650 = vadd.f32 0.0, %v1649
        %v1651 = vpop.f32.mrb[0].mxu0
        %1652 = vmatprep.mubr.f32.mxu0 0.0
        %1653 = vmatmul.mubr.f32.gmra.mrb[0].mxu0 %v1454
        %v1654 = vpop.f32.mrb[0].mxu0
        %v1655 = vadd.f32 0.0, %v1654
        %v1656 = vpop.f32.mrb[0].mxu0
        %1657 = vmatprep.mubr.f32.mxu0 0.0
        %1658 = vmatmul.mubr.f32.gmra.mrb[0].mxu0 %v1457
        %v1659 = vpop.f32.mrb[0].mxu0
        %v1660 = vadd.f32 0.0, %v1659
        %v1661 = vpop.f32.mrb[0].mxu0
        %1662 = vmatprep.mubr.f32.mxu0 0.0
        %1663 = vmatmul.mubr.f32.gmra.mrb[0].mxu0 %v1460
        %v1664 = vpop.f32.mrb[0].mxu0
        %v1665 = vadd.f32 0.0, %v1664
        %v1666 = vpop.f32.mrb[0].mxu0
        %1667 = vmatprep.mubr.f32.mxu0 0.0
        %1668 = vmatmul.mubr.f32.gmra.mrb[0].mxu0 %v1463
        %v1669 = vpop.f32.mrb[0].mxu0
        %v1670 = vadd.f32 0.0, %v1669
        %v1671 = vpop.f32.mrb[0].mxu0
        %1672 = vmatprep.mubr.f32.mxu0 0.0
        %1673 = vmatmul.mubr.f32.gmra.mrb[0].mxu0 %v1466
        %v1674 = vpop.f32.mrb[0].mxu0
        %v1675 = vadd.f32 0.0, %v1674
        %v1676 = vpop.f32.mrb[0].mxu0
        %1677 = vmatprep.mubr.f32.mxu0 0.0
        %1678 = vmatmul.mubr.f32.gmra.mrb[0].mxu0 %v1469
        %v1679 = vpop.f32.mrb[0].mxu0
        %v1680 = vadd.f32 0.0, %v1679
        %v1681 = vpop.f32.mrb[0].mxu0
        %1682 = vmatprep.mubr.f32.mxu0 0.0
        %1683 = vmatmul.mubr.f32.gmra.mrb[0].mxu0 %v1472
        %v1684 = vpop.f32.mrb[0].mxu0
        %v1685 = vadd.f32 0.0, %v1684
        %v1686 = vpop.f32.mrb[0].mxu0
        %1687 = vmatprep.mubr.f32.mxu0 0.0
        %1688 = vmatmul.mubr.f32.gmra.mrb[0].mxu0 %v1475
        %v1689 = vpop.f32.mrb[0].mxu0
        %v1690 = vadd.f32 0.0, %v1689
        %v1691 = vpop.f32.mrb[0].mxu0
        %1692 = vmatprep.mubr.f32.mxu0 0.0
        %1693 = vmatmul.mubr.f32.gmra.mrb[0].mxu0 %v1478
        %v1694 = vpop.f32.mrb[0].mxu0
        %v1695 = vadd.f32 0.0, %v1694
        %v1696 = vpop.f32.mrb[0].mxu0
        %1697 = vmatprep.mubr.f32.mxu0 0.0
        %1698 = vmatmul.mubr.f32.gmra.mrb[0].mxu0 %v1481
        %v1699 = vpop.f32.mrb[0].mxu0
        %v1700 = vadd.f32 0.0, %v1699
        %v1701 = vpop.f32.mrb[0].mxu0
        %1702 = vmatprep.mubr.f32.mxu0 0.0
        %1703 = vmatmul.mubr.f32.gmra.mrb[0].mxu0 %v1484
        %v1704 = vpop.f32.mrb[0].mxu0
        %v1705 = vadd.f32 0.0, %v1704
        %v1706 = vpop.f32.mrb[0].mxu0
        %1707 = vmatprep.mubr.f32.mxu0 0.0
        %1708 = vmatmul.mubr.f32.gmra.mrb[0].mxu0 %v1487
        %v1709 = vpop.f32.mrb[0].mxu0
        %v1710 = vadd.f32 0.0, %v1709
        %v1711 = vpop.f32.mrb[0].mxu0
        %1712 = vmatprep.mubr.f32.mxu0 0.0
        %1713 = vmatmul.mubr.f32.gmra.mrb[0].mxu0 %v1490
        %v1714 = vpop.f32.mrb[0].mxu0
        %v1715 = vadd.f32 0.0, %v1714
        %v1716 = vpop.f32.mrb[0].mxu0
        %1717 = vmatprep.mubr.f32.mxu0 0.0
        %1718 = vmatmul.mubr.f32.gmra.mrb[0].mxu0 %v1493
        %v1719 = vpop.f32.mrb[0].mxu0
        %v1720 = vadd.f32 0.0, %v1719
        %v1721 = vpop.f32.mrb[0].mxu0
        %1722 = vdwg.mxu0
        %v1723 = vadd.f32 %v1330, %v1565
        %v1724 = vadd.f32 %v1331, %v1570
        %v1725 = vadd.f32 %v1332, %v1575
        %v1726 = vadd.f32 %v1333, %v1580
        %v1727 = vadd.f32 %v1334, %v1585
        %v1728 = vadd.f32 %v1335, %v1590
        %v1729 = vadd.f32 %v1336, %v1595
        %v1730 = vadd.f32 %v1337, %v1600
        %v1731 = vadd.f32 %v1338, %v1605
        %v1732 = vadd.f32 %v1339, %v1610
        %v1733 = vadd.f32 %v1340, %v1615
        %v1734 = vadd.f32 %v1341, %v1620
        %v1735 = vadd.f32 %v1342, %v1625
        %v1736 = vadd.f32 %v1343, %v1630
        %v1737 = vadd.f32 %v1344, %v1635
        %v1738 = vadd.f32 %v1345, %v1640
        %v1739 = vadd.f32 %v1346, %v1645
        %v1740 = vadd.f32 %v1347, %v1650
        %v1741 = vadd.f32 %v1348, %v1655
        %v1742 = vadd.f32 %v1349, %v1660
        %v1743 = vadd.f32 %v1350, %v1665
        %v1744 = vadd.f32 %v1351, %v1670
        %v1745 = vadd.f32 %v1352, %v1675
        %v1746 = vadd.f32 %v1353, %v1680
        %v1747 = vadd.f32 %v1354, %v1685
        %v1748 = vadd.f32 %v1355, %v1690
        %v1749 = vadd.f32 %v1356, %v1695
        %v1750 = vadd.f32 %v1357, %v1700
        %v1751 = vadd.f32 %v1358, %v1705
        %v1752 = vadd.f32 %v1359, %v1710
        %v1753 = vadd.f32 %v1360, %v1715
        %v1754 = vadd.f32 %v1361, %v1720
        %v1755 = vld [vmem:[%s1364 + $0x1] sm:$0xff]
        %v1756 = vld [vmem:[%s1364 + $0x9] sm:$0xff]
        %v1757 = vld [vmem:[%s1364 + $0x19] sm:$0xff]
        %v1758 = vld [vmem:[%s1364 + $0x21] sm:$0xff]
        %v1759 = vld [vmem:[%s1364 + $0x31] sm:$0xff]
        %v1760 = vld [vmem:[%s1364 + $0x39] sm:$0xff]
        %v1761 = vld [vmem:[%s1364 + $0x49] sm:$0xff]
        %v1762 = vld [vmem:[%s1364 + $0x51] sm:$0xff]
        %v1763 = vld [vmem:[%s1364 + $0x61] sm:$0xff]
        %v1764 = vld [vmem:[%s1364 + $0x69] sm:$0xff]
        %v1765 = vld [vmem:[%s1364 + $0x79] sm:$0xff]
        %v1766 = vld [vmem:[%s1364 + $0x81] sm:$0xff]
        %v1767 = vld [vmem:[%s1364 + $0x91] sm:$0xff]
        %v1768 = vld [vmem:[%s1364 + $0x99] sm:$0xff]
        %v1769 = vld [vmem:[%s1364 + $0xa9] sm:$0xff]
        %v1770 = vld [vmem:[%s1364 + $0xb1] sm:$0xff]
        %v1771 = vld [vmem:[%s1364 + $0xc1] sm:$0xff]
        %v1772 = vld [vmem:[%s1364 + $0xc9] sm:$0xff]
        %v1773 = vld [vmem:[%s1364 + $0xd9] sm:$0xff]
        %v1774 = vld [vmem:[%s1364 + $0xe1] sm:$0xff]
        %v1775 = vld [vmem:[%s1364 + $0xf1] sm:$0xff]
        %v1776 = vld [vmem:[%s1364 + $0xf9] sm:$0xff]
        %v1777 = vld [vmem:[%s1364 + $0x109] sm:$0xff]
        %v1778 = vld [vmem:[%s1364 + $0x111] sm:$0xff]
        %v1779 = vld [vmem:[%s1364 + $0x121] sm:$0xff]
        %v1780 = vld [vmem:[%s1364 + $0x129] sm:$0xff]
        %v1781 = vld [vmem:[%s1364 + $0x139] sm:$0xff]
        %v1782 = vld [vmem:[%s1364 + $0x141] sm:$0xff]
        %v1783 = vld [vmem:[%s1364 + $0x151] sm:$0xff]
        %v1784 = vld [vmem:[%s1364 + $0x159] sm:$0xff]
        %v1785 = vld [vmem:[%s1364 + $0x169] sm:$0xff]
        %v1786 = vld [vmem:[%s1364 + $0x171] sm:$0xff]
        %s1787 = scalar_lea.vmem %s1, 16
        %v1788 = vld [vmem:[%s1787] sm:$0xf]
        %v1790 = vsel %vm322, %v1755, 0
        %v1793 = vsel %vm322, %v1756, 0
        %v1796 = vsel %vm322, %v1757, 0
        %v1799 = vsel %vm322, %v1758, 0
        %v1802 = vsel %vm322, %v1759, 0
        %v1805 = vsel %vm322, %v1760, 0
        %v1808 = vsel %vm322, %v1761, 0
        %v1811 = vsel %vm322, %v1762, 0
        %v1814 = vsel %vm322, %v1763, 0
        %v1817 = vsel %vm322, %v1764, 0
        %v1820 = vsel %vm322, %v1765, 0
        %v1823 = vsel %vm322, %v1766, 0
        %v1826 = vsel %vm322, %v1767, 0
        %v1829 = vsel %vm322, %v1768, 0
        %v1832 = vsel %vm322, %v1769, 0
        %v1835 = vsel %vm322, %v1770, 0
        %v1838 = vsel %vm322, %v1771, 0
        %v1841 = vsel %vm322, %v1772, 0
        %v1844 = vsel %vm322, %v1773, 0
        %v1847 = vsel %vm322, %v1774, 0
        %v1850 = vsel %vm322, %v1775, 0
        %v1853 = vsel %vm322, %v1776, 0
        %v1856 = vsel %vm322, %v1777, 0
        %v1859 = vsel %vm322, %v1778, 0
        %v1862 = vsel %vm322, %v1779, 0
        %v1865 = vsel %vm322, %v1780, 0
        %v1868 = vsel %vm322, %v1781, 0
        %v1871 = vsel %vm322, %v1782, 0
        %v1874 = vsel %vm322, %v1783, 0
        %v1877 = vsel %vm322, %v1784, 0
        %v1880 = vsel %vm322, %v1785, 0
        %v1883 = vsel %vm322, %v1786, 0
        %v1886 = vsel %vm419, %v1788, 0
        %1888 = vmatprep.subr.mxu0 0.0
        %1889 = vmatpush1.msra.mxu0 %v1886
        %1890 = vmatprep.subr.mxu0 0.0
        %1891 = vmatpush1.msra.mxu0 0.0
        %1892 = vmatprep.subr.mxu0 0.0
        %1893 = vmatpush1.msra.mxu0 0.0
        %1894 = vmatprep.subr.mxu0 0.0
        %1895 = vmatpush1.msra.mxu0 0.0
        %1896 = vmatprep.subr.mxu0 0.0
        %1897 = vmatpush1.msra.mxu0 0.0
        %1898 = vmatprep.subr.mxu0 0.0
        %1899 = vmatpush1.msra.mxu0 0.0
        %1900 = vmatprep.subr.mxu0 0.0
        %1901 = vmatpush1.msra.mxu0 0.0
        %1902 = vmatprep.subr.mxu0 0.0
        %1903 = vmatpush1.msra.mxu0 0.0
        %1904 = vmatprep.subr.mxu0 0.0
        %1905 = vmatpush1.msra.mxu0 0.0
        %1906 = vmatprep.subr.mxu0 0.0
        %1907 = vmatpush1.msra.mxu0 0.0
        %1908 = vmatprep.subr.mxu0 0.0
        %1909 = vmatpush1.msra.mxu0 0.0
        %1910 = vmatprep.subr.mxu0 0.0
        %1911 = vmatpush1.msra.mxu0 0.0
        %1912 = vmatprep.subr.mxu0 0.0
        %1913 = vmatpush1.msra.mxu0 0.0
        %1914 = vmatprep.subr.mxu0 0.0
        %1915 = vmatpush1.msra.mxu0 0.0
        %1916 = vmatprep.subr.mxu0 0.0
        %1917 = vmatpush1.msra.mxu0 0.0
        %1918 = vmatprep.subr.mxu0 0.0
        %1919 = vmatpush1.msra.mxu0 0.0
        %1920 = vmatprep.subr.mxu0 0.0
        %1921 = vmatpush1.msra.mxu0 0.0
        %1922 = vmatprep.subr.mxu0 0.0
        %1923 = vmatpush1.msra.mxu0 0.0
        %1924 = vmatprep.subr.mxu0 0.0
        %1925 = vmatpush1.msra.mxu0 0.0
        %1926 = vmatprep.subr.mxu0 0.0
        %1927 = vmatpush1.msra.mxu0 0.0
        %1928 = vmatprep.subr.mxu0 0.0
        %1929 = vmatpush1.msra.mxu0 0.0
        %1930 = vmatprep.subr.mxu0 0.0
        %1931 = vmatpush1.msra.mxu0 0.0
        %1932 = vmatprep.subr.mxu0 0.0
        %1933 = vmatpush1.msra.mxu0 0.0
        %1934 = vmatprep.subr.mxu0 0.0
        %1935 = vmatpush1.msra.mxu0 0.0
        %1936 = vmatprep.subr.mxu0 0.0
        %1937 = vmatpush1.msra.mxu0 0.0
        %1938 = vmatprep.subr.mxu0 0.0
        %1939 = vmatpush1.msra.mxu0 0.0
        %1940 = vmatprep.subr.mxu0 0.0
        %1941 = vmatpush1.msra.mxu0 0.0
        %1942 = vmatprep.subr.mxu0 0.0
        %1943 = vmatpush1.msra.mxu0 0.0
        %1944 = vmatprep.subr.mxu0 0.0
        %1945 = vmatpush1.msra.mxu0 0.0
        %1946 = vmatprep.subr.mxu0 0.0
        %1947 = vmatpush1.msra.mxu0 0.0
        %1948 = vmatprep.subr.mxu0 0.0
        %1949 = vmatpush1.msra.mxu0 0.0
        %1950 = vmatprep.subr.mxu0 0.0
        %1951 = vmatpush1.msra.mxu0 0.0
        %1952 = vmatprep.mubr.f32.mxu0 0.0
        %1953 = vmatmul.mubr.f32.gmra.mrb[0].mxu0 %v1790
        %v1954 = vpop.f32.mrb[0].mxu0
        %v1955 = vadd.f32 0.0, %v1954
        %v1956 = vpop.f32.mrb[0].mxu0
        %1957 = vmatprep.mubr.f32.mxu0 0.0
        %1958 = vmatmul.mubr.f32.gmra.mrb[0].mxu0 %v1793
        %v1959 = vpop.f32.mrb[0].mxu0
        %v1960 = vadd.f32 0.0, %v1959
        %v1961 = vpop.f32.mrb[0].mxu0
        %1962 = vmatprep.mubr.f32.mxu0 0.0
        %1963 = vmatmul.mubr.f32.gmra.mrb[0].mxu0 %v1796
        %v1964 = vpop.f32.mrb[0].mxu0
        %v1965 = vadd.f32 0.0, %v1964
        %v1966 = vpop.f32.mrb[0].mxu0
        %1967 = vmatprep.mubr.f32.mxu0 0.0
        %1968 = vmatmul.mubr.f32.gmra.mrb[0].mxu0 %v1799
        %v1969 = vpop.f32.mrb[0].mxu0
        %v1970 = vadd.f32 0.0, %v1969
        %v1971 = vpop.f32.mrb[0].mxu0
        %1972 = vmatprep.mubr.f32.mxu0 0.0
        %1973 = vmatmul.mubr.f32.gmra.mrb[0].mxu0 %v1802
        %v1974 = vpop.f32.mrb[0].mxu0
        %v1975 = vadd.f32 0.0, %v1974
        %v1976 = vpop.f32.mrb[0].mxu0
        %1977 = vmatprep.mubr.f32.mxu0 0.0
        %1978 = vmatmul.mubr.f32.gmra.mrb[0].mxu0 %v1805
        %v1979 = vpop.f32.mrb[0].mxu0
        %v1980 = vadd.f32 0.0, %v1979
        %v1981 = vpop.f32.mrb[0].mxu0
        %1982 = vmatprep.mubr.f32.mxu0 0.0
        %1983 = vmatmul.mubr.f32.gmra.mrb[0].mxu0 %v1808
        %v1984 = vpop.f32.mrb[0].mxu0
        %v1985 = vadd.f32 0.0, %v1984
        %v1986 = vpop.f32.mrb[0].mxu0
        %1987 = vmatprep.mubr.f32.mxu0 0.0
        %1988 = vmatmul.mubr.f32.gmra.mrb[0].mxu0 %v1811
        %v1989 = vpop.f32.mrb[0].mxu0
        %v1990 = vadd.f32 0.0, %v1989
        %v1991 = vpop.f32.mrb[0].mxu0
        %1992 = vmatprep.mubr.f32.mxu0 0.0
        %1993 = vmatmul.mubr.f32.gmra.mrb[0].mxu0 %v1814
        %v1994 = vpop.f32.mrb[0].mxu0
        %v1995 = vadd.f32 0.0, %v1994
        %v1996 = vpop.f32.mrb[0].mxu0
        %1997 = vmatprep.mubr.f32.mxu0 0.0
        %1998 = vmatmul.mubr.f32.gmra.mrb[0].mxu0 %v1817
        %v1999 = vpop.f32.mrb[0].mxu0
        %v2000 = vadd.f32 0.0, %v1999
        %v2001 = vpop.f32.mrb[0].mxu0
        %2002 = vmatprep.mubr.f32.mxu0 0.0
        %2003 = vmatmul.mubr.f32.gmra.mrb[0].mxu0 %v1820
        %v2004 = vpop.f32.mrb[0].mxu0
        %v2005 = vadd.f32 0.0, %v2004
        %v2006 = vpop.f32.mrb[0].mxu0
        %2007 = vmatprep.mubr.f32.mxu0 0.0
        %2008 = vmatmul.mubr.f32.gmra.mrb[0].mxu0 %v1823
        %v2009 = vpop.f32.mrb[0].mxu0
        %v2010 = vadd.f32 0.0, %v2009
        %v2011 = vpop.f32.mrb[0].mxu0
        %2012 = vmatprep.mubr.f32.mxu0 0.0
        %2013 = vmatmul.mubr.f32.gmra.mrb[0].mxu0 %v1826
        %v2014 = vpop.f32.mrb[0].mxu0
        %v2015 = vadd.f32 0.0, %v2014
        %v2016 = vpop.f32.mrb[0].mxu0
        %2017 = vmatprep.mubr.f32.mxu0 0.0
        %2018 = vmatmul.mubr.f32.gmra.mrb[0].mxu0 %v1829
        %v2019 = vpop.f32.mrb[0].mxu0
        %v2020 = vadd.f32 0.0, %v2019
        %v2021 = vpop.f32.mrb[0].mxu0
        %2022 = vmatprep.mubr.f32.mxu0 0.0
        %2023 = vmatmul.mubr.f32.gmra.mrb[0].mxu0 %v1832
        %v2024 = vpop.f32.mrb[0].mxu0
        %v2025 = vadd.f32 0.0, %v2024
        %v2026 = vpop.f32.mrb[0].mxu0
        %2027 = vmatprep.mubr.f32.mxu0 0.0
        %2028 = vmatmul.mubr.f32.gmra.mrb[0].mxu0 %v1835
        %v2029 = vpop.f32.mrb[0].mxu0
        %v2030 = vadd.f32 0.0, %v2029
        %v2031 = vpop.f32.mrb[0].mxu0
        %2032 = vmatprep.mubr.f32.mxu0 0.0
        %2033 = vmatmul.mubr.f32.gmra.mrb[0].mxu0 %v1838
        %v2034 = vpop.f32.mrb[0].mxu0
        %v2035 = vadd.f32 0.0, %v2034
        %v2036 = vpop.f32.mrb[0].mxu0
        %2037 = vmatprep.mubr.f32.mxu0 0.0
        %2038 = vmatmul.mubr.f32.gmra.mrb[0].mxu0 %v1841
        %v2039 = vpop.f32.mrb[0].mxu0
        %v2040 = vadd.f32 0.0, %v2039
        %v2041 = vpop.f32.mrb[0].mxu0
        %2042 = vmatprep.mubr.f32.mxu0 0.0
        %2043 = vmatmul.mubr.f32.gmra.mrb[0].mxu0 %v1844
        %v2044 = vpop.f32.mrb[0].mxu0
        %v2045 = vadd.f32 0.0, %v2044
        %v2046 = vpop.f32.mrb[0].mxu0
        %2047 = vmatprep.mubr.f32.mxu0 0.0
        %2048 = vmatmul.mubr.f32.gmra.mrb[0].mxu0 %v1847
        %v2049 = vpop.f32.mrb[0].mxu0
        %v2050 = vadd.f32 0.0, %v2049
        %v2051 = vpop.f32.mrb[0].mxu0
        %2052 = vmatprep.mubr.f32.mxu0 0.0
        %2053 = vmatmul.mubr.f32.gmra.mrb[0].mxu0 %v1850
        %v2054 = vpop.f32.mrb[0].mxu0
        %v2055 = vadd.f32 0.0, %v2054
        %v2056 = vpop.f32.mrb[0].mxu0
        %2057 = vmatprep.mubr.f32.mxu0 0.0
        %2058 = vmatmul.mubr.f32.gmra.mrb[0].mxu0 %v1853
        %v2059 = vpop.f32.mrb[0].mxu0
        %v2060 = vadd.f32 0.0, %v2059
        %v2061 = vpop.f32.mrb[0].mxu0
        %2062 = vmatprep.mubr.f32.mxu0 0.0
        %2063 = vmatmul.mubr.f32.gmra.mrb[0].mxu0 %v1856
        %v2064 = vpop.f32.mrb[0].mxu0
        %v2065 = vadd.f32 0.0, %v2064
        %v2066 = vpop.f32.mrb[0].mxu0
        %2067 = vmatprep.mubr.f32.mxu0 0.0
        %2068 = vmatmul.mubr.f32.gmra.mrb[0].mxu0 %v1859
        %v2069 = vpop.f32.mrb[0].mxu0
        %v2070 = vadd.f32 0.0, %v2069
        %v2071 = vpop.f32.mrb[0].mxu0
        %2072 = vmatprep.mubr.f32.mxu0 0.0
        %2073 = vmatmul.mubr.f32.gmra.mrb[0].mxu0 %v1862
        %v2074 = vpop.f32.mrb[0].mxu0
        %v2075 = vadd.f32 0.0, %v2074
        %v2076 = vpop.f32.mrb[0].mxu0
        %2077 = vmatprep.mubr.f32.mxu0 0.0
        %2078 = vmatmul.mubr.f32.gmra.mrb[0].mxu0 %v1865
        %v2079 = vpop.f32.mrb[0].mxu0
        %v2080 = vadd.f32 0.0, %v2079
        %v2081 = vpop.f32.mrb[0].mxu0
        %2082 = vmatprep.mubr.f32.mxu0 0.0
        %2083 = vmatmul.mubr.f32.gmra.mrb[0].mxu0 %v1868
        %v2084 = vpop.f32.mrb[0].mxu0
        %v2085 = vadd.f32 0.0, %v2084
        %v2086 = vpop.f32.mrb[0].mxu0
        %2087 = vmatprep.mubr.f32.mxu0 0.0
        %2088 = vmatmul.mubr.f32.gmra.mrb[0].mxu0 %v1871
        %v2089 = vpop.f32.mrb[0].mxu0
        %v2090 = vadd.f32 0.0, %v2089
        %v2091 = vpop.f32.mrb[0].mxu0
        %2092 = vmatprep.mubr.f32.mxu0 0.0
        %2093 = vmatmul.mubr.f32.gmra.mrb[0].mxu0 %v1874
        %v2094 = vpop.f32.mrb[0].mxu0
        %v2095 = vadd.f32 0.0, %v2094
        %v2096 = vpop.f32.mrb[0].mxu0
        %2097 = vmatprep.mubr.f32.mxu0 0.0
        %2098 = vmatmul.mubr.f32.gmra.mrb[0].mxu0 %v1877
        %v2099 = vpop.f32.mrb[0].mxu0
        %v2100 = vadd.f32 0.0, %v2099
        %v2101 = vpop.f32.mrb[0].mxu0
        %2102 = vmatprep.mubr.f32.mxu0 0.0
        %2103 = vmatmul.mubr.f32.gmra.mrb[0].mxu0 %v1880
        %v2104 = vpop.f32.mrb[0].mxu0
        %v2105 = vadd.f32 0.0, %v2104
        %v2106 = vpop.f32.mrb[0].mxu0
        %2107 = vmatprep.mubr.f32.mxu0 0.0
        %2108 = vmatmul.mubr.f32.gmra.mrb[0].mxu0 %v1883
        %v2109 = vpop.f32.mrb[0].mxu0
        %v2110 = vadd.f32 0.0, %v2109
        %v2111 = vpop.f32.mrb[0].mxu0
        %2112 = vdwg.mxu0
        %v2113 = vadd.f32 %v1723, %v1955
        %v2114 = vadd.f32 %v1724, %v1960
        %v2115 = vadd.f32 %v1725, %v1965
        %v2116 = vadd.f32 %v1726, %v1970
        %v2117 = vadd.f32 %v1727, %v1975
        %v2118 = vadd.f32 %v1728, %v1980
        %v2119 = vadd.f32 %v1729, %v1985
        %v2120 = vadd.f32 %v1730, %v1990
        %v2121 = vadd.f32 %v1731, %v1995
        %v2122 = vadd.f32 %v1732, %v2000
        %v2123 = vadd.f32 %v1733, %v2005
        %v2124 = vadd.f32 %v1734, %v2010
        %v2125 = vadd.f32 %v1735, %v2015
        %v2126 = vadd.f32 %v1736, %v2020
        %v2127 = vadd.f32 %v1737, %v2025
        %v2128 = vadd.f32 %v1738, %v2030
        %v2129 = vadd.f32 %v1739, %v2035
        %v2130 = vadd.f32 %v1740, %v2040
        %v2131 = vadd.f32 %v1741, %v2045
        %v2132 = vadd.f32 %v1742, %v2050
        %v2133 = vadd.f32 %v1743, %v2055
        %v2134 = vadd.f32 %v1744, %v2060
        %v2135 = vadd.f32 %v1745, %v2065
        %v2136 = vadd.f32 %v1746, %v2070
        %v2137 = vadd.f32 %v1747, %v2075
        %v2138 = vadd.f32 %v1748, %v2080
        %v2139 = vadd.f32 %v1749, %v2085
        %v2140 = vadd.f32 %v1750, %v2090
        %v2141 = vadd.f32 %v1751, %v2095
        %v2142 = vadd.f32 %v1752, %v2100
        %v2143 = vadd.f32 %v1753, %v2105
        %v2144 = vadd.f32 %v1754, %v2110
        %v2145 = vld [vmem:[%s1364 + $0x2] sm:$0xff]
        %v2146 = vld [vmem:[%s1364 + $0xa] sm:$0xff]
        %v2147 = vld [vmem:[%s1364 + $0x1a] sm:$0xff]
        %v2148 = vld [vmem:[%s1364 + $0x22] sm:$0xff]
        %v2149 = vld [vmem:[%s1364 + $0x32] sm:$0xff]
        %v2150 = vld [vmem:[%s1364 + $0x3a] sm:$0xff]
        %v2151 = vld [vmem:[%s1364 + $0x4a] sm:$0xff]
        %v2152 = vld [vmem:[%s1364 + $0x52] sm:$0xff]
        %v2153 = vld [vmem:[%s1364 + $0x62] sm:$0xff]
        %v2154 = vld [vmem:[%s1364 + $0x6a] sm:$0xff]
        %v2155 = vld [vmem:[%s1364 + $0x7a] sm:$0xff]
        %v2156 = vld [vmem:[%s1364 + $0x82] sm:$0xff]
        %v2157 = vld [vmem:[%s1364 + $0x92] sm:$0xff]
        %v2158 = vld [vmem:[%s1364 + $0x9a] sm:$0xff]
        %v2159 = vld [vmem:[%s1364 + $0xaa] sm:$0xff]
        %v2160 = vld [vmem:[%s1364 + $0xb2] sm:$0xff]
        %v2161 = vld [vmem:[%s1364 + $0xc2] sm:$0xff]
        %v2162 = vld [vmem:[%s1364 + $0xca] sm:$0xff]
        %v2163 = vld [vmem:[%s1364 + $0xda] sm:$0xff]
        %v2164 = vld [vmem:[%s1364 + $0xe2] sm:$0xff]
        %v2165 = vld [vmem:[%s1364 + $0xf2] sm:$0xff]
        %v2166 = vld [vmem:[%s1364 + $0xfa] sm:$0xff]
        %v2167 = vld [vmem:[%s1364 + $0x10a] sm:$0xff]
        %v2168 = vld [vmem:[%s1364 + $0x112] sm:$0xff]
        %v2169 = vld [vmem:[%s1364 + $0x122] sm:$0xff]
        %v2170 = vld [vmem:[%s1364 + $0x12a] sm:$0xff]
        %v2171 = vld [vmem:[%s1364 + $0x13a] sm:$0xff]
        %v2172 = vld [vmem:[%s1364 + $0x142] sm:$0xff]
        %v2173 = vld [vmem:[%s1364 + $0x152] sm:$0xff]
        %v2174 = vld [vmem:[%s1364 + $0x15a] sm:$0xff]
        %v2175 = vld [vmem:[%s1364 + $0x16a] sm:$0xff]
        %v2176 = vld [vmem:[%s1364 + $0x172] sm:$0xff]
        %s2177 = scalar_lea.vmem %s1, 20
        %v2178 = vld [vmem:[%s2177] sm:$0xf]
        %v2180 = vsel %vm322, %v2145, 0
        %v2183 = vsel %vm322, %v2146, 0
        %v2186 = vsel %vm322, %v2147, 0
        %v2189 = vsel %vm322, %v2148, 0
        %v2192 = vsel %vm322, %v2149, 0
        %v2195 = vsel %vm322, %v2150, 0
        %v2198 = vsel %vm322, %v2151, 0
        %v2201 = vsel %vm322, %v2152, 0
        %v2204 = vsel %vm322, %v2153, 0
        %v2207 = vsel %vm322, %v2154, 0
        %v2210 = vsel %vm322, %v2155, 0
        %v2213 = vsel %vm322, %v2156, 0
        %v2216 = vsel %vm322, %v2157, 0
        %v2219 = vsel %vm322, %v2158, 0
        %v2222 = vsel %vm322, %v2159, 0
        %v2225 = vsel %vm322, %v2160, 0
        %v2228 = vsel %vm322, %v2161, 0
        %v2231 = vsel %vm322, %v2162, 0
        %v2234 = vsel %vm322, %v2163, 0
        %v2237 = vsel %vm322, %v2164, 0
        %v2240 = vsel %vm322, %v2165, 0
        %v2243 = vsel %vm322, %v2166, 0
        %v2246 = vsel %vm322, %v2167, 0
        %v2249 = vsel %vm322, %v2168, 0
        %v2252 = vsel %vm322, %v2169, 0
        %v2255 = vsel %vm322, %v2170, 0
        %v2258 = vsel %vm322, %v2171, 0
        %v2261 = vsel %vm322, %v2172, 0
        %v2264 = vsel %vm322, %v2173, 0
        %v2267 = vsel %vm322, %v2174, 0
        %v2270 = vsel %vm322, %v2175, 0
        %v2273 = vsel %vm322, %v2176, 0
        %v2276 = vsel %vm419, %v2178, 0
        %2278 = vmatprep.subr.mxu0 0.0
        %2279 = vmatpush1.msra.mxu0 %v2276
        %2280 = vmatprep.subr.mxu0 0.0
        %2281 = vmatpush1.msra.mxu0 0.0
        %2282 = vmatprep.subr.mxu0 0.0
        %2283 = vmatpush1.msra.mxu0 0.0
        %2284 = vmatprep.subr.mxu0 0.0
        %2285 = vmatpush1.msra.mxu0 0.0
        %2286 = vmatprep.subr.mxu0 0.0
        %2287 = vmatpush1.msra.mxu0 0.0
        %2288 = vmatprep.subr.mxu0 0.0
        %2289 = vmatpush1.msra.mxu0 0.0
        %2290 = vmatprep.subr.mxu0 0.0
        %2291 = vmatpush1.msra.mxu0 0.0
        %2292 = vmatprep.subr.mxu0 0.0
        %2293 = vmatpush1.msra.mxu0 0.0
        %2294 = vmatprep.subr.mxu0 0.0
        %2295 = vmatpush1.msra.mxu0 0.0
        %2296 = vmatprep.subr.mxu0 0.0
        %2297 = vmatpush1.msra.mxu0 0.0
        %2298 = vmatprep.subr.mxu0 0.0
        %2299 = vmatpush1.msra.mxu0 0.0
        %2300 = vmatprep.subr.mxu0 0.0
        %2301 = vmatpush1.msra.mxu0 0.0
        %2302 = vmatprep.subr.mxu0 0.0
        %2303 = vmatpush1.msra.mxu0 0.0
        %2304 = vmatprep.subr.mxu0 0.0
        %2305 = vmatpush1.msra.mxu0 0.0
        %2306 = vmatprep.subr.mxu0 0.0
        %2307 = vmatpush1.msra.mxu0 0.0
        %2308 = vmatprep.subr.mxu0 0.0
        %2309 = vmatpush1.msra.mxu0 0.0
        %2310 = vmatprep.subr.mxu0 0.0
        %2311 = vmatpush1.msra.mxu0 0.0
        %2312 = vmatprep.subr.mxu0 0.0
        %2313 = vmatpush1.msra.mxu0 0.0
        %2314 = vmatprep.subr.mxu0 0.0
        %2315 = vmatpush1.msra.mxu0 0.0
        %2316 = vmatprep.subr.mxu0 0.0
        %2317 = vmatpush1.msra.mxu0 0.0
        %2318 = vmatprep.subr.mxu0 0.0
        %2319 = vmatpush1.msra.mxu0 0.0
        %2320 = vmatprep.subr.mxu0 0.0
        %2321 = vmatpush1.msra.mxu0 0.0
        %2322 = vmatprep.subr.mxu0 0.0
        %2323 = vmatpush1.msra.mxu0 0.0
        %2324 = vmatprep.subr.mxu0 0.0
        %2325 = vmatpush1.msra.mxu0 0.0
        %2326 = vmatprep.subr.mxu0 0.0
        %2327 = vmatpush1.msra.mxu0 0.0
        %2328 = vmatprep.subr.mxu0 0.0
        %2329 = vmatpush1.msra.mxu0 0.0
        %2330 = vmatprep.subr.mxu0 0.0
        %2331 = vmatpush1.msra.mxu0 0.0
        %2332 = vmatprep.subr.mxu0 0.0
        %2333 = vmatpush1.msra.mxu0 0.0
        %2334 = vmatprep.subr.mxu0 0.0
        %2335 = vmatpush1.msra.mxu0 0.0
        %2336 = vmatprep.subr.mxu0 0.0
        %2337 = vmatpush1.msra.mxu0 0.0
        %2338 = vmatprep.subr.mxu0 0.0
        %2339 = vmatpush1.msra.mxu0 0.0
        %2340 = vmatprep.subr.mxu0 0.0
        %2341 = vmatpush1.msra.mxu0 0.0
        %2342 = vmatprep.mubr.f32.mxu0 0.0
        %2343 = vmatmul.mubr.f32.gmra.mrb[0].mxu0 %v2180
        %v2344 = vpop.f32.mrb[0].mxu0
        %v2345 = vadd.f32 0.0, %v2344
        %v2346 = vpop.f32.mrb[0].mxu0
        %2347 = vmatprep.mubr.f32.mxu0 0.0
        %2348 = vmatmul.mubr.f32.gmra.mrb[0].mxu0 %v2183
        %v2349 = vpop.f32.mrb[0].mxu0
        %v2350 = vadd.f32 0.0, %v2349
        %v2351 = vpop.f32.mrb[0].mxu0
        %2352 = vmatprep.mubr.f32.mxu0 0.0
        %2353 = vmatmul.mubr.f32.gmra.mrb[0].mxu0 %v2186
        %v2354 = vpop.f32.mrb[0].mxu0
        %v2355 = vadd.f32 0.0, %v2354
        %v2356 = vpop.f32.mrb[0].mxu0
        %2357 = vmatprep.mubr.f32.mxu0 0.0
        %2358 = vmatmul.mubr.f32.gmra.mrb[0].mxu0 %v2189
        %v2359 = vpop.f32.mrb[0].mxu0
        %v2360 = vadd.f32 0.0, %v2359
        %v2361 = vpop.f32.mrb[0].mxu0
        %2362 = vmatprep.mubr.f32.mxu0 0.0
        %2363 = vmatmul.mubr.f32.gmra.mrb[0].mxu0 %v2192
        %v2364 = vpop.f32.mrb[0].mxu0
        %v2365 = vadd.f32 0.0, %v2364
        %v2366 = vpop.f32.mrb[0].mxu0
        %2367 = vmatprep.mubr.f32.mxu0 0.0
        %2368 = vmatmul.mubr.f32.gmra.mrb[0].mxu0 %v2195
        %v2369 = vpop.f32.mrb[0].mxu0
        %v2370 = vadd.f32 0.0, %v2369
        %v2371 = vpop.f32.mrb[0].mxu0
        %2372 = vmatprep.mubr.f32.mxu0 0.0
        %2373 = vmatmul.mubr.f32.gmra.mrb[0].mxu0 %v2198
        %v2374 = vpop.f32.mrb[0].mxu0
        %v2375 = vadd.f32 0.0, %v2374
        %v2376 = vpop.f32.mrb[0].mxu0
        %2377 = vmatprep.mubr.f32.mxu0 0.0
        %2378 = vmatmul.mubr.f32.gmra.mrb[0].mxu0 %v2201
        %v2379 = vpop.f32.mrb[0].mxu0
        %v2380 = vadd.f32 0.0, %v2379
        %v2381 = vpop.f32.mrb[0].mxu0
        %2382 = vmatprep.mubr.f32.mxu0 0.0
        %2383 = vmatmul.mubr.f32.gmra.mrb[0].mxu0 %v2204
        %v2384 = vpop.f32.mrb[0].mxu0
        %v2385 = vadd.f32 0.0, %v2384
        %v2386 = vpop.f32.mrb[0].mxu0
        %2387 = vmatprep.mubr.f32.mxu0 0.0
        %2388 = vmatmul.mubr.f32.gmra.mrb[0].mxu0 %v2207
        %v2389 = vpop.f32.mrb[0].mxu0
        %v2390 = vadd.f32 0.0, %v2389
        %v2391 = vpop.f32.mrb[0].mxu0
        %2392 = vmatprep.mubr.f32.mxu0 0.0
        %2393 = vmatmul.mubr.f32.gmra.mrb[0].mxu0 %v2210
        %v2394 = vpop.f32.mrb[0].mxu0
        %v2395 = vadd.f32 0.0, %v2394
        %v2396 = vpop.f32.mrb[0].mxu0
        %2397 = vmatprep.mubr.f32.mxu0 0.0
        %2398 = vmatmul.mubr.f32.gmra.mrb[0].mxu0 %v2213
        %v2399 = vpop.f32.mrb[0].mxu0
        %v2400 = vadd.f32 0.0, %v2399
        %v2401 = vpop.f32.mrb[0].mxu0
        %2402 = vmatprep.mubr.f32.mxu0 0.0
        %2403 = vmatmul.mubr.f32.gmra.mrb[0].mxu0 %v2216
        %v2404 = vpop.f32.mrb[0].mxu0
        %v2405 = vadd.f32 0.0, %v2404
        %v2406 = vpop.f32.mrb[0].mxu0
        %2407 = vmatprep.mubr.f32.mxu0 0.0
        %2408 = vmatmul.mubr.f32.gmra.mrb[0].mxu0 %v2219
        %v2409 = vpop.f32.mrb[0].mxu0
        %v2410 = vadd.f32 0.0, %v2409
        %v2411 = vpop.f32.mrb[0].mxu0
        %2412 = vmatprep.mubr.f32.mxu0 0.0
        %2413 = vmatmul.mubr.f32.gmra.mrb[0].mxu0 %v2222
        %v2414 = vpop.f32.mrb[0].mxu0
        %v2415 = vadd.f32 0.0, %v2414
        %v2416 = vpop.f32.mrb[0].mxu0
        %2417 = vmatprep.mubr.f32.mxu0 0.0
        %2418 = vmatmul.mubr.f32.gmra.mrb[0].mxu0 %v2225
        %v2419 = vpop.f32.mrb[0].mxu0
        %v2420 = vadd.f32 0.0, %v2419
        %v2421 = vpop.f32.mrb[0].mxu0
        %2422 = vmatprep.mubr.f32.mxu0 0.0
        %2423 = vmatmul.mubr.f32.gmra.mrb[0].mxu0 %v2228
        %v2424 = vpop.f32.mrb[0].mxu0
        %v2425 = vadd.f32 0.0, %v2424
        %v2426 = vpop.f32.mrb[0].mxu0
        %2427 = vmatprep.mubr.f32.mxu0 0.0
        %2428 = vmatmul.mubr.f32.gmra.mrb[0].mxu0 %v2231
        %v2429 = vpop.f32.mrb[0].mxu0
        %v2430 = vadd.f32 0.0, %v2429
        %v2431 = vpop.f32.mrb[0].mxu0
        %2432 = vmatprep.mubr.f32.mxu0 0.0
        %2433 = vmatmul.mubr.f32.gmra.mrb[0].mxu0 %v2234
        %v2434 = vpop.f32.mrb[0].mxu0
        %v2435 = vadd.f32 0.0, %v2434
        %v2436 = vpop.f32.mrb[0].mxu0
        %2437 = vmatprep.mubr.f32.mxu0 0.0
        %2438 = vmatmul.mubr.f32.gmra.mrb[0].mxu0 %v2237
        %v2439 = vpop.f32.mrb[0].mxu0
        %v2440 = vadd.f32 0.0, %v2439
        %v2441 = vpop.f32.mrb[0].mxu0
        %2442 = vmatprep.mubr.f32.mxu0 0.0
        %2443 = vmatmul.mubr.f32.gmra.mrb[0].mxu0 %v2240
        %v2444 = vpop.f32.mrb[0].mxu0
        %v2445 = vadd.f32 0.0, %v2444
        %v2446 = vpop.f32.mrb[0].mxu0
        %2447 = vmatprep.mubr.f32.mxu0 0.0
        %2448 = vmatmul.mubr.f32.gmra.mrb[0].mxu0 %v2243
        %v2449 = vpop.f32.mrb[0].mxu0
        %v2450 = vadd.f32 0.0, %v2449
        %v2451 = vpop.f32.mrb[0].mxu0
        %2452 = vmatprep.mubr.f32.mxu0 0.0
        %2453 = vmatmul.mubr.f32.gmra.mrb[0].mxu0 %v2246
        %v2454 = vpop.f32.mrb[0].mxu0
        %v2455 = vadd.f32 0.0, %v2454
        %v2456 = vpop.f32.mrb[0].mxu0
        %2457 = vmatprep.mubr.f32.mxu0 0.0
        %2458 = vmatmul.mubr.f32.gmra.mrb[0].mxu0 %v2249
        %v2459 = vpop.f32.mrb[0].mxu0
        %v2460 = vadd.f32 0.0, %v2459
        %v2461 = vpop.f32.mrb[0].mxu0
        %2462 = vmatprep.mubr.f32.mxu0 0.0
        %2463 = vmatmul.mubr.f32.gmra.mrb[0].mxu0 %v2252
        %v2464 = vpop.f32.mrb[0].mxu0
        %v2465 = vadd.f32 0.0, %v2464
        %v2466 = vpop.f32.mrb[0].mxu0
        %2467 = vmatprep.mubr.f32.mxu0 0.0
        %2468 = vmatmul.mubr.f32.gmra.mrb[0].mxu0 %v2255
        %v2469 = vpop.f32.mrb[0].mxu0
        %v2470 = vadd.f32 0.0, %v2469
        %v2471 = vpop.f32.mrb[0].mxu0
        %2472 = vmatprep.mubr.f32.mxu0 0.0
        %2473 = vmatmul.mubr.f32.gmra.mrb[0].mxu0 %v2258
        %v2474 = vpop.f32.mrb[0].mxu0
        %v2475 = vadd.f32 0.0, %v2474
        %v2476 = vpop.f32.mrb[0].mxu0
        %2477 = vmatprep.mubr.f32.mxu0 0.0
        %2478 = vmatmul.mubr.f32.gmra.mrb[0].mxu0 %v2261
        %v2479 = vpop.f32.mrb[0].mxu0
        %v2480 = vadd.f32 0.0, %v2479
        %v2481 = vpop.f32.mrb[0].mxu0
        %2482 = vmatprep.mubr.f32.mxu0 0.0
        %2483 = vmatmul.mubr.f32.gmra.mrb[0].mxu0 %v2264
        %v2484 = vpop.f32.mrb[0].mxu0
        %v2485 = vadd.f32 0.0, %v2484
        %v2486 = vpop.f32.mrb[0].mxu0
        %2487 = vmatprep.mubr.f32.mxu0 0.0
        %2488 = vmatmul.mubr.f32.gmra.mrb[0].mxu0 %v2267
        %v2489 = vpop.f32.mrb[0].mxu0
        %v2490 = vadd.f32 0.0, %v2489
        %v2491 = vpop.f32.mrb[0].mxu0
        %2492 = vmatprep.mubr.f32.mxu0 0.0
        %2493 = vmatmul.mubr.f32.gmra.mrb[0].mxu0 %v2270
        %v2494 = vpop.f32.mrb[0].mxu0
        %v2495 = vadd.f32 0.0, %v2494
        %v2496 = vpop.f32.mrb[0].mxu0
        %2497 = vmatprep.mubr.f32.mxu0 0.0
        %2498 = vmatmul.mubr.f32.gmra.mrb[0].mxu0 %v2273
        %v2499 = vpop.f32.mrb[0].mxu0
        %v2500 = vadd.f32 0.0, %v2499
        %v2501 = vpop.f32.mrb[0].mxu0
        %2502 = vdwg.mxu0
        %v2503 = vadd.f32 %v2113, %v2345
        %v2504 = vadd.f32 %v2114, %v2350
        %v2505 = vadd.f32 %v2115, %v2355
        %v2506 = vadd.f32 %v2116, %v2360
        %v2507 = vadd.f32 %v2117, %v2365
        %v2508 = vadd.f32 %v2118, %v2370
        %v2509 = vadd.f32 %v2119, %v2375
        %v2510 = vadd.f32 %v2120, %v2380
        %v2511 = vadd.f32 %v2121, %v2385
        %v2512 = vadd.f32 %v2122, %v2390
        %v2513 = vadd.f32 %v2123, %v2395
        %v2514 = vadd.f32 %v2124, %v2400
        %v2515 = vadd.f32 %v2125, %v2405
        %v2516 = vadd.f32 %v2126, %v2410
        %v2517 = vadd.f32 %v2127, %v2415
        %v2518 = vadd.f32 %v2128, %v2420
        %v2519 = vadd.f32 %v2129, %v2425
        %v2520 = vadd.f32 %v2130, %v2430
        %v2521 = vadd.f32 %v2131, %v2435
        %v2522 = vadd.f32 %v2132, %v2440
        %v2523 = vadd.f32 %v2133, %v2445
        %v2524 = vadd.f32 %v2134, %v2450
        %v2525 = vadd.f32 %v2135, %v2455
        %v2526 = vadd.f32 %v2136, %v2460
        %v2527 = vadd.f32 %v2137, %v2465
        %v2528 = vadd.f32 %v2138, %v2470
        %v2529 = vadd.f32 %v2139, %v2475
        %v2530 = vadd.f32 %v2140, %v2480
        %v2531 = vadd.f32 %v2141, %v2485
        %v2532 = vadd.f32 %v2142, %v2490
        %v2533 = vadd.f32 %v2143, %v2495
        %v2534 = vadd.f32 %v2144, %v2500
        %s2535 = sadd.s32 %s252, 2
        %s2536 = smul.u32 %s2535, 24
        %s2537 = scalar_lea.vmem %s247, %s2536
        %v2538 = vld [vmem:[%s2537] sm:$0xff]
        %v2539 = vld [vmem:[%s2537 + $0x8] sm:$0xff]
        %v2540 = vld [vmem:[%s2537 + $0x18] sm:$0xff]
        %v2541 = vld [vmem:[%s2537 + $0x20] sm:$0xff]
        %v2542 = vld [vmem:[%s2537 + $0x30] sm:$0xff]
        %v2543 = vld [vmem:[%s2537 + $0x38] sm:$0xff]
        %v2544 = vld [vmem:[%s2537 + $0x48] sm:$0xff]
        %v2545 = vld [vmem:[%s2537 + $0x50] sm:$0xff]
        %v2546 = vld [vmem:[%s2537 + $0x60] sm:$0xff]
        %v2547 = vld [vmem:[%s2537 + $0x68] sm:$0xff]
        %v2548 = vld [vmem:[%s2537 + $0x78] sm:$0xff]
        %v2549 = vld [vmem:[%s2537 + $0x80] sm:$0xff]
        %v2550 = vld [vmem:[%s2537 + $0x90] sm:$0xff]
        %v2551 = vld [vmem:[%s2537 + $0x98] sm:$0xff]
        %v2552 = vld [vmem:[%s2537 + $0xa8] sm:$0xff]
        %v2553 = vld [vmem:[%s2537 + $0xb0] sm:$0xff]
        %v2554 = vld [vmem:[%s2537 + $0xc0] sm:$0xff]
        %v2555 = vld [vmem:[%s2537 + $0xc8] sm:$0xff]
        %v2556 = vld [vmem:[%s2537 + $0xd8] sm:$0xff]
        %v2557 = vld [vmem:[%s2537 + $0xe0] sm:$0xff]
        %v2558 = vld [vmem:[%s2537 + $0xf0] sm:$0xff]
        %v2559 = vld [vmem:[%s2537 + $0xf8] sm:$0xff]
        %v2560 = vld [vmem:[%s2537 + $0x108] sm:$0xff]
        %v2561 = vld [vmem:[%s2537 + $0x110] sm:$0xff]
        %v2562 = vld [vmem:[%s2537 + $0x120] sm:$0xff]
        %v2563 = vld [vmem:[%s2537 + $0x128] sm:$0xff]
        %v2564 = vld [vmem:[%s2537 + $0x138] sm:$0xff]
        %v2565 = vld [vmem:[%s2537 + $0x140] sm:$0xff]
        %v2566 = vld [vmem:[%s2537 + $0x150] sm:$0xff]
        %v2567 = vld [vmem:[%s2537 + $0x158] sm:$0xff]
        %v2568 = vld [vmem:[%s2537 + $0x168] sm:$0xff]
        %v2569 = vld [vmem:[%s2537 + $0x170] sm:$0xff]
        %s2570 = scalar_lea.vmem %s1, 24
        %v2571 = vld [vmem:[%s2570] sm:$0xf]
        %v2573 = vsel %vm322, %v2538, 0
        %v2576 = vsel %vm322, %v2539, 0
        %v2579 = vsel %vm322, %v2540, 0
        %v2582 = vsel %vm322, %v2541, 0
        %v2585 = vsel %vm322, %v2542, 0
        %v2588 = vsel %vm322, %v2543, 0
        %v2591 = vsel %vm322, %v2544, 0
        %v2594 = vsel %vm322, %v2545, 0
        %v2597 = vsel %vm322, %v2546, 0
        %v2600 = vsel %vm322, %v2547, 0
        %v2603 = vsel %vm322, %v2548, 0
        %v2606 = vsel %vm322, %v2549, 0
        %v2609 = vsel %vm322, %v2550, 0
        %v2612 = vsel %vm322, %v2551, 0
        %v2615 = vsel %vm322, %v2552, 0
        %v2618 = vsel %vm322, %v2553, 0
        %v2621 = vsel %vm322, %v2554, 0
        %v2624 = vsel %vm322, %v2555, 0
        %v2627 = vsel %vm322, %v2556, 0
        %v2630 = vsel %vm322, %v2557, 0
        %v2633 = vsel %vm322, %v2558, 0
        %v2636 = vsel %vm322, %v2559, 0
        %v2639 = vsel %vm322, %v2560, 0
        %v2642 = vsel %vm322, %v2561, 0
        %v2645 = vsel %vm322, %v2562, 0
        %v2648 = vsel %vm322, %v2563, 0
        %v2651 = vsel %vm322, %v2564, 0
        %v2654 = vsel %vm322, %v2565, 0
        %v2657 = vsel %vm322, %v2566, 0
        %v2660 = vsel %vm322, %v2567, 0
        %v2663 = vsel %vm322, %v2568, 0
        %v2666 = vsel %vm322, %v2569, 0
        %v2669 = vsel %vm419, %v2571, 0
        %2671 = vmatprep.subr.mxu0 0.0
        %2672 = vmatpush1.msra.mxu0 %v2669
        %2673 = vmatprep.subr.mxu0 0.0
        %2674 = vmatpush1.msra.mxu0 0.0
        %2675 = vmatprep.subr.mxu0 0.0
        %2676 = vmatpush1.msra.mxu0 0.0
        %2677 = vmatprep.subr.mxu0 0.0
        %2678 = vmatpush1.msra.mxu0 0.0
        %2679 = vmatprep.subr.mxu0 0.0
        %2680 = vmatpush1.msra.mxu0 0.0
        %2681 = vmatprep.subr.mxu0 0.0
        %2682 = vmatpush1.msra.mxu0 0.0
        %2683 = vmatprep.subr.mxu0 0.0
        %2684 = vmatpush1.msra.mxu0 0.0
        %2685 = vmatprep.subr.mxu0 0.0
        %2686 = vmatpush1.msra.mxu0 0.0
        %2687 = vmatprep.subr.mxu0 0.0
        %2688 = vmatpush1.msra.mxu0 0.0
        %2689 = vmatprep.subr.mxu0 0.0
        %2690 = vmatpush1.msra.mxu0 0.0
        %2691 = vmatprep.subr.mxu0 0.0
        %2692 = vmatpush1.msra.mxu0 0.0
        %2693 = vmatprep.subr.mxu0 0.0
        %2694 = vmatpush1.msra.mxu0 0.0
        %2695 = vmatprep.subr.mxu0 0.0
        %2696 = vmatpush1.msra.mxu0 0.0
        %2697 = vmatprep.subr.mxu0 0.0
        %2698 = vmatpush1.msra.mxu0 0.0
        %2699 = vmatprep.subr.mxu0 0.0
        %2700 = vmatpush1.msra.mxu0 0.0
        %2701 = vmatprep.subr.mxu0 0.0
        %2702 = vmatpush1.msra.mxu0 0.0
        %2703 = vmatprep.subr.mxu0 0.0
        %2704 = vmatpush1.msra.mxu0 0.0
        %2705 = vmatprep.subr.mxu0 0.0
        %2706 = vmatpush1.msra.mxu0 0.0
        %2707 = vmatprep.subr.mxu0 0.0
        %2708 = vmatpush1.msra.mxu0 0.0
        %2709 = vmatprep.subr.mxu0 0.0
        %2710 = vmatpush1.msra.mxu0 0.0
        %2711 = vmatprep.subr.mxu0 0.0
        %2712 = vmatpush1.msra.mxu0 0.0
        %2713 = vmatprep.subr.mxu0 0.0
        %2714 = vmatpush1.msra.mxu0 0.0
        %2715 = vmatprep.subr.mxu0 0.0
        %2716 = vmatpush1.msra.mxu0 0.0
        %2717 = vmatprep.subr.mxu0 0.0
        %2718 = vmatpush1.msra.mxu0 0.0
        %2719 = vmatprep.subr.mxu0 0.0
        %2720 = vmatpush1.msra.mxu0 0.0
        %2721 = vmatprep.subr.mxu0 0.0
        %2722 = vmatpush1.msra.mxu0 0.0
        %2723 = vmatprep.subr.mxu0 0.0
        %2724 = vmatpush1.msra.mxu0 0.0
        %2725 = vmatprep.subr.mxu0 0.0
        %2726 = vmatpush1.msra.mxu0 0.0
        %2727 = vmatprep.subr.mxu0 0.0
        %2728 = vmatpush1.msra.mxu0 0.0
        %2729 = vmatprep.subr.mxu0 0.0
        %2730 = vmatpush1.msra.mxu0 0.0
        %2731 = vmatprep.subr.mxu0 0.0
        %2732 = vmatpush1.msra.mxu0 0.0
        %2733 = vmatprep.subr.mxu0 0.0
        %2734 = vmatpush1.msra.mxu0 0.0
        %2735 = vmatprep.mubr.f32.mxu0 0.0
        %2736 = vmatmul.mubr.f32.gmra.mrb[0].mxu0 %v2573
        %v2737 = vpop.f32.mrb[0].mxu0
        %v2738 = vadd.f32 0.0, %v2737
        %v2739 = vpop.f32.mrb[0].mxu0
        %2740 = vmatprep.mubr.f32.mxu0 0.0
        %2741 = vmatmul.mubr.f32.gmra.mrb[0].mxu0 %v2576
        %v2742 = vpop.f32.mrb[0].mxu0
        %v2743 = vadd.f32 0.0, %v2742
        %v2744 = vpop.f32.mrb[0].mxu0
        %2745 = vmatprep.mubr.f32.mxu0 0.0
        %2746 = vmatmul.mubr.f32.gmra.mrb[0].mxu0 %v2579
        %v2747 = vpop.f32.mrb[0].mxu0
        %v2748 = vadd.f32 0.0, %v2747
        %v2749 = vpop.f32.mrb[0].mxu0
        %2750 = vmatprep.mubr.f32.mxu0 0.0
        %2751 = vmatmul.mubr.f32.gmra.mrb[0].mxu0 %v2582
        %v2752 = vpop.f32.mrb[0].mxu0
        %v2753 = vadd.f32 0.0, %v2752
        %v2754 = vpop.f32.mrb[0].mxu0
        %2755 = vmatprep.mubr.f32.mxu0 0.0
        %2756 = vmatmul.mubr.f32.gmra.mrb[0].mxu0 %v2585
        %v2757 = vpop.f32.mrb[0].mxu0
        %v2758 = vadd.f32 0.0, %v2757
        %v2759 = vpop.f32.mrb[0].mxu0
        %2760 = vmatprep.mubr.f32.mxu0 0.0
        %2761 = vmatmul.mubr.f32.gmra.mrb[0].mxu0 %v2588
        %v2762 = vpop.f32.mrb[0].mxu0
        %v2763 = vadd.f32 0.0, %v2762
        %v2764 = vpop.f32.mrb[0].mxu0
        %2765 = vmatprep.mubr.f32.mxu0 0.0
        %2766 = vmatmul.mubr.f32.gmra.mrb[0].mxu0 %v2591
        %v2767 = vpop.f32.mrb[0].mxu0
        %v2768 = vadd.f32 0.0, %v2767
        %v2769 = vpop.f32.mrb[0].mxu0
        %2770 = vmatprep.mubr.f32.mxu0 0.0
        %2771 = vmatmul.mubr.f32.gmra.mrb[0].mxu0 %v2594
        %v2772 = vpop.f32.mrb[0].mxu0
        %v2773 = vadd.f32 0.0, %v2772
        %v2774 = vpop.f32.mrb[0].mxu0
        %2775 = vmatprep.mubr.f32.mxu0 0.0
        %2776 = vmatmul.mubr.f32.gmra.mrb[0].mxu0 %v2597
        %v2777 = vpop.f32.mrb[0].mxu0
        %v2778 = vadd.f32 0.0, %v2777
        %v2779 = vpop.f32.mrb[0].mxu0
        %2780 = vmatprep.mubr.f32.mxu0 0.0
        %2781 = vmatmul.mubr.f32.gmra.mrb[0].mxu0 %v2600
        %v2782 = vpop.f32.mrb[0].mxu0
        %v2783 = vadd.f32 0.0, %v2782
        %v2784 = vpop.f32.mrb[0].mxu0
        %2785 = vmatprep.mubr.f32.mxu0 0.0
        %2786 = vmatmul.mubr.f32.gmra.mrb[0].mxu0 %v2603
        %v2787 = vpop.f32.mrb[0].mxu0
        %v2788 = vadd.f32 0.0, %v2787
        %v2789 = vpop.f32.mrb[0].mxu0
        %2790 = vmatprep.mubr.f32.mxu0 0.0
        %2791 = vmatmul.mubr.f32.gmra.mrb[0].mxu0 %v2606
        %v2792 = vpop.f32.mrb[0].mxu0
        %v2793 = vadd.f32 0.0, %v2792
        %v2794 = vpop.f32.mrb[0].mxu0
        %2795 = vmatprep.mubr.f32.mxu0 0.0
        %2796 = vmatmul.mubr.f32.gmra.mrb[0].mxu0 %v2609
        %v2797 = vpop.f32.mrb[0].mxu0
        %v2798 = vadd.f32 0.0, %v2797
        %v2799 = vpop.f32.mrb[0].mxu0
        %2800 = vmatprep.mubr.f32.mxu0 0.0
        %2801 = vmatmul.mubr.f32.gmra.mrb[0].mxu0 %v2612
        %v2802 = vpop.f32.mrb[0].mxu0
        %v2803 = vadd.f32 0.0, %v2802
        %v2804 = vpop.f32.mrb[0].mxu0
        %2805 = vmatprep.mubr.f32.mxu0 0.0
        %2806 = vmatmul.mubr.f32.gmra.mrb[0].mxu0 %v2615
        %v2807 = vpop.f32.mrb[0].mxu0
        %v2808 = vadd.f32 0.0, %v2807
        %v2809 = vpop.f32.mrb[0].mxu0
        %2810 = vmatprep.mubr.f32.mxu0 0.0
        %2811 = vmatmul.mubr.f32.gmra.mrb[0].mxu0 %v2618
        %v2812 = vpop.f32.mrb[0].mxu0
        %v2813 = vadd.f32 0.0, %v2812
        %v2814 = vpop.f32.mrb[0].mxu0
        %2815 = vmatprep.mubr.f32.mxu0 0.0
        %2816 = vmatmul.mubr.f32.gmra.mrb[0].mxu0 %v2621
        %v2817 = vpop.f32.mrb[0].mxu0
        %v2818 = vadd.f32 0.0, %v2817
        %v2819 = vpop.f32.mrb[0].mxu0
        %2820 = vmatprep.mubr.f32.mxu0 0.0
        %2821 = vmatmul.mubr.f32.gmra.mrb[0].mxu0 %v2624
        %v2822 = vpop.f32.mrb[0].mxu0
        %v2823 = vadd.f32 0.0, %v2822
        %v2824 = vpop.f32.mrb[0].mxu0
        %2825 = vmatprep.mubr.f32.mxu0 0.0
        %2826 = vmatmul.mubr.f32.gmra.mrb[0].mxu0 %v2627
        %v2827 = vpop.f32.mrb[0].mxu0
        %v2828 = vadd.f32 0.0, %v2827
        %v2829 = vpop.f32.mrb[0].mxu0
        %2830 = vmatprep.mubr.f32.mxu0 0.0
        %2831 = vmatmul.mubr.f32.gmra.mrb[0].mxu0 %v2630
        %v2832 = vpop.f32.mrb[0].mxu0
        %v2833 = vadd.f32 0.0, %v2832
        %v2834 = vpop.f32.mrb[0].mxu0
        %2835 = vmatprep.mubr.f32.mxu0 0.0
        %2836 = vmatmul.mubr.f32.gmra.mrb[0].mxu0 %v2633
        %v2837 = vpop.f32.mrb[0].mxu0
        %v2838 = vadd.f32 0.0, %v2837
        %v2839 = vpop.f32.mrb[0].mxu0
        %2840 = vmatprep.mubr.f32.mxu0 0.0
        %2841 = vmatmul.mubr.f32.gmra.mrb[0].mxu0 %v2636
        %v2842 = vpop.f32.mrb[0].mxu0
        %v2843 = vadd.f32 0.0, %v2842
        %v2844 = vpop.f32.mrb[0].mxu0
        %2845 = vmatprep.mubr.f32.mxu0 0.0
        %2846 = vmatmul.mubr.f32.gmra.mrb[0].mxu0 %v2639
        %v2847 = vpop.f32.mrb[0].mxu0
        %v2848 = vadd.f32 0.0, %v2847
        %v2849 = vpop.f32.mrb[0].mxu0
        %2850 = vmatprep.mubr.f32.mxu0 0.0
        %2851 = vmatmul.mubr.f32.gmra.mrb[0].mxu0 %v2642
        %v2852 = vpop.f32.mrb[0].mxu0
        %v2853 = vadd.f32 0.0, %v2852
        %v2854 = vpop.f32.mrb[0].mxu0
        %2855 = vmatprep.mubr.f32.mxu0 0.0
        %2856 = vmatmul.mubr.f32.gmra.mrb[0].mxu0 %v2645
        %v2857 = vpop.f32.mrb[0].mxu0
        %v2858 = vadd.f32 0.0, %v2857
        %v2859 = vpop.f32.mrb[0].mxu0
        %2860 = vmatprep.mubr.f32.mxu0 0.0
        %2861 = vmatmul.mubr.f32.gmra.mrb[0].mxu0 %v2648
        %v2862 = vpop.f32.mrb[0].mxu0
        %v2863 = vadd.f32 0.0, %v2862
        %v2864 = vpop.f32.mrb[0].mxu0
        %2865 = vmatprep.mubr.f32.mxu0 0.0
        %2866 = vmatmul.mubr.f32.gmra.mrb[0].mxu0 %v2651
        %v2867 = vpop.f32.mrb[0].mxu0
        %v2868 = vadd.f32 0.0, %v2867
        %v2869 = vpop.f32.mrb[0].mxu0
        %2870 = vmatprep.mubr.f32.mxu0 0.0
        %2871 = vmatmul.mubr.f32.gmra.mrb[0].mxu0 %v2654
        %v2872 = vpop.f32.mrb[0].mxu0
        %v2873 = vadd.f32 0.0, %v2872
        %v2874 = vpop.f32.mrb[0].mxu0
        %2875 = vmatprep.mubr.f32.mxu0 0.0
        %2876 = vmatmul.mubr.f32.gmra.mrb[0].mxu0 %v2657
        %v2877 = vpop.f32.mrb[0].mxu0
        %v2878 = vadd.f32 0.0, %v2877
        %v2879 = vpop.f32.mrb[0].mxu0
        %2880 = vmatprep.mubr.f32.mxu0 0.0
        %2881 = vmatmul.mubr.f32.gmra.mrb[0].mxu0 %v2660
        %v2882 = vpop.f32.mrb[0].mxu0
        %v2883 = vadd.f32 0.0, %v2882
        %v2884 = vpop.f32.mrb[0].mxu0
        %2885 = vmatprep.mubr.f32.mxu0 0.0
        %2886 = vmatmul.mubr.f32.gmra.mrb[0].mxu0 %v2663
        %v2887 = vpop.f32.mrb[0].mxu0
        %v2888 = vadd.f32 0.0, %v2887
        %v2889 = vpop.f32.mrb[0].mxu0
        %2890 = vmatprep.mubr.f32.mxu0 0.0
        %2891 = vmatmul.mubr.f32.gmra.mrb[0].mxu0 %v2666
        %v2892 = vpop.f32.mrb[0].mxu0
        %v2893 = vadd.f32 0.0, %v2892
        %v2894 = vpop.f32.mrb[0].mxu0
        %2895 = vdwg.mxu0
        %v2896 = vadd.f32 %v2503, %v2738
        %v2897 = vadd.f32 %v2504, %v2743
        %v2898 = vadd.f32 %v2505, %v2748
        %v2899 = vadd.f32 %v2506, %v2753
        %v2900 = vadd.f32 %v2507, %v2758
        %v2901 = vadd.f32 %v2508, %v2763
        %v2902 = vadd.f32 %v2509, %v2768
        %v2903 = vadd.f32 %v2510, %v2773
        %v2904 = vadd.f32 %v2511, %v2778
        %v2905 = vadd.f32 %v2512, %v2783
        %v2906 = vadd.f32 %v2513, %v2788
        %v2907 = vadd.f32 %v2514, %v2793
        %v2908 = vadd.f32 %v2515, %v2798
        %v2909 = vadd.f32 %v2516, %v2803
        %v2910 = vadd.f32 %v2517, %v2808
        %v2911 = vadd.f32 %v2518, %v2813
        %v2912 = vadd.f32 %v2519, %v2818
        %v2913 = vadd.f32 %v2520, %v2823
        %v2914 = vadd.f32 %v2521, %v2828
        %v2915 = vadd.f32 %v2522, %v2833
        %v2916 = vadd.f32 %v2523, %v2838
        %v2917 = vadd.f32 %v2524, %v2843
        %v2918 = vadd.f32 %v2525, %v2848
        %v2919 = vadd.f32 %v2526, %v2853
        %v2920 = vadd.f32 %v2527, %v2858
        %v2921 = vadd.f32 %v2528, %v2863
        %v2922 = vadd.f32 %v2529, %v2868
        %v2923 = vadd.f32 %v2530, %v2873
        %v2924 = vadd.f32 %v2531, %v2878
        %v2925 = vadd.f32 %v2532, %v2883
        %v2926 = vadd.f32 %v2533, %v2888
        %v2927 = vadd.f32 %v2534, %v2893
        %v2928 = vld [vmem:[%s2537 + $0x1] sm:$0xff]
        %v2929 = vld [vmem:[%s2537 + $0x9] sm:$0xff]
        %v2930 = vld [vmem:[%s2537 + $0x19] sm:$0xff]
        %v2931 = vld [vmem:[%s2537 + $0x21] sm:$0xff]
        %v2932 = vld [vmem:[%s2537 + $0x31] sm:$0xff]
        %v2933 = vld [vmem:[%s2537 + $0x39] sm:$0xff]
        %v2934 = vld [vmem:[%s2537 + $0x49] sm:$0xff]
        %v2935 = vld [vmem:[%s2537 + $0x51] sm:$0xff]
        %v2936 = vld [vmem:[%s2537 + $0x61] sm:$0xff]
        %v2937 = vld [vmem:[%s2537 + $0x69] sm:$0xff]
        %v2938 = vld [vmem:[%s2537 + $0x79] sm:$0xff]
        %v2939 = vld [vmem:[%s2537 + $0x81] sm:$0xff]
        %v2940 = vld [vmem:[%s2537 + $0x91] sm:$0xff]
        %v2941 = vld [vmem:[%s2537 + $0x99] sm:$0xff]
        %v2942 = vld [vmem:[%s2537 + $0xa9] sm:$0xff]
        %v2943 = vld [vmem:[%s2537 + $0xb1] sm:$0xff]
        %v2944 = vld [vmem:[%s2537 + $0xc1] sm:$0xff]
        %v2945 = vld [vmem:[%s2537 + $0xc9] sm:$0xff]
        %v2946 = vld [vmem:[%s2537 + $0xd9] sm:$0xff]
        %v2947 = vld [vmem:[%s2537 + $0xe1] sm:$0xff]
        %v2948 = vld [vmem:[%s2537 + $0xf1] sm:$0xff]
        %v2949 = vld [vmem:[%s2537 + $0xf9] sm:$0xff]
        %v2950 = vld [vmem:[%s2537 + $0x109] sm:$0xff]
        %v2951 = vld [vmem:[%s2537 + $0x111] sm:$0xff]
        %v2952 = vld [vmem:[%s2537 + $0x121] sm:$0xff]
        %v2953 = vld [vmem:[%s2537 + $0x129] sm:$0xff]
        %v2954 = vld [vmem:[%s2537 + $0x139] sm:$0xff]
        %v2955 = vld [vmem:[%s2537 + $0x141] sm:$0xff]
        %v2956 = vld [vmem:[%s2537 + $0x151] sm:$0xff]
        %v2957 = vld [vmem:[%s2537 + $0x159] sm:$0xff]
        %v2958 = vld [vmem:[%s2537 + $0x169] sm:$0xff]
        %v2959 = vld [vmem:[%s2537 + $0x171] sm:$0xff]
        %s2960 = scalar_lea.vmem %s1, 28
        %v2961 = vld [vmem:[%s2960] sm:$0xf]
        %v2963 = vsel %vm322, %v2928, 0
        %v2966 = vsel %vm322, %v2929, 0
        %v2969 = vsel %vm322, %v2930, 0
        %v2972 = vsel %vm322, %v2931, 0
        %v2975 = vsel %vm322, %v2932, 0
        %v2978 = vsel %vm322, %v2933, 0
        %v2981 = vsel %vm322, %v2934, 0
        %v2984 = vsel %vm322, %v2935, 0
        %v2987 = vsel %vm322, %v2936, 0
        %v2990 = vsel %vm322, %v2937, 0
        %v2993 = vsel %vm322, %v2938, 0
        %v2996 = vsel %vm322, %v2939, 0
        %v2999 = vsel %vm322, %v2940, 0
        %v3002 = vsel %vm322, %v2941, 0
        %v3005 = vsel %vm322, %v2942, 0
        %v3008 = vsel %vm322, %v2943, 0
        %v3011 = vsel %vm322, %v2944, 0
        %v3014 = vsel %vm322, %v2945, 0
        %v3017 = vsel %vm322, %v2946, 0
        %v3020 = vsel %vm322, %v2947, 0
        %v3023 = vsel %vm322, %v2948, 0
        %v3026 = vsel %vm322, %v2949, 0
        %v3029 = vsel %vm322, %v2950, 0
        %v3032 = vsel %vm322, %v2951, 0
        %v3035 = vsel %vm322, %v2952, 0
        %v3038 = vsel %vm322, %v2953, 0
        %v3041 = vsel %vm322, %v2954, 0
        %v3044 = vsel %vm322, %v2955, 0
        %v3047 = vsel %vm322, %v2956, 0
        %v3050 = vsel %vm322, %v2957, 0
        %v3053 = vsel %vm322, %v2958, 0
        %v3056 = vsel %vm322, %v2959, 0
        %v3059 = vsel %vm419, %v2961, 0
        %3061 = vmatprep.subr.mxu0 0.0
        %3062 = vmatpush1.msra.mxu0 %v3059
        %3063 = vmatprep.subr.mxu0 0.0
        %3064 = vmatpush1.msra.mxu0 0.0
        %3065 = vmatprep.subr.mxu0 0.0
        %3066 = vmatpush1.msra.mxu0 0.0
        %3067 = vmatprep.subr.mxu0 0.0
        %3068 = vmatpush1.msra.mxu0 0.0
        %3069 = vmatprep.subr.mxu0 0.0
        %3070 = vmatpush1.msra.mxu0 0.0
        %3071 = vmatprep.subr.mxu0 0.0
        %3072 = vmatpush1.msra.mxu0 0.0
        %3073 = vmatprep.subr.mxu0 0.0
        %3074 = vmatpush1.msra.mxu0 0.0
        %3075 = vmatprep.subr.mxu0 0.0
        %3076 = vmatpush1.msra.mxu0 0.0
        %3077 = vmatprep.subr.mxu0 0.0
        %3078 = vmatpush1.msra.mxu0 0.0
        %3079 = vmatprep.subr.mxu0 0.0
        %3080 = vmatpush1.msra.mxu0 0.0
        %3081 = vmatprep.subr.mxu0 0.0
        %3082 = vmatpush1.msra.mxu0 0.0
        %3083 = vmatprep.subr.mxu0 0.0
        %3084 = vmatpush1.msra.mxu0 0.0
        %3085 = vmatprep.subr.mxu0 0.0
        %3086 = vmatpush1.msra.mxu0 0.0
        %3087 = vmatprep.subr.mxu0 0.0
        %3088 = vmatpush1.msra.mxu0 0.0
        %3089 = vmatprep.subr.mxu0 0.0
        %3090 = vmatpush1.msra.mxu0 0.0
        %3091 = vmatprep.subr.mxu0 0.0
        %3092 = vmatpush1.msra.mxu0 0.0
        %3093 = vmatprep.subr.mxu0 0.0
        %3094 = vmatpush1.msra.mxu0 0.0
        %3095 = vmatprep.subr.mxu0 0.0
        %3096 = vmatpush1.msra.mxu0 0.0
        %3097 = vmatprep.subr.mxu0 0.0
        %3098 = vmatpush1.msra.mxu0 0.0
        %3099 = vmatprep.subr.mxu0 0.0
        %3100 = vmatpush1.msra.mxu0 0.0
        %3101 = vmatprep.subr.mxu0 0.0
        %3102 = vmatpush1.msra.mxu0 0.0
        %3103 = vmatprep.subr.mxu0 0.0
        %3104 = vmatpush1.msra.mxu0 0.0
        %3105 = vmatprep.subr.mxu0 0.0
        %3106 = vmatpush1.msra.mxu0 0.0
        %3107 = vmatprep.subr.mxu0 0.0
        %3108 = vmatpush1.msra.mxu0 0.0
        %3109 = vmatprep.subr.mxu0 0.0
        %3110 = vmatpush1.msra.mxu0 0.0
        %3111 = vmatprep.subr.mxu0 0.0
        %3112 = vmatpush1.msra.mxu0 0.0
        %3113 = vmatprep.subr.mxu0 0.0
        %3114 = vmatpush1.msra.mxu0 0.0
        %3115 = vmatprep.subr.mxu0 0.0
        %3116 = vmatpush1.msra.mxu0 0.0
        %3117 = vmatprep.subr.mxu0 0.0
        %3118 = vmatpush1.msra.mxu0 0.0
        %3119 = vmatprep.subr.mxu0 0.0
        %3120 = vmatpush1.msra.mxu0 0.0
        %3121 = vmatprep.subr.mxu0 0.0
        %3122 = vmatpush1.msra.mxu0 0.0
        %3123 = vmatprep.subr.mxu0 0.0
        %3124 = vmatpush1.msra.mxu0 0.0
        %3125 = vmatprep.mubr.f32.mxu0 0.0
        %3126 = vmatmul.mubr.f32.gmra.mrb[0].mxu0 %v2963
        %v3127 = vpop.f32.mrb[0].mxu0
        %v3128 = vadd.f32 0.0, %v3127
        %v3129 = vpop.f32.mrb[0].mxu0
        %3130 = vmatprep.mubr.f32.mxu0 0.0
        %3131 = vmatmul.mubr.f32.gmra.mrb[0].mxu0 %v2966
        %v3132 = vpop.f32.mrb[0].mxu0
        %v3133 = vadd.f32 0.0, %v3132
        %v3134 = vpop.f32.mrb[0].mxu0
        %3135 = vmatprep.mubr.f32.mxu0 0.0
        %3136 = vmatmul.mubr.f32.gmra.mrb[0].mxu0 %v2969
        %v3137 = vpop.f32.mrb[0].mxu0
        %v3138 = vadd.f32 0.0, %v3137
        %v3139 = vpop.f32.mrb[0].mxu0
        %3140 = vmatprep.mubr.f32.mxu0 0.0
        %3141 = vmatmul.mubr.f32.gmra.mrb[0].mxu0 %v2972
        %v3142 = vpop.f32.mrb[0].mxu0
        %v3143 = vadd.f32 0.0, %v3142
        %v3144 = vpop.f32.mrb[0].mxu0
        %3145 = vmatprep.mubr.f32.mxu0 0.0
        %3146 = vmatmul.mubr.f32.gmra.mrb[0].mxu0 %v2975
        %v3147 = vpop.f32.mrb[0].mxu0
        %v3148 = vadd.f32 0.0, %v3147
        %v3149 = vpop.f32.mrb[0].mxu0
        %3150 = vmatprep.mubr.f32.mxu0 0.0
        %3151 = vmatmul.mubr.f32.gmra.mrb[0].mxu0 %v2978
        %v3152 = vpop.f32.mrb[0].mxu0
        %v3153 = vadd.f32 0.0, %v3152
        %v3154 = vpop.f32.mrb[0].mxu0
        %3155 = vmatprep.mubr.f32.mxu0 0.0
        %3156 = vmatmul.mubr.f32.gmra.mrb[0].mxu0 %v2981
        %v3157 = vpop.f32.mrb[0].mxu0
        %v3158 = vadd.f32 0.0, %v3157
        %v3159 = vpop.f32.mrb[0].mxu0
        %3160 = vmatprep.mubr.f32.mxu0 0.0
        %3161 = vmatmul.mubr.f32.gmra.mrb[0].mxu0 %v2984
        %v3162 = vpop.f32.mrb[0].mxu0
        %v3163 = vadd.f32 0.0, %v3162
        %v3164 = vpop.f32.mrb[0].mxu0
        %3165 = vmatprep.mubr.f32.mxu0 0.0
        %3166 = vmatmul.mubr.f32.gmra.mrb[0].mxu0 %v2987
        %v3167 = vpop.f32.mrb[0].mxu0
        %v3168 = vadd.f32 0.0, %v3167
        %v3169 = vpop.f32.mrb[0].mxu0
        %3170 = vmatprep.mubr.f32.mxu0 0.0
        %3171 = vmatmul.mubr.f32.gmra.mrb[0].mxu0 %v2990
        %v3172 = vpop.f32.mrb[0].mxu0
        %v3173 = vadd.f32 0.0, %v3172
        %v3174 = vpop.f32.mrb[0].mxu0
        %3175 = vmatprep.mubr.f32.mxu0 0.0
        %3176 = vmatmul.mubr.f32.gmra.mrb[0].mxu0 %v2993
        %v3177 = vpop.f32.mrb[0].mxu0
        %v3178 = vadd.f32 0.0, %v3177
        %v3179 = vpop.f32.mrb[0].mxu0
        %3180 = vmatprep.mubr.f32.mxu0 0.0
        %3181 = vmatmul.mubr.f32.gmra.mrb[0].mxu0 %v2996
        %v3182 = vpop.f32.mrb[0].mxu0
        %v3183 = vadd.f32 0.0, %v3182
        %v3184 = vpop.f32.mrb[0].mxu0
        %3185 = vmatprep.mubr.f32.mxu0 0.0
        %3186 = vmatmul.mubr.f32.gmra.mrb[0].mxu0 %v2999
        %v3187 = vpop.f32.mrb[0].mxu0
        %v3188 = vadd.f32 0.0, %v3187
        %v3189 = vpop.f32.mrb[0].mxu0
        %3190 = vmatprep.mubr.f32.mxu0 0.0
        %3191 = vmatmul.mubr.f32.gmra.mrb[0].mxu0 %v3002
        %v3192 = vpop.f32.mrb[0].mxu0
        %v3193 = vadd.f32 0.0, %v3192
        %v3194 = vpop.f32.mrb[0].mxu0
        %3195 = vmatprep.mubr.f32.mxu0 0.0
        %3196 = vmatmul.mubr.f32.gmra.mrb[0].mxu0 %v3005
        %v3197 = vpop.f32.mrb[0].mxu0
        %v3198 = vadd.f32 0.0, %v3197
        %v3199 = vpop.f32.mrb[0].mxu0
        %3200 = vmatprep.mubr.f32.mxu0 0.0
        %3201 = vmatmul.mubr.f32.gmra.mrb[0].mxu0 %v3008
        %v3202 = vpop.f32.mrb[0].mxu0
        %v3203 = vadd.f32 0.0, %v3202
        %v3204 = vpop.f32.mrb[0].mxu0
        %3205 = vmatprep.mubr.f32.mxu0 0.0
        %3206 = vmatmul.mubr.f32.gmra.mrb[0].mxu0 %v3011
        %v3207 = vpop.f32.mrb[0].mxu0
        %v3208 = vadd.f32 0.0, %v3207
        %v3209 = vpop.f32.mrb[0].mxu0
        %3210 = vmatprep.mubr.f32.mxu0 0.0
        %3211 = vmatmul.mubr.f32.gmra.mrb[0].mxu0 %v3014
        %v3212 = vpop.f32.mrb[0].mxu0
        %v3213 = vadd.f32 0.0, %v3212
        %v3214 = vpop.f32.mrb[0].mxu0
        %3215 = vmatprep.mubr.f32.mxu0 0.0
        %3216 = vmatmul.mubr.f32.gmra.mrb[0].mxu0 %v3017
        %v3217 = vpop.f32.mrb[0].mxu0
        %v3218 = vadd.f32 0.0, %v3217
        %v3219 = vpop.f32.mrb[0].mxu0
        %3220 = vmatprep.mubr.f32.mxu0 0.0
        %3221 = vmatmul.mubr.f32.gmra.mrb[0].mxu0 %v3020
        %v3222 = vpop.f32.mrb[0].mxu0
        %v3223 = vadd.f32 0.0, %v3222
        %v3224 = vpop.f32.mrb[0].mxu0
        %3225 = vmatprep.mubr.f32.mxu0 0.0
        %3226 = vmatmul.mubr.f32.gmra.mrb[0].mxu0 %v3023
        %v3227 = vpop.f32.mrb[0].mxu0
        %v3228 = vadd.f32 0.0, %v3227
        %v3229 = vpop.f32.mrb[0].mxu0
        %3230 = vmatprep.mubr.f32.mxu0 0.0
        %3231 = vmatmul.mubr.f32.gmra.mrb[0].mxu0 %v3026
        %v3232 = vpop.f32.mrb[0].mxu0
        %v3233 = vadd.f32 0.0, %v3232
        %v3234 = vpop.f32.mrb[0].mxu0
        %3235 = vmatprep.mubr.f32.mxu0 0.0
        %3236 = vmatmul.mubr.f32.gmra.mrb[0].mxu0 %v3029
        %v3237 = vpop.f32.mrb[0].mxu0
        %v3238 = vadd.f32 0.0, %v3237
        %v3239 = vpop.f32.mrb[0].mxu0
        %3240 = vmatprep.mubr.f32.mxu0 0.0
        %3241 = vmatmul.mubr.f32.gmra.mrb[0].mxu0 %v3032
        %v3242 = vpop.f32.mrb[0].mxu0
        %v3243 = vadd.f32 0.0, %v3242
        %v3244 = vpop.f32.mrb[0].mxu0
        %3245 = vmatprep.mubr.f32.mxu0 0.0
        %3246 = vmatmul.mubr.f32.gmra.mrb[0].mxu0 %v3035
        %v3247 = vpop.f32.mrb[0].mxu0
        %v3248 = vadd.f32 0.0, %v3247
        %v3249 = vpop.f32.mrb[0].mxu0
        %3250 = vmatprep.mubr.f32.mxu0 0.0
        %3251 = vmatmul.mubr.f32.gmra.mrb[0].mxu0 %v3038
        %v3252 = vpop.f32.mrb[0].mxu0
        %v3253 = vadd.f32 0.0, %v3252
        %v3254 = vpop.f32.mrb[0].mxu0
        %3255 = vmatprep.mubr.f32.mxu0 0.0
        %3256 = vmatmul.mubr.f32.gmra.mrb[0].mxu0 %v3041
        %v3257 = vpop.f32.mrb[0].mxu0
        %v3258 = vadd.f32 0.0, %v3257
        %v3259 = vpop.f32.mrb[0].mxu0
        %3260 = vmatprep.mubr.f32.mxu0 0.0
        %3261 = vmatmul.mubr.f32.gmra.mrb[0].mxu0 %v3044
        %v3262 = vpop.f32.mrb[0].mxu0
        %v3263 = vadd.f32 0.0, %v3262
        %v3264 = vpop.f32.mrb[0].mxu0
        %3265 = vmatprep.mubr.f32.mxu0 0.0
        %3266 = vmatmul.mubr.f32.gmra.mrb[0].mxu0 %v3047
        %v3267 = vpop.f32.mrb[0].mxu0
        %v3268 = vadd.f32 0.0, %v3267
        %v3269 = vpop.f32.mrb[0].mxu0
        %3270 = vmatprep.mubr.f32.mxu0 0.0
        %3271 = vmatmul.mubr.f32.gmra.mrb[0].mxu0 %v3050
        %v3272 = vpop.f32.mrb[0].mxu0
        %v3273 = vadd.f32 0.0, %v3272
        %v3274 = vpop.f32.mrb[0].mxu0
        %3275 = vmatprep.mubr.f32.mxu0 0.0
        %3276 = vmatmul.mubr.f32.gmra.mrb[0].mxu0 %v3053
        %v3277 = vpop.f32.mrb[0].mxu0
        %v3278 = vadd.f32 0.0, %v3277
        %v3279 = vpop.f32.mrb[0].mxu0
        %3280 = vmatprep.mubr.f32.mxu0 0.0
        %3281 = vmatmul.mubr.f32.gmra.mrb[0].mxu0 %v3056
        %v3282 = vpop.f32.mrb[0].mxu0
        %v3283 = vadd.f32 0.0, %v3282
        %v3284 = vpop.f32.mrb[0].mxu0
        %3285 = vdwg.mxu0
        %v3286 = vadd.f32 %v2896, %v3128
        %v3287 = vadd.f32 %v2897, %v3133
        %v3288 = vadd.f32 %v2898, %v3138
        %v3289 = vadd.f32 %v2899, %v3143
        %v3290 = vadd.f32 %v2900, %v3148
        %v3291 = vadd.f32 %v2901, %v3153
        %v3292 = vadd.f32 %v2902, %v3158
        %v3293 = vadd.f32 %v2903, %v3163
        %v3294 = vadd.f32 %v2904, %v3168
        %v3295 = vadd.f32 %v2905, %v3173
        %v3296 = vadd.f32 %v2906, %v3178
        %v3297 = vadd.f32 %v2907, %v3183
        %v3298 = vadd.f32 %v2908, %v3188
        %v3299 = vadd.f32 %v2909, %v3193
        %v3300 = vadd.f32 %v2910, %v3198
        %v3301 = vadd.f32 %v2911, %v3203
        %v3302 = vadd.f32 %v2912, %v3208
        %v3303 = vadd.f32 %v2913, %v3213
        %v3304 = vadd.f32 %v2914, %v3218
        %v3305 = vadd.f32 %v2915, %v3223
        %v3306 = vadd.f32 %v2916, %v3228
        %v3307 = vadd.f32 %v2917, %v3233
        %v3308 = vadd.f32 %v2918, %v3238
        %v3309 = vadd.f32 %v2919, %v3243
        %v3310 = vadd.f32 %v2920, %v3248
        %v3311 = vadd.f32 %v2921, %v3253
        %v3312 = vadd.f32 %v2922, %v3258
        %v3313 = vadd.f32 %v2923, %v3263
        %v3314 = vadd.f32 %v2924, %v3268
        %v3315 = vadd.f32 %v2925, %v3273
        %v3316 = vadd.f32 %v2926, %v3278
        %v3317 = vadd.f32 %v2927, %v3283
        %v3318 = vld [vmem:[%s2537 + $0x2] sm:$0xff]
        %v3319 = vld [vmem:[%s2537 + $0xa] sm:$0xff]
        %v3320 = vld [vmem:[%s2537 + $0x1a] sm:$0xff]
        %v3321 = vld [vmem:[%s2537 + $0x22] sm:$0xff]
        %v3322 = vld [vmem:[%s2537 + $0x32] sm:$0xff]
        %v3323 = vld [vmem:[%s2537 + $0x3a] sm:$0xff]
        %v3324 = vld [vmem:[%s2537 + $0x4a] sm:$0xff]
        %v3325 = vld [vmem:[%s2537 + $0x52] sm:$0xff]
        %v3326 = vld [vmem:[%s2537 + $0x62] sm:$0xff]
        %v3327 = vld [vmem:[%s2537 + $0x6a] sm:$0xff]
        %v3328 = vld [vmem:[%s2537 + $0x7a] sm:$0xff]
        %v3329 = vld [vmem:[%s2537 + $0x82] sm:$0xff]
        %v3330 = vld [vmem:[%s2537 + $0x92] sm:$0xff]
        %v3331 = vld [vmem:[%s2537 + $0x9a] sm:$0xff]
        %v3332 = vld [vmem:[%s2537 + $0xaa] sm:$0xff]
        %v3333 = vld [vmem:[%s2537 + $0xb2] sm:$0xff]
        %v3334 = vld [vmem:[%s2537 + $0xc2] sm:$0xff]
        %v3335 = vld [vmem:[%s2537 + $0xca] sm:$0xff]
        %v3336 = vld [vmem:[%s2537 + $0xda] sm:$0xff]
        %v3337 = vld [vmem:[%s2537 + $0xe2] sm:$0xff]
        %v3338 = vld [vmem:[%s2537 + $0xf2] sm:$0xff]
        %v3339 = vld [vmem:[%s2537 + $0xfa] sm:$0xff]
        %v3340 = vld [vmem:[%s2537 + $0x10a] sm:$0xff]
        %v3341 = vld [vmem:[%s2537 + $0x112] sm:$0xff]
        %v3342 = vld [vmem:[%s2537 + $0x122] sm:$0xff]
        %v3343 = vld [vmem:[%s2537 + $0x12a] sm:$0xff]
        %v3344 = vld [vmem:[%s2537 + $0x13a] sm:$0xff]
        %v3345 = vld [vmem:[%s2537 + $0x142] sm:$0xff]
        %v3346 = vld [vmem:[%s2537 + $0x152] sm:$0xff]
        %v3347 = vld [vmem:[%s2537 + $0x15a] sm:$0xff]
        %v3348 = vld [vmem:[%s2537 + $0x16a] sm:$0xff]
        %v3349 = vld [vmem:[%s2537 + $0x172] sm:$0xff]
        %s3350 = scalar_lea.vmem %s1, 32
        %v3351 = vld [vmem:[%s3350] sm:$0xf]
        %v3353 = vsel %vm322, %v3318, 0
        %v3356 = vsel %vm322, %v3319, 0
        %v3359 = vsel %vm322, %v3320, 0
        %v3362 = vsel %vm322, %v3321, 0
        %v3365 = vsel %vm322, %v3322, 0
        %v3368 = vsel %vm322, %v3323, 0
        %v3371 = vsel %vm322, %v3324, 0
        %v3374 = vsel %vm322, %v3325, 0
        %v3377 = vsel %vm322, %v3326, 0
        %v3380 = vsel %vm322, %v3327, 0
        %v3383 = vsel %vm322, %v3328, 0
        %v3386 = vsel %vm322, %v3329, 0
        %v3389 = vsel %vm322, %v3330, 0
        %v3392 = vsel %vm322, %v3331, 0
        %v3395 = vsel %vm322, %v3332, 0
        %v3398 = vsel %vm322, %v3333, 0
        %v3401 = vsel %vm322, %v3334, 0
        %v3404 = vsel %vm322, %v3335, 0
        %v3407 = vsel %vm322, %v3336, 0
        %v3410 = vsel %vm322, %v3337, 0
        %v3413 = vsel %vm322, %v3338, 0
        %v3416 = vsel %vm322, %v3339, 0
        %v3419 = vsel %vm322, %v3340, 0
        %v3422 = vsel %vm322, %v3341, 0
        %v3425 = vsel %vm322, %v3342, 0
        %v3428 = vsel %vm322, %v3343, 0
        %v3431 = vsel %vm322, %v3344, 0
        %v3434 = vsel %vm322, %v3345, 0
        %v3437 = vsel %vm322, %v3346, 0
        %v3440 = vsel %vm322, %v3347, 0
        %v3443 = vsel %vm322, %v3348, 0
        %v3446 = vsel %vm322, %v3349, 0
        %v3449 = vsel %vm419, %v3351, 0
        %3451 = vmatprep.subr.mxu0 0.0
        %3452 = vmatpush1.msra.mxu0 %v3449
        %3453 = vmatprep.subr.mxu0 0.0
        %3454 = vmatpush1.msra.mxu0 0.0
        %3455 = vmatprep.subr.mxu0 0.0
        %3456 = vmatpush1.msra.mxu0 0.0
        %3457 = vmatprep.subr.mxu0 0.0
        %3458 = vmatpush1.msra.mxu0 0.0
        %3459 = vmatprep.subr.mxu0 0.0
        %3460 = vmatpush1.msra.mxu0 0.0
        %3461 = vmatprep.subr.mxu0 0.0
        %3462 = vmatpush1.msra.mxu0 0.0
        %3463 = vmatprep.subr.mxu0 0.0
        %3464 = vmatpush1.msra.mxu0 0.0
        %3465 = vmatprep.subr.mxu0 0.0
        %3466 = vmatpush1.msra.mxu0 0.0
        %3467 = vmatprep.subr.mxu0 0.0
        %3468 = vmatpush1.msra.mxu0 0.0
        %3469 = vmatprep.subr.mxu0 0.0
        %3470 = vmatpush1.msra.mxu0 0.0
        %3471 = vmatprep.subr.mxu0 0.0
        %3472 = vmatpush1.msra.mxu0 0.0
        %3473 = vmatprep.subr.mxu0 0.0
        %3474 = vmatpush1.msra.mxu0 0.0
        %3475 = vmatprep.subr.mxu0 0.0
        %3476 = vmatpush1.msra.mxu0 0.0
        %3477 = vmatprep.subr.mxu0 0.0
        %3478 = vmatpush1.msra.mxu0 0.0
        %3479 = vmatprep.subr.mxu0 0.0
        %3480 = vmatpush1.msra.mxu0 0.0
        %3481 = vmatprep.subr.mxu0 0.0
        %3482 = vmatpush1.msra.mxu0 0.0
        %3483 = vmatprep.subr.mxu0 0.0
        %3484 = vmatpush1.msra.mxu0 0.0
        %3485 = vmatprep.subr.mxu0 0.0
        %3486 = vmatpush1.msra.mxu0 0.0
        %3487 = vmatprep.subr.mxu0 0.0
        %3488 = vmatpush1.msra.mxu0 0.0
        %3489 = vmatprep.subr.mxu0 0.0
        %3490 = vmatpush1.msra.mxu0 0.0
        %3491 = vmatprep.subr.mxu0 0.0
        %3492 = vmatpush1.msra.mxu0 0.0
        %3493 = vmatprep.subr.mxu0 0.0
        %3494 = vmatpush1.msra.mxu0 0.0
        %3495 = vmatprep.subr.mxu0 0.0
        %3496 = vmatpush1.msra.mxu0 0.0
        %3497 = vmatprep.subr.mxu0 0.0
        %3498 = vmatpush1.msra.mxu0 0.0
        %3499 = vmatprep.subr.mxu0 0.0
        %3500 = vmatpush1.msra.mxu0 0.0
        %3501 = vmatprep.subr.mxu0 0.0
        %3502 = vmatpush1.msra.mxu0 0.0
        %3503 = vmatprep.subr.mxu0 0.0
        %3504 = vmatpush1.msra.mxu0 0.0
        %3505 = vmatprep.subr.mxu0 0.0
        %3506 = vmatpush1.msra.mxu0 0.0
        %3507 = vmatprep.subr.mxu0 0.0
        %3508 = vmatpush1.msra.mxu0 0.0
        %3509 = vmatprep.subr.mxu0 0.0
        %3510 = vmatpush1.msra.mxu0 0.0
        %3511 = vmatprep.subr.mxu0 0.0
        %3512 = vmatpush1.msra.mxu0 0.0
        %3513 = vmatprep.subr.mxu0 0.0
        %3514 = vmatpush1.msra.mxu0 0.0
        %3515 = vmatprep.mubr.f32.mxu0 0.0
        %3516 = vmatmul.mubr.f32.gmra.mrb[0].mxu0 %v3353
        %v3517 = vpop.f32.mrb[0].mxu0
        %v3518 = vadd.f32 0.0, %v3517
        %v3519 = vpop.f32.mrb[0].mxu0
        %3520 = vmatprep.mubr.f32.mxu0 0.0
        %3521 = vmatmul.mubr.f32.gmra.mrb[0].mxu0 %v3356
        %v3522 = vpop.f32.mrb[0].mxu0
        %v3523 = vadd.f32 0.0, %v3522
        %v3524 = vpop.f32.mrb[0].mxu0
        %3525 = vmatprep.mubr.f32.mxu0 0.0
        %3526 = vmatmul.mubr.f32.gmra.mrb[0].mxu0 %v3359
        %v3527 = vpop.f32.mrb[0].mxu0
        %v3528 = vadd.f32 0.0, %v3527
        %v3529 = vpop.f32.mrb[0].mxu0
        %3530 = vmatprep.mubr.f32.mxu0 0.0
        %3531 = vmatmul.mubr.f32.gmra.mrb[0].mxu0 %v3362
        %v3532 = vpop.f32.mrb[0].mxu0
        %v3533 = vadd.f32 0.0, %v3532
        %v3534 = vpop.f32.mrb[0].mxu0
        %3535 = vmatprep.mubr.f32.mxu0 0.0
        %3536 = vmatmul.mubr.f32.gmra.mrb[0].mxu0 %v3365
        %v3537 = vpop.f32.mrb[0].mxu0
        %v3538 = vadd.f32 0.0, %v3537
        %v3539 = vpop.f32.mrb[0].mxu0
        %3540 = vmatprep.mubr.f32.mxu0 0.0
        %3541 = vmatmul.mubr.f32.gmra.mrb[0].mxu0 %v3368
        %v3542 = vpop.f32.mrb[0].mxu0
        %v3543 = vadd.f32 0.0, %v3542
        %v3544 = vpop.f32.mrb[0].mxu0
        %3545 = vmatprep.mubr.f32.mxu0 0.0
        %3546 = vmatmul.mubr.f32.gmra.mrb[0].mxu0 %v3371
        %v3547 = vpop.f32.mrb[0].mxu0
        %v3548 = vadd.f32 0.0, %v3547
        %v3549 = vpop.f32.mrb[0].mxu0
        %3550 = vmatprep.mubr.f32.mxu0 0.0
        %3551 = vmatmul.mubr.f32.gmra.mrb[0].mxu0 %v3374
        %v3552 = vpop.f32.mrb[0].mxu0
        %v3553 = vadd.f32 0.0, %v3552
        %v3554 = vpop.f32.mrb[0].mxu0
        %3555 = vmatprep.mubr.f32.mxu0 0.0
        %3556 = vmatmul.mubr.f32.gmra.mrb[0].mxu0 %v3377
        %v3557 = vpop.f32.mrb[0].mxu0
        %v3558 = vadd.f32 0.0, %v3557
        %v3559 = vpop.f32.mrb[0].mxu0
        %3560 = vmatprep.mubr.f32.mxu0 0.0
        %3561 = vmatmul.mubr.f32.gmra.mrb[0].mxu0 %v3380
        %v3562 = vpop.f32.mrb[0].mxu0
        %v3563 = vadd.f32 0.0, %v3562
        %v3564 = vpop.f32.mrb[0].mxu0
        %3565 = vmatprep.mubr.f32.mxu0 0.0
        %3566 = vmatmul.mubr.f32.gmra.mrb[0].mxu0 %v3383
        %v3567 = vpop.f32.mrb[0].mxu0
        %v3568 = vadd.f32 0.0, %v3567
        %v3569 = vpop.f32.mrb[0].mxu0
        %3570 = vmatprep.mubr.f32.mxu0 0.0
        %3571 = vmatmul.mubr.f32.gmra.mrb[0].mxu0 %v3386
        %v3572 = vpop.f32.mrb[0].mxu0
        %v3573 = vadd.f32 0.0, %v3572
        %v3574 = vpop.f32.mrb[0].mxu0
        %3575 = vmatprep.mubr.f32.mxu0 0.0
        %3576 = vmatmul.mubr.f32.gmra.mrb[0].mxu0 %v3389
        %v3577 = vpop.f32.mrb[0].mxu0
        %v3578 = vadd.f32 0.0, %v3577
        %v3579 = vpop.f32.mrb[0].mxu0
        %3580 = vmatprep.mubr.f32.mxu0 0.0
        %3581 = vmatmul.mubr.f32.gmra.mrb[0].mxu0 %v3392
        %v3582 = vpop.f32.mrb[0].mxu0
        %v3583 = vadd.f32 0.0, %v3582
        %v3584 = vpop.f32.mrb[0].mxu0
        %3585 = vmatprep.mubr.f32.mxu0 0.0
        %3586 = vmatmul.mubr.f32.gmra.mrb[0].mxu0 %v3395
        %v3587 = vpop.f32.mrb[0].mxu0
        %v3588 = vadd.f32 0.0, %v3587
        %v3589 = vpop.f32.mrb[0].mxu0
        %3590 = vmatprep.mubr.f32.mxu0 0.0
        %3591 = vmatmul.mubr.f32.gmra.mrb[0].mxu0 %v3398
        %v3592 = vpop.f32.mrb[0].mxu0
        %v3593 = vadd.f32 0.0, %v3592
        %v3594 = vpop.f32.mrb[0].mxu0
        %3595 = vmatprep.mubr.f32.mxu0 0.0
        %3596 = vmatmul.mubr.f32.gmra.mrb[0].mxu0 %v3401
        %v3597 = vpop.f32.mrb[0].mxu0
        %v3598 = vadd.f32 0.0, %v3597
        %v3599 = vpop.f32.mrb[0].mxu0
        %3600 = vmatprep.mubr.f32.mxu0 0.0
        %3601 = vmatmul.mubr.f32.gmra.mrb[0].mxu0 %v3404
        %v3602 = vpop.f32.mrb[0].mxu0
        %v3603 = vadd.f32 0.0, %v3602
        %v3604 = vpop.f32.mrb[0].mxu0
        %3605 = vmatprep.mubr.f32.mxu0 0.0
        %3606 = vmatmul.mubr.f32.gmra.mrb[0].mxu0 %v3407
        %v3607 = vpop.f32.mrb[0].mxu0
        %v3608 = vadd.f32 0.0, %v3607
        %v3609 = vpop.f32.mrb[0].mxu0
        %3610 = vmatprep.mubr.f32.mxu0 0.0
        %3611 = vmatmul.mubr.f32.gmra.mrb[0].mxu0 %v3410
        %v3612 = vpop.f32.mrb[0].mxu0
        %v3613 = vadd.f32 0.0, %v3612
        %v3614 = vpop.f32.mrb[0].mxu0
        %3615 = vmatprep.mubr.f32.mxu0 0.0
        %3616 = vmatmul.mubr.f32.gmra.mrb[0].mxu0 %v3413
        %v3617 = vpop.f32.mrb[0].mxu0
        %v3618 = vadd.f32 0.0, %v3617
        %v3619 = vpop.f32.mrb[0].mxu0
        %3620 = vmatprep.mubr.f32.mxu0 0.0
        %3621 = vmatmul.mubr.f32.gmra.mrb[0].mxu0 %v3416
        %v3622 = vpop.f32.mrb[0].mxu0
        %v3623 = vadd.f32 0.0, %v3622
        %v3624 = vpop.f32.mrb[0].mxu0
        %3625 = vmatprep.mubr.f32.mxu0 0.0
        %3626 = vmatmul.mubr.f32.gmra.mrb[0].mxu0 %v3419
        %v3627 = vpop.f32.mrb[0].mxu0
        %v3628 = vadd.f32 0.0, %v3627
        %v3629 = vpop.f32.mrb[0].mxu0
        %3630 = vmatprep.mubr.f32.mxu0 0.0
        %3631 = vmatmul.mubr.f32.gmra.mrb[0].mxu0 %v3422
        %v3632 = vpop.f32.mrb[0].mxu0
        %v3633 = vadd.f32 0.0, %v3632
        %v3634 = vpop.f32.mrb[0].mxu0
        %3635 = vmatprep.mubr.f32.mxu0 0.0
        %3636 = vmatmul.mubr.f32.gmra.mrb[0].mxu0 %v3425
        %v3637 = vpop.f32.mrb[0].mxu0
        %v3638 = vadd.f32 0.0, %v3637
        %v3639 = vpop.f32.mrb[0].mxu0
        %3640 = vmatprep.mubr.f32.mxu0 0.0
        %3641 = vmatmul.mubr.f32.gmra.mrb[0].mxu0 %v3428
        %v3642 = vpop.f32.mrb[0].mxu0
        %v3643 = vadd.f32 0.0, %v3642
        %v3644 = vpop.f32.mrb[0].mxu0
        %3645 = vmatprep.mubr.f32.mxu0 0.0
        %3646 = vmatmul.mubr.f32.gmra.mrb[0].mxu0 %v3431
        %v3647 = vpop.f32.mrb[0].mxu0
        %v3648 = vadd.f32 0.0, %v3647
        %v3649 = vpop.f32.mrb[0].mxu0
        %3650 = vmatprep.mubr.f32.mxu0 0.0
        %3651 = vmatmul.mubr.f32.gmra.mrb[0].mxu0 %v3434
        %v3652 = vpop.f32.mrb[0].mxu0
        %v3653 = vadd.f32 0.0, %v3652
        %v3654 = vpop.f32.mrb[0].mxu0
        %3655 = vmatprep.mubr.f32.mxu0 0.0
        %3656 = vmatmul.mubr.f32.gmra.mrb[0].mxu0 %v3437
        %v3657 = vpop.f32.mrb[0].mxu0
        %v3658 = vadd.f32 0.0, %v3657
        %v3659 = vpop.f32.mrb[0].mxu0
        %3660 = vmatprep.mubr.f32.mxu0 0.0
        %3661 = vmatmul.mubr.f32.gmra.mrb[0].mxu0 %v3440
        %v3662 = vpop.f32.mrb[0].mxu0
        %v3663 = vadd.f32 0.0, %v3662
        %v3664 = vpop.f32.mrb[0].mxu0
        %3665 = vmatprep.mubr.f32.mxu0 0.0
        %3666 = vmatmul.mubr.f32.gmra.mrb[0].mxu0 %v3443
        %v3667 = vpop.f32.mrb[0].mxu0
        %v3668 = vadd.f32 0.0, %v3667
        %v3669 = vpop.f32.mrb[0].mxu0
        %3670 = vmatprep.mubr.f32.mxu0 0.0
        %3671 = vmatmul.mubr.f32.gmra.mrb[0].mxu0 %v3446
        %v3672 = vpop.f32.mrb[0].mxu0
        %v3673 = vadd.f32 0.0, %v3672
        %v3674 = vpop.f32.mrb[0].mxu0
        %3675 = vdwg.mxu0
        %v3676 = vadd.f32 %v3286, %v3518
        %v3677 = vadd.f32 %v3287, %v3523
        %v3678 = vadd.f32 %v3288, %v3528
        %v3679 = vadd.f32 %v3289, %v3533
        %v3680 = vadd.f32 %v3290, %v3538
        %v3681 = vadd.f32 %v3291, %v3543
        %v3682 = vadd.f32 %v3292, %v3548
        %v3683 = vadd.f32 %v3293, %v3553
        %v3684 = vadd.f32 %v3294, %v3558
        %v3685 = vadd.f32 %v3295, %v3563
        %v3686 = vadd.f32 %v3296, %v3568
        %v3687 = vadd.f32 %v3297, %v3573
        %v3688 = vadd.f32 %v3298, %v3578
        %v3689 = vadd.f32 %v3299, %v3583
        %v3690 = vadd.f32 %v3300, %v3588
        %v3691 = vadd.f32 %v3301, %v3593
        %v3692 = vadd.f32 %v3302, %v3598
        %v3693 = vadd.f32 %v3303, %v3603
        %v3694 = vadd.f32 %v3304, %v3608
        %v3695 = vadd.f32 %v3305, %v3613
        %v3696 = vadd.f32 %v3306, %v3618
        %v3697 = vadd.f32 %v3307, %v3623
        %v3698 = vadd.f32 %v3308, %v3628
        %v3699 = vadd.f32 %v3309, %v3633
        %v3700 = vadd.f32 %v3310, %v3638
        %v3701 = vadd.f32 %v3311, %v3643
        %v3702 = vadd.f32 %v3312, %v3648
        %v3703 = vadd.f32 %v3313, %v3653
        %v3704 = vadd.f32 %v3314, %v3658
        %v3705 = vadd.f32 %v3315, %v3663
        %v3706 = vadd.f32 %v3316, %v3668
        %v3707 = vadd.f32 %v3317, %v3673
        %v3708 = vld [vmem:[%s2] sm:$0x1]
        %v3709 = vlaneseq
        %v3710 = vshrl.u32 %v3709, 7
        %v3711 = vsub.s32 0, %v3710
        %v3712 = vrot.slane %v3708, %v3711
        %v3713 = vadd.f32 %v3676, %v3712
        %v3714 = vadd.f32 %v3677, %v3712
        %v3715 = vadd.f32 %v3678, %v3712
        %v3716 = vadd.f32 %v3679, %v3712
        %v3717 = vadd.f32 %v3680, %v3712
        %v3718 = vadd.f32 %v3681, %v3712
        %v3719 = vadd.f32 %v3682, %v3712
        %v3720 = vadd.f32 %v3683, %v3712
        %v3721 = vadd.f32 %v3684, %v3712
        %v3722 = vadd.f32 %v3685, %v3712
        %v3723 = vadd.f32 %v3686, %v3712
        %v3724 = vadd.f32 %v3687, %v3712
        %v3725 = vadd.f32 %v3688, %v3712
        %v3726 = vadd.f32 %v3689, %v3712
        %v3727 = vadd.f32 %v3690, %v3712
        %v3728 = vadd.f32 %v3691, %v3712
        %v3729 = vadd.f32 %v3692, %v3712
        %v3730 = vadd.f32 %v3693, %v3712
        %v3731 = vadd.f32 %v3694, %v3712
        %v3732 = vadd.f32 %v3695, %v3712
        %v3733 = vadd.f32 %v3696, %v3712
        %v3734 = vadd.f32 %v3697, %v3712
        %v3735 = vadd.f32 %v3698, %v3712
        %v3736 = vadd.f32 %v3699, %v3712
        %v3737 = vadd.f32 %v3700, %v3712
        %v3738 = vadd.f32 %v3701, %v3712
        %v3739 = vadd.f32 %v3702, %v3712
        %v3740 = vadd.f32 %v3703, %v3712
        %v3741 = vadd.f32 %v3704, %v3712
        %v3742 = vadd.f32 %v3705, %v3712
        %v3743 = vadd.f32 %v3706, %v3712
        %v3744 = vadd.f32 %v3707, %v3712
        %vm3745 = vcmp.ge.f32.partialorder %v3713, 0.0
        %vm3746 = vcmp.ge.f32.partialorder %v3714, 0.0
        %vm3747 = vcmp.ge.f32.partialorder %v3715, 0.0
        %vm3748 = vcmp.ge.f32.partialorder %v3716, 0.0
        %vm3749 = vcmp.ge.f32.partialorder %v3717, 0.0
        %vm3750 = vcmp.ge.f32.partialorder %v3718, 0.0
        %vm3751 = vcmp.ge.f32.partialorder %v3719, 0.0
        %vm3752 = vcmp.ge.f32.partialorder %v3720, 0.0
        %vm3753 = vcmp.ge.f32.partialorder %v3721, 0.0
        %vm3754 = vcmp.ge.f32.partialorder %v3722, 0.0
        %vm3755 = vcmp.ge.f32.partialorder %v3723, 0.0
        %vm3756 = vcmp.ge.f32.partialorder %v3724, 0.0
        %vm3757 = vcmp.ge.f32.partialorder %v3725, 0.0
        %vm3758 = vcmp.ge.f32.partialorder %v3726, 0.0
        %vm3759 = vcmp.ge.f32.partialorder %v3727, 0.0
        %vm3760 = vcmp.ge.f32.partialorder %v3728, 0.0
        %vm3761 = vcmp.ge.f32.partialorder %v3729, 0.0
        %vm3762 = vcmp.ge.f32.partialorder %v3730, 0.0
        %vm3763 = vcmp.ge.f32.partialorder %v3731, 0.0
        %vm3764 = vcmp.ge.f32.partialorder %v3732, 0.0
        %vm3765 = vcmp.ge.f32.partialorder %v3733, 0.0
        %vm3766 = vcmp.ge.f32.partialorder %v3734, 0.0
        %vm3767 = vcmp.ge.f32.partialorder %v3735, 0.0
        %vm3768 = vcmp.ge.f32.partialorder %v3736, 0.0
        %vm3769 = vcmp.ge.f32.partialorder %v3737, 0.0
        %vm3770 = vcmp.ge.f32.partialorder %v3738, 0.0
        %vm3771 = vcmp.ge.f32.partialorder %v3739, 0.0
        %vm3772 = vcmp.ge.f32.partialorder %v3740, 0.0
        %vm3773 = vcmp.ge.f32.partialorder %v3741, 0.0
        %vm3774 = vcmp.ge.f32.partialorder %v3742, 0.0
        %vm3775 = vcmp.ge.f32.partialorder %v3743, 0.0
        %vm3776 = vcmp.ge.f32.partialorder %v3744, 0.0
        %v3777 = vmul.f32 %v3713, 0.2
        %v3778 = vmul.f32 %v3714, 0.2
        %v3779 = vmul.f32 %v3715, 0.2
        %v3780 = vmul.f32 %v3716, 0.2
        %v3781 = vmul.f32 %v3717, 0.2
        %v3782 = vmul.f32 %v3718, 0.2
        %v3783 = vmul.f32 %v3719, 0.2
        %v3784 = vmul.f32 %v3720, 0.2
        %v3785 = vmul.f32 %v3721, 0.2
        %v3786 = vmul.f32 %v3722, 0.2
        %v3787 = vmul.f32 %v3723, 0.2
        %v3788 = vmul.f32 %v3724, 0.2
        %v3789 = vmul.f32 %v3725, 0.2
        %v3790 = vmul.f32 %v3726, 0.2
        %v3791 = vmul.f32 %v3727, 0.2
        %v3792 = vmul.f32 %v3728, 0.2
        %v3793 = vmul.f32 %v3729, 0.2
        %v3794 = vmul.f32 %v3730, 0.2
        %v3795 = vmul.f32 %v3731, 0.2
        %v3796 = vmul.f32 %v3732, 0.2
        %v3797 = vmul.f32 %v3733, 0.2
        %v3798 = vmul.f32 %v3734, 0.2
        %v3799 = vmul.f32 %v3735, 0.2
        %v3800 = vmul.f32 %v3736, 0.2
        %v3801 = vmul.f32 %v3737, 0.2
        %v3802 = vmul.f32 %v3738, 0.2
        %v3803 = vmul.f32 %v3739, 0.2
        %v3804 = vmul.f32 %v3740, 0.2
        %v3805 = vmul.f32 %v3741, 0.2
        %v3806 = vmul.f32 %v3742, 0.2
        %v3807 = vmul.f32 %v3743, 0.2
        %v3808 = vmul.f32 %v3744, 0.2
        %v3809 = vsel %vm3745, %v3713, %v3777
        %v3810 = vsel %vm3746, %v3714, %v3778
        %v3811 = vsel %vm3747, %v3715, %v3779
        %v3812 = vsel %vm3748, %v3716, %v3780
        %v3813 = vsel %vm3749, %v3717, %v3781
        %v3814 = vsel %vm3750, %v3718, %v3782
        %v3815 = vsel %vm3751, %v3719, %v3783
        %v3816 = vsel %vm3752, %v3720, %v3784
        %v3817 = vsel %vm3753, %v3721, %v3785
        %v3818 = vsel %vm3754, %v3722, %v3786
        %v3819 = vsel %vm3755, %v3723, %v3787
        %v3820 = vsel %vm3756, %v3724, %v3788
        %v3821 = vsel %vm3757, %v3725, %v3789
        %v3822 = vsel %vm3758, %v3726, %v3790
        %v3823 = vsel %vm3759, %v3727, %v3791
        %v3824 = vsel %vm3760, %v3728, %v3792
        %v3825 = vsel %vm3761, %v3729, %v3793
        %v3826 = vsel %vm3762, %v3730, %v3794
        %v3827 = vsel %vm3763, %v3731, %v3795
        %v3828 = vsel %vm3764, %v3732, %v3796
        %v3829 = vsel %vm3765, %v3733, %v3797
        %v3830 = vsel %vm3766, %v3734, %v3798
        %v3831 = vsel %vm3767, %v3735, %v3799
        %v3832 = vsel %vm3768, %v3736, %v3800
        %v3833 = vsel %vm3769, %v3737, %v3801
        %v3834 = vsel %vm3770, %v3738, %v3802
        %v3835 = vsel %vm3771, %v3739, %v3803
        %v3836 = vsel %vm3772, %v3740, %v3804
        %v3837 = vsel %vm3773, %v3741, %v3805
        %v3838 = vsel %vm3774, %v3742, %v3806
        %v3839 = vsel %vm3775, %v3743, %v3807
        %v3840 = vsel %vm3776, %v3744, %v3808
        %v3841 = vsel %vm419, %v3809, 0.0
        %v3842 = vrot.slane %v3841, 4
        %v3843 = vadd.f32 %v3841, %v3842
        %v3844 = vrot.slane %v3843, 2
        %v3845 = vadd.f32 %v3843, %v3844
        %v3846 = vrot.slane %v3845, 1
        %v3847 = vadd.f32 %v3845, %v3846
        %v3848 = vsel %vm419, %v3811, 0.0
        %v3849 = vrot.slane %v3848, 4
        %v3850 = vadd.f32 %v3848, %v3849
        %v3851 = vrot.slane %v3850, 2
        %v3852 = vadd.f32 %v3850, %v3851
        %v3853 = vrot.slane %v3852, 1
        %v3854 = vadd.f32 %v3852, %v3853
        %v3855 = vsel %vm419, %v3813, 0.0
        %v3856 = vrot.slane %v3855, 4
        %v3857 = vadd.f32 %v3855, %v3856
        %v3858 = vrot.slane %v3857, 2
        %v3859 = vadd.f32 %v3857, %v3858
        %v3860 = vrot.slane %v3859, 1
        %v3861 = vadd.f32 %v3859, %v3860
        %v3862 = vsel %vm419, %v3815, 0.0
        %v3863 = vrot.slane %v3862, 4
        %v3864 = vadd.f32 %v3862, %v3863
        %v3865 = vrot.slane %v3864, 2
        %v3866 = vadd.f32 %v3864, %v3865
        %v3867 = vrot.slane %v3866, 1
        %v3868 = vadd.f32 %v3866, %v3867
        %v3869 = vsel %vm419, %v3817, 0.0
        %v3870 = vrot.slane %v3869, 4
        %v3871 = vadd.f32 %v3869, %v3870
        %v3872 = vrot.slane %v3871, 2
        %v3873 = vadd.f32 %v3871, %v3872
        %v3874 = vrot.slane %v3873, 1
        %v3875 = vadd.f32 %v3873, %v3874
        %v3876 = vsel %vm419, %v3819, 0.0
        %v3877 = vrot.slane %v3876, 4
        %v3878 = vadd.f32 %v3876, %v3877
        %v3879 = vrot.slane %v3878, 2
        %v3880 = vadd.f32 %v3878, %v3879
        %v3881 = vrot.slane %v3880, 1
        %v3882 = vadd.f32 %v3880, %v3881
        %v3883 = vsel %vm419, %v3821, 0.0
        %v3884 = vrot.slane %v3883, 4
        %v3885 = vadd.f32 %v3883, %v3884
        %v3886 = vrot.slane %v3885, 2
        %v3887 = vadd.f32 %v3885, %v3886
        %v3888 = vrot.slane %v3887, 1
        %v3889 = vadd.f32 %v3887, %v3888
        %v3890 = vsel %vm419, %v3823, 0.0
        %v3891 = vrot.slane %v3890, 4
        %v3892 = vadd.f32 %v3890, %v3891
        %v3893 = vrot.slane %v3892, 2
        %v3894 = vadd.f32 %v3892, %v3893
        %v3895 = vrot.slane %v3894, 1
        %v3896 = vadd.f32 %v3894, %v3895
        %v3897 = vsel %vm419, %v3825, 0.0
        %v3898 = vrot.slane %v3897, 4
        %v3899 = vadd.f32 %v3897, %v3898
        %v3900 = vrot.slane %v3899, 2
        %v3901 = vadd.f32 %v3899, %v3900
        %v3902 = vrot.slane %v3901, 1
        %v3903 = vadd.f32 %v3901, %v3902
        %v3904 = vsel %vm419, %v3827, 0.0
        %v3905 = vrot.slane %v3904, 4
        %v3906 = vadd.f32 %v3904, %v3905
        %v3907 = vrot.slane %v3906, 2
        %v3908 = vadd.f32 %v3906, %v3907
        %v3909 = vrot.slane %v3908, 1
        %v3910 = vadd.f32 %v3908, %v3909
        %v3911 = vsel %vm419, %v3829, 0.0
        %v3912 = vrot.slane %v3911, 4
        %v3913 = vadd.f32 %v3911, %v3912
        %v3914 = vrot.slane %v3913, 2
        %v3915 = vadd.f32 %v3913, %v3914
        %v3916 = vrot.slane %v3915, 1
        %v3917 = vadd.f32 %v3915, %v3916
        %v3918 = vsel %vm419, %v3831, 0.0
        %v3919 = vrot.slane %v3918, 4
        %v3920 = vadd.f32 %v3918, %v3919
        %v3921 = vrot.slane %v3920, 2
        %v3922 = vadd.f32 %v3920, %v3921
        %v3923 = vrot.slane %v3922, 1
        %v3924 = vadd.f32 %v3922, %v3923
        %v3925 = vsel %vm419, %v3833, 0.0
        %v3926 = vrot.slane %v3925, 4
        %v3927 = vadd.f32 %v3925, %v3926
        %v3928 = vrot.slane %v3927, 2
        %v3929 = vadd.f32 %v3927, %v3928
        %v3930 = vrot.slane %v3929, 1
        %v3931 = vadd.f32 %v3929, %v3930
        %v3932 = vsel %vm419, %v3835, 0.0
        %v3933 = vrot.slane %v3932, 4
        %v3934 = vadd.f32 %v3932, %v3933
        %v3935 = vrot.slane %v3934, 2
        %v3936 = vadd.f32 %v3934, %v3935
        %v3937 = vrot.slane %v3936, 1
        %v3938 = vadd.f32 %v3936, %v3937
        %v3939 = vsel %vm419, %v3837, 0.0
        %v3940 = vrot.slane %v3939, 4
        %v3941 = vadd.f32 %v3939, %v3940
        %v3942 = vrot.slane %v3941, 2
        %v3943 = vadd.f32 %v3941, %v3942
        %v3944 = vrot.slane %v3943, 1
        %v3945 = vadd.f32 %v3943, %v3944
        %v3946 = vsel %vm419, %v3839, 0.0
        %v3947 = vrot.slane %v3946, 4
        %v3948 = vadd.f32 %v3946, %v3947
        %v3949 = vrot.slane %v3948, 2
        %v3950 = vadd.f32 %v3948, %v3949
        %v3951 = vrot.slane %v3950, 1
        %v3952 = vadd.f32 %v3950, %v3951
        %v3969 = vrot.slane %v3809, 4
        %v3970 = vrot.slane %v3811, 4
        %v3971 = vrot.slane %v3813, 4
        %v3972 = vrot.slane %v3815, 4
        %v3973 = vrot.slane %v3817, 4
        %v3974 = vrot.slane %v3819, 4
        %v3975 = vrot.slane %v3821, 4
        %v3976 = vrot.slane %v3823, 4
        %v3977 = vrot.slane %v3825, 4
        %v3978 = vrot.slane %v3827, 4
        %v3979 = vrot.slane %v3829, 4
        %v3980 = vrot.slane %v3831, 4
        %v3981 = vrot.slane %v3833, 4
        %v3982 = vrot.slane %v3835, 4
        %v3983 = vrot.slane %v3837, 4
        %v3984 = vrot.slane %v3839, 4
        %v4001 = vsel %vm419, %v3969, 0.0
        %v4002 = vrot.slane %v4001, 4
        %v4003 = vadd.f32 %v4001, %v4002
        %v4004 = vrot.slane %v4003, 2
        %v4005 = vadd.f32 %v4003, %v4004
        %v4006 = vrot.slane %v4005, 1
        %v4007 = vadd.f32 %v4005, %v4006
        %v4008 = vsel %vm419, %v3970, 0.0
        %v4009 = vrot.slane %v4008, 4
        %v4010 = vadd.f32 %v4008, %v4009
        %v4011 = vrot.slane %v4010, 2
        %v4012 = vadd.f32 %v4010, %v4011
        %v4013 = vrot.slane %v4012, 1
        %v4014 = vadd.f32 %v4012, %v4013
        %v4015 = vsel %vm419, %v3971, 0.0
        %v4016 = vrot.slane %v4015, 4
        %v4017 = vadd.f32 %v4015, %v4016
        %v4018 = vrot.slane %v4017, 2
        %v4019 = vadd.f32 %v4017, %v4018
        %v4020 = vrot.slane %v4019, 1
        %v4021 = vadd.f32 %v4019, %v4020
        %v4022 = vsel %vm419, %v3972, 0.0
        %v4023 = vrot.slane %v4022, 4
        %v4024 = vadd.f32 %v4022, %v4023
        %v4025 = vrot.slane %v4024, 2
        %v4026 = vadd.f32 %v4024, %v4025
        %v4027 = vrot.slane %v4026, 1
        %v4028 = vadd.f32 %v4026, %v4027
        %v4029 = vsel %vm419, %v3973, 0.0
        %v4030 = vrot.slane %v4029, 4
        %v4031 = vadd.f32 %v4029, %v4030
        %v4032 = vrot.slane %v4031, 2
        %v4033 = vadd.f32 %v4031, %v4032
        %v4034 = vrot.slane %v4033, 1
        %v4035 = vadd.f32 %v4033, %v4034
        %v4036 = vsel %vm419, %v3974, 0.0
        %v4037 = vrot.slane %v4036, 4
        %v4038 = vadd.f32 %v4036, %v4037
        %v4039 = vrot.slane %v4038, 2
        %v4040 = vadd.f32 %v4038, %v4039
        %v4041 = vrot.slane %v4040, 1
        %v4042 = vadd.f32 %v4040, %v4041
        %v4043 = vsel %vm419, %v3975, 0.0
        %v4044 = vrot.slane %v4043, 4
        %v4045 = vadd.f32 %v4043, %v4044
        %v4046 = vrot.slane %v4045, 2
        %v4047 = vadd.f32 %v4045, %v4046
        %v4048 = vrot.slane %v4047, 1
        %v4049 = vadd.f32 %v4047, %v4048
        %v4050 = vsel %vm419, %v3976, 0.0
        %v4051 = vrot.slane %v4050, 4
        %v4052 = vadd.f32 %v4050, %v4051
        %v4053 = vrot.slane %v4052, 2
        %v4054 = vadd.f32 %v4052, %v4053
        %v4055 = vrot.slane %v4054, 1
        %v4056 = vadd.f32 %v4054, %v4055
        %v4057 = vsel %vm419, %v3977, 0.0
        %v4058 = vrot.slane %v4057, 4
        %v4059 = vadd.f32 %v4057, %v4058
        %v4060 = vrot.slane %v4059, 2
        %v4061 = vadd.f32 %v4059, %v4060
        %v4062 = vrot.slane %v4061, 1
        %v4063 = vadd.f32 %v4061, %v4062
        %v4064 = vsel %vm419, %v3978, 0.0
        %v4065 = vrot.slane %v4064, 4
        %v4066 = vadd.f32 %v4064, %v4065
        %v4067 = vrot.slane %v4066, 2
        %v4068 = vadd.f32 %v4066, %v4067
        %v4069 = vrot.slane %v4068, 1
        %v4070 = vadd.f32 %v4068, %v4069
        %v4071 = vsel %vm419, %v3979, 0.0
        %v4072 = vrot.slane %v4071, 4
        %v4073 = vadd.f32 %v4071, %v4072
        %v4074 = vrot.slane %v4073, 2
        %v4075 = vadd.f32 %v4073, %v4074
        %v4076 = vrot.slane %v4075, 1
        %v4077 = vadd.f32 %v4075, %v4076
        %v4078 = vsel %vm419, %v3980, 0.0
        %v4079 = vrot.slane %v4078, 4
        %v4080 = vadd.f32 %v4078, %v4079
        %v4081 = vrot.slane %v4080, 2
        %v4082 = vadd.f32 %v4080, %v4081
        %v4083 = vrot.slane %v4082, 1
        %v4084 = vadd.f32 %v4082, %v4083
        %v4085 = vsel %vm419, %v3981, 0.0
        %v4086 = vrot.slane %v4085, 4
        %v4087 = vadd.f32 %v4085, %v4086
        %v4088 = vrot.slane %v4087, 2
        %v4089 = vadd.f32 %v4087, %v4088
        %v4090 = vrot.slane %v4089, 1
        %v4091 = vadd.f32 %v4089, %v4090
        %v4092 = vsel %vm419, %v3982, 0.0
        %v4093 = vrot.slane %v4092, 4
        %v4094 = vadd.f32 %v4092, %v4093
        %v4095 = vrot.slane %v4094, 2
        %v4096 = vadd.f32 %v4094, %v4095
        %v4097 = vrot.slane %v4096, 1
        %v4098 = vadd.f32 %v4096, %v4097
        %v4099 = vsel %vm419, %v3983, 0.0
        %v4100 = vrot.slane %v4099, 4
        %v4101 = vadd.f32 %v4099, %v4100
        %v4102 = vrot.slane %v4101, 2
        %v4103 = vadd.f32 %v4101, %v4102
        %v4104 = vrot.slane %v4103, 1
        %v4105 = vadd.f32 %v4103, %v4104
        %v4106 = vsel %vm419, %v3984, 0.0
        %v4107 = vrot.slane %v4106, 4
        %v4108 = vadd.f32 %v4106, %v4107
        %v4109 = vrot.slane %v4108, 2
        %v4110 = vadd.f32 %v4108, %v4109
        %v4111 = vrot.slane %v4110, 1
        %v4112 = vadd.f32 %v4110, %v4111
        %v4113 = vsel %vm419, %v3810, 0.0
        %v4114 = vrot.slane %v4113, 4
        %v4115 = vadd.f32 %v4113, %v4114
        %v4116 = vrot.slane %v4115, 2
        %v4117 = vadd.f32 %v4115, %v4116
        %v4118 = vrot.slane %v4117, 1
        %v4119 = vadd.f32 %v4117, %v4118
        %v4120 = vsel %vm419, %v3812, 0.0
        %v4121 = vrot.slane %v4120, 4
        %v4122 = vadd.f32 %v4120, %v4121
        %v4123 = vrot.slane %v4122, 2
        %v4124 = vadd.f32 %v4122, %v4123
        %v4125 = vrot.slane %v4124, 1
        %v4126 = vadd.f32 %v4124, %v4125
        %v4127 = vsel %vm419, %v3814, 0.0
        %v4128 = vrot.slane %v4127, 4
        %v4129 = vadd.f32 %v4127, %v4128
        %v4130 = vrot.slane %v4129, 2
        %v4131 = vadd.f32 %v4129, %v4130
        %v4132 = vrot.slane %v4131, 1
        %v4133 = vadd.f32 %v4131, %v4132
        %v4134 = vsel %vm419, %v3816, 0.0
        %v4135 = vrot.slane %v4134, 4
        %v4136 = vadd.f32 %v4134, %v4135
        %v4137 = vrot.slane %v4136, 2
        %v4138 = vadd.f32 %v4136, %v4137
        %v4139 = vrot.slane %v4138, 1
        %v4140 = vadd.f32 %v4138, %v4139
        %v4141 = vsel %vm419, %v3818, 0.0
        %v4142 = vrot.slane %v4141, 4
        %v4143 = vadd.f32 %v4141, %v4142
        %v4144 = vrot.slane %v4143, 2
        %v4145 = vadd.f32 %v4143, %v4144
        %v4146 = vrot.slane %v4145, 1
        %v4147 = vadd.f32 %v4145, %v4146
        %v4148 = vsel %vm419, %v3820, 0.0
        %v4149 = vrot.slane %v4148, 4
        %v4150 = vadd.f32 %v4148, %v4149
        %v4151 = vrot.slane %v4150, 2
        %v4152 = vadd.f32 %v4150, %v4151
        %v4153 = vrot.slane %v4152, 1
        %v4154 = vadd.f32 %v4152, %v4153
        %v4155 = vsel %vm419, %v3822, 0.0
        %v4156 = vrot.slane %v4155, 4
        %v4157 = vadd.f32 %v4155, %v4156
        %v4158 = vrot.slane %v4157, 2
        %v4159 = vadd.f32 %v4157, %v4158
        %v4160 = vrot.slane %v4159, 1
        %v4161 = vadd.f32 %v4159, %v4160
        %v4162 = vsel %vm419, %v3824, 0.0
        %v4163 = vrot.slane %v4162, 4
        %v4164 = vadd.f32 %v4162, %v4163
        %v4165 = vrot.slane %v4164, 2
        %v4166 = vadd.f32 %v4164, %v4165
        %v4167 = vrot.slane %v4166, 1
        %v4168 = vadd.f32 %v4166, %v4167
        %v4169 = vsel %vm419, %v3826, 0.0
        %v4170 = vrot.slane %v4169, 4
        %v4171 = vadd.f32 %v4169, %v4170
        %v4172 = vrot.slane %v4171, 2
        %v4173 = vadd.f32 %v4171, %v4172
        %v4174 = vrot.slane %v4173, 1
        %v4175 = vadd.f32 %v4173, %v4174
        %v4176 = vsel %vm419, %v3828, 0.0
        %v4177 = vrot.slane %v4176, 4
        %v4178 = vadd.f32 %v4176, %v4177
        %v4179 = vrot.slane %v4178, 2
        %v4180 = vadd.f32 %v4178, %v4179
        %v4181 = vrot.slane %v4180, 1
        %v4182 = vadd.f32 %v4180, %v4181
        %v4183 = vsel %vm419, %v3830, 0.0
        %v4184 = vrot.slane %v4183, 4
        %v4185 = vadd.f32 %v4183, %v4184
        %v4186 = vrot.slane %v4185, 2
        %v4187 = vadd.f32 %v4185, %v4186
        %v4188 = vrot.slane %v4187, 1
        %v4189 = vadd.f32 %v4187, %v4188
        %v4190 = vsel %vm419, %v3832, 0.0
        %v4191 = vrot.slane %v4190, 4
        %v4192 = vadd.f32 %v4190, %v4191
        %v4193 = vrot.slane %v4192, 2
        %v4194 = vadd.f32 %v4192, %v4193
        %v4195 = vrot.slane %v4194, 1
        %v4196 = vadd.f32 %v4194, %v4195
        %v4197 = vsel %vm419, %v3834, 0.0
        %v4198 = vrot.slane %v4197, 4
        %v4199 = vadd.f32 %v4197, %v4198
        %v4200 = vrot.slane %v4199, 2
        %v4201 = vadd.f32 %v4199, %v4200
        %v4202 = vrot.slane %v4201, 1
        %v4203 = vadd.f32 %v4201, %v4202
        %v4204 = vsel %vm419, %v3836, 0.0
        %v4205 = vrot.slane %v4204, 4
        %v4206 = vadd.f32 %v4204, %v4205
        %v4207 = vrot.slane %v4206, 2
        %v4208 = vadd.f32 %v4206, %v4207
        %v4209 = vrot.slane %v4208, 1
        %v4210 = vadd.f32 %v4208, %v4209
        %v4211 = vsel %vm419, %v3838, 0.0
        %v4212 = vrot.slane %v4211, 4
        %v4213 = vadd.f32 %v4211, %v4212
        %v4214 = vrot.slane %v4213, 2
        %v4215 = vadd.f32 %v4213, %v4214
        %v4216 = vrot.slane %v4215, 1
        %v4217 = vadd.f32 %v4215, %v4216
        %v4218 = vsel %vm419, %v3840, 0.0
        %v4219 = vrot.slane %v4218, 4
        %v4220 = vadd.f32 %v4218, %v4219
        %v4221 = vrot.slane %v4220, 2
        %v4222 = vadd.f32 %v4220, %v4221
        %v4223 = vrot.slane %v4222, 1
        %v4224 = vadd.f32 %v4222, %v4223
        %v4241 = vrot.slane %v3810, 4
        %v4242 = vrot.slane %v3812, 4
        %v4243 = vrot.slane %v3814, 4
        %v4244 = vrot.slane %v3816, 4
        %v4245 = vrot.slane %v3818, 4
        %v4246 = vrot.slane %v3820, 4
        %v4247 = vrot.slane %v3822, 4
        %v4248 = vrot.slane %v3824, 4
        %v4249 = vrot.slane %v3826, 4
        %v4250 = vrot.slane %v3828, 4
        %v4251 = vrot.slane %v3830, 4
        %v4252 = vrot.slane %v3832, 4
        %v4253 = vrot.slane %v3834, 4
        %v4254 = vrot.slane %v3836, 4
        %v4255 = vrot.slane %v3838, 4
        %v4256 = vrot.slane %v3840, 4
        %v4273 = vsel %vm419, %v4241, 0.0
        %v4274 = vrot.slane %v4273, 4
        %v4275 = vadd.f32 %v4273, %v4274
        %v4276 = vrot.slane %v4275, 2
        %v4277 = vadd.f32 %v4275, %v4276
        %v4278 = vrot.slane %v4277, 1
        %v4279 = vadd.f32 %v4277, %v4278
        %v4280 = vsel %vm419, %v4242, 0.0
        %v4281 = vrot.slane %v4280, 4
        %v4282 = vadd.f32 %v4280, %v4281
        %v4283 = vrot.slane %v4282, 2
        %v4284 = vadd.f32 %v4282, %v4283
        %v4285 = vrot.slane %v4284, 1
        %v4286 = vadd.f32 %v4284, %v4285
        %v4287 = vsel %vm419, %v4243, 0.0
        %v4288 = vrot.slane %v4287, 4
        %v4289 = vadd.f32 %v4287, %v4288
        %v4290 = vrot.slane %v4289, 2
        %v4291 = vadd.f32 %v4289, %v4290
        %v4292 = vrot.slane %v4291, 1
        %v4293 = vadd.f32 %v4291, %v4292
        %v4294 = vsel %vm419, %v4244, 0.0
        %v4295 = vrot.slane %v4294, 4
        %v4296 = vadd.f32 %v4294, %v4295
        %v4297 = vrot.slane %v4296, 2
        %v4298 = vadd.f32 %v4296, %v4297
        %v4299 = vrot.slane %v4298, 1
        %v4300 = vadd.f32 %v4298, %v4299
        %v4301 = vsel %vm419, %v4245, 0.0
        %v4302 = vrot.slane %v4301, 4
        %v4303 = vadd.f32 %v4301, %v4302
        %v4304 = vrot.slane %v4303, 2
        %v4305 = vadd.f32 %v4303, %v4304
        %v4306 = vrot.slane %v4305, 1
        %v4307 = vadd.f32 %v4305, %v4306
        %v4308 = vsel %vm419, %v4246, 0.0
        %v4309 = vrot.slane %v4308, 4
        %v4310 = vadd.f32 %v4308, %v4309
        %v4311 = vrot.slane %v4310, 2
        %v4312 = vadd.f32 %v4310, %v4311
        %v4313 = vrot.slane %v4312, 1
        %v4314 = vadd.f32 %v4312, %v4313
        %v4315 = vsel %vm419, %v4247, 0.0
        %v4316 = vrot.slane %v4315, 4
        %v4317 = vadd.f32 %v4315, %v4316
        %v4318 = vrot.slane %v4317, 2
        %v4319 = vadd.f32 %v4317, %v4318
        %v4320 = vrot.slane %v4319, 1
        %v4321 = vadd.f32 %v4319, %v4320
        %v4322 = vsel %vm419, %v4248, 0.0
        %v4323 = vrot.slane %v4322, 4
        %v4324 = vadd.f32 %v4322, %v4323
        %v4325 = vrot.slane %v4324, 2
        %v4326 = vadd.f32 %v4324, %v4325
        %v4327 = vrot.slane %v4326, 1
        %v4328 = vadd.f32 %v4326, %v4327
        %v4329 = vsel %vm419, %v4249, 0.0
        %v4330 = vrot.slane %v4329, 4
        %v4331 = vadd.f32 %v4329, %v4330
        %v4332 = vrot.slane %v4331, 2
        %v4333 = vadd.f32 %v4331, %v4332
        %v4334 = vrot.slane %v4333, 1
        %v4335 = vadd.f32 %v4333, %v4334
        %v4336 = vsel %vm419, %v4250, 0.0
        %v4337 = vrot.slane %v4336, 4
        %v4338 = vadd.f32 %v4336, %v4337
        %v4339 = vrot.slane %v4338, 2
        %v4340 = vadd.f32 %v4338, %v4339
        %v4341 = vrot.slane %v4340, 1
        %v4342 = vadd.f32 %v4340, %v4341
        %v4343 = vsel %vm419, %v4251, 0.0
        %v4344 = vrot.slane %v4343, 4
        %v4345 = vadd.f32 %v4343, %v4344
        %v4346 = vrot.slane %v4345, 2
        %v4347 = vadd.f32 %v4345, %v4346
        %v4348 = vrot.slane %v4347, 1
        %v4349 = vadd.f32 %v4347, %v4348
        %v4350 = vsel %vm419, %v4252, 0.0
        %v4351 = vrot.slane %v4350, 4
        %v4352 = vadd.f32 %v4350, %v4351
        %v4353 = vrot.slane %v4352, 2
        %v4354 = vadd.f32 %v4352, %v4353
        %v4355 = vrot.slane %v4354, 1
        %v4356 = vadd.f32 %v4354, %v4355
        %v4357 = vsel %vm419, %v4253, 0.0
        %v4358 = vrot.slane %v4357, 4
        %v4359 = vadd.f32 %v4357, %v4358
        %v4360 = vrot.slane %v4359, 2
        %v4361 = vadd.f32 %v4359, %v4360
        %v4362 = vrot.slane %v4361, 1
        %v4363 = vadd.f32 %v4361, %v4362
        %v4364 = vsel %vm419, %v4254, 0.0
        %v4365 = vrot.slane %v4364, 4
        %v4366 = vadd.f32 %v4364, %v4365
        %v4367 = vrot.slane %v4366, 2
        %v4368 = vadd.f32 %v4366, %v4367
        %v4369 = vrot.slane %v4368, 1
        %v4370 = vadd.f32 %v4368, %v4369
        %v4371 = vsel %vm419, %v4255, 0.0
        %v4372 = vrot.slane %v4371, 4
        %v4373 = vadd.f32 %v4371, %v4372
        %v4374 = vrot.slane %v4373, 2
        %v4375 = vadd.f32 %v4373, %v4374
        %v4376 = vrot.slane %v4375, 1
        %v4377 = vadd.f32 %v4375, %v4376
        %v4378 = vsel %vm419, %v4256, 0.0
        %v4379 = vrot.slane %v4378, 4
        %v4380 = vadd.f32 %v4378, %v4379
        %v4381 = vrot.slane %v4380, 2
        %v4382 = vadd.f32 %v4380, %v4381
        %v4383 = vrot.slane %v4382, 1
        %v4384 = vadd.f32 %v4382, %v4383
        %vm4401 = vcmask 1041409
        %v4402 = vsel %vm4401, %v3854, %v3847
        %vm4403 = vcmask 1042434
        %v4404 = vsel %vm4403, %v3861, %v4402
        %vm4405 = vcmask 1043459
        %v4406 = vsel %vm4405, %v3868, %v4404
        %vm4407 = vcmask 1044484
        %v4408 = vsel %vm4407, %v3875, %v4406
        %vm4409 = vcmask 1045509
        %v4410 = vsel %vm4409, %v3882, %v4408
        %vm4411 = vcmask 1046534
        %v4412 = vsel %vm4411, %v3889, %v4410
        %vm4413 = vcmask 1047559
        %v4414 = vsel %vm4413, %v3896, %v4412
        %v4415 = vsel %vm4401, %v3910, %v3903
        %v4416 = vsel %vm4403, %v3917, %v4415
        %v4417 = vsel %vm4405, %v3924, %v4416
        %v4418 = vsel %vm4407, %v3931, %v4417
        %v4419 = vsel %vm4409, %v3938, %v4418
        %v4420 = vsel %vm4411, %v3945, %v4419
        %v4421 = vsel %vm4413, %v3952, %v4420
        %v4440 = vsel %vm4401, %v4014, %v4007
        %v4441 = vsel %vm4403, %v4021, %v4440
        %v4442 = vsel %vm4405, %v4028, %v4441
        %v4443 = vsel %vm4407, %v4035, %v4442
        %v4444 = vsel %vm4409, %v4042, %v4443
        %v4445 = vsel %vm4411, %v4049, %v4444
        %v4446 = vsel %vm4413, %v4056, %v4445
        %v4447 = vsel %vm4401, %v4070, %v4063
        %v4448 = vsel %vm4403, %v4077, %v4447
        %v4449 = vsel %vm4405, %v4084, %v4448
        %v4450 = vsel %vm4407, %v4091, %v4449
        %v4451 = vsel %vm4409, %v4098, %v4450
        %v4452 = vsel %vm4411, %v4105, %v4451
        %v4453 = vsel %vm4413, %v4112, %v4452
        %v4472 = vsel %vm4401, %v4126, %v4119
        %v4473 = vsel %vm4403, %v4133, %v4472
        %v4474 = vsel %vm4405, %v4140, %v4473
        %v4475 = vsel %vm4407, %v4147, %v4474
        %v4476 = vsel %vm4409, %v4154, %v4475
        %v4477 = vsel %vm4411, %v4161, %v4476
        %v4478 = vsel %vm4413, %v4168, %v4477
        %v4479 = vsel %vm4401, %v4182, %v4175
        %v4480 = vsel %vm4403, %v4189, %v4479
        %v4481 = vsel %vm4405, %v4196, %v4480
        %v4482 = vsel %vm4407, %v4203, %v4481
        %v4483 = vsel %vm4409, %v4210, %v4482
        %v4484 = vsel %vm4411, %v4217, %v4483
        %v4485 = vsel %vm4413, %v4224, %v4484
        %v4504 = vsel %vm4401, %v4286, %v4279
        %v4505 = vsel %vm4403, %v4293, %v4504
        %v4506 = vsel %vm4405, %v4300, %v4505
        %v4507 = vsel %vm4407, %v4307, %v4506
        %v4508 = vsel %vm4409, %v4314, %v4507
        %v4509 = vsel %vm4411, %v4321, %v4508
        %v4510 = vsel %vm4413, %v4328, %v4509
        %v4511 = vsel %vm4401, %v4342, %v4335
        %v4512 = vsel %vm4403, %v4349, %v4511
        %v4513 = vsel %vm4405, %v4356, %v4512
        %v4514 = vsel %vm4407, %v4363, %v4513
        %v4515 = vsel %vm4409, %v4370, %v4514
        %v4516 = vsel %vm4411, %v4377, %v4515
        %v4517 = vsel %vm4413, %v4384, %v4516
        %v4520 = vld [vmem:[%s251] sm:$0xf]
        %vm4521 = vcmask 130048
        %v4523 = vsel %vm4521, %v4520, 0
        %4525 = vmatprep.subr.mxu0 %v4446
        %4526 = vmatpush1.msra.mxu0 %v4414
        %4527 = vmatprep.subr.mxu0 %v4453
        %4528 = vmatpush1.msra.mxu0 %v4421
        %4529 = vmatprep.subr.mxu0 0.0
        %4530 = vmatpush1.msra.mxu0 0.0
        %4531 = vmatprep.subr.mxu0 0.0
        %4532 = vmatpush1.msra.mxu0 0.0
        %4533 = vmatprep.subr.mxu0 0.0
        %4534 = vmatpush1.msra.mxu0 0.0
        %4535 = vmatprep.subr.mxu0 0.0
        %4536 = vmatpush1.msra.mxu0 0.0
        %4537 = vmatprep.subr.mxu0 0.0
        %4538 = vmatpush1.msra.mxu0 0.0
        %4539 = vmatprep.subr.mxu0 0.0
        %4540 = vmatpush1.msra.mxu0 0.0
        %4541 = vmatprep.subr.mxu0 0.0
        %4542 = vmatpush1.msra.mxu0 0.0
        %4543 = vmatprep.subr.mxu0 0.0
        %4544 = vmatpush1.msra.mxu0 0.0
        %4545 = vmatprep.subr.mxu0 0.0
        %4546 = vmatpush1.msra.mxu0 0.0
        %4547 = vmatprep.subr.mxu0 0.0
        %4548 = vmatpush1.msra.mxu0 0.0
        %4549 = vmatprep.subr.mxu0 0.0
        %4550 = vmatpush1.msra.mxu0 0.0
        %4551 = vmatprep.subr.mxu0 0.0
        %4552 = vmatpush1.msra.mxu0 0.0
        %4553 = vmatprep.subr.mxu0 0.0
        %4554 = vmatpush1.msra.mxu0 0.0
        %4555 = vmatprep.subr.mxu0 0.0
        %4556 = vmatpush1.msra.mxu0 0.0
        %4557 = vmatprep.subr.mxu0 0.0
        %4558 = vmatpush1.msra.mxu0 0.0
        %4559 = vmatprep.subr.mxu0 0.0
        %4560 = vmatpush1.msra.mxu0 0.0
        %4561 = vmatprep.subr.mxu0 0.0
        %4562 = vmatpush1.msra.mxu0 0.0
        %4563 = vmatprep.subr.mxu0 0.0
        %4564 = vmatpush1.msra.mxu0 0.0
        %4565 = vmatprep.subr.mxu0 0.0
        %4566 = vmatpush1.msra.mxu0 0.0
        %4567 = vmatprep.subr.mxu0 0.0
        %4568 = vmatpush1.msra.mxu0 0.0
        %4569 = vmatprep.subr.mxu0 0.0
        %4570 = vmatpush1.msra.mxu0 0.0
        %4571 = vmatprep.subr.mxu0 0.0
        %4572 = vmatpush1.msra.mxu0 0.0
        %4573 = vmatprep.subr.mxu0 0.0
        %4574 = vmatpush1.msra.mxu0 0.0
        %4575 = vmatprep.subr.mxu0 0.0
        %4576 = vmatpush1.msra.mxu0 0.0
        %4577 = vmatprep.subr.mxu0 0.0
        %4578 = vmatpush1.msra.mxu0 0.0
        %4579 = vmatprep.subr.mxu0 0.0
        %4580 = vmatpush1.msra.mxu0 0.0
        %4581 = vmatprep.subr.mxu0 0.0
        %4582 = vmatpush1.msra.mxu0 0.0
        %4583 = vmatprep.subr.mxu0 0.0
        %4584 = vmatpush1.msra.mxu0 0.0
        %4585 = vmatprep.subr.mxu0 0.0
        %4586 = vmatpush1.msra.mxu0 0.0
        %4587 = vmatprep.subr.mxu0 0.0
        %4588 = vmatpush1.msra.mxu0 0.0
        %4589 = vmatprep.mubr.f32.mxu0 0.0
        %4590 = vmatmul.mubr.f32.gmra.mrb[0].mxu0 %v4523
        %v4591 = vpop.f32.mrb[0].mxu0
        %v4592 = vadd.f32 0.0, %v4591
        %v4593 = vpop.f32.mrb[0].mxu0
        %v4594 = vadd.f32 0.0, %v4593
        %4595 = vdwg.mxu0
        %4596 = vmatprep.subr.mxu0 %v4510
        %4597 = vmatpush1.msra.mxu0 %v4478
        %4598 = vmatprep.subr.mxu0 %v4517
        %4599 = vmatpush1.msra.mxu0 %v4485
        %4600 = vmatprep.subr.mxu0 0.0
        %4601 = vmatpush1.msra.mxu0 0.0
        %4602 = vmatprep.subr.mxu0 0.0
        %4603 = vmatpush1.msra.mxu0 0.0
        %4604 = vmatprep.subr.mxu0 0.0
        %4605 = vmatpush1.msra.mxu0 0.0
        %4606 = vmatprep.subr.mxu0 0.0
        %4607 = vmatpush1.msra.mxu0 0.0
        %4608 = vmatprep.subr.mxu0 0.0
        %4609 = vmatpush1.msra.mxu0 0.0
        %4610 = vmatprep.subr.mxu0 0.0
        %4611 = vmatpush1.msra.mxu0 0.0
        %4612 = vmatprep.subr.mxu0 0.0
        %4613 = vmatpush1.msra.mxu0 0.0
        %4614 = vmatprep.subr.mxu0 0.0
        %4615 = vmatpush1.msra.mxu0 0.0
        %4616 = vmatprep.subr.mxu0 0.0
        %4617 = vmatpush1.msra.mxu0 0.0
        %4618 = vmatprep.subr.mxu0 0.0
        %4619 = vmatpush1.msra.mxu0 0.0
        %4620 = vmatprep.subr.mxu0 0.0
        %4621 = vmatpush1.msra.mxu0 0.0
        %4622 = vmatprep.subr.mxu0 0.0
        %4623 = vmatpush1.msra.mxu0 0.0
        %4624 = vmatprep.subr.mxu0 0.0
        %4625 = vmatpush1.msra.mxu0 0.0
        %4626 = vmatprep.subr.mxu0 0.0
        %4627 = vmatpush1.msra.mxu0 0.0
        %4628 = vmatprep.subr.mxu0 0.0
        %4629 = vmatpush1.msra.mxu0 0.0
        %4630 = vmatprep.subr.mxu0 0.0
        %4631 = vmatpush1.msra.mxu0 0.0
        %4632 = vmatprep.subr.mxu0 0.0
        %4633 = vmatpush1.msra.mxu0 0.0
        %4634 = vmatprep.subr.mxu0 0.0
        %4635 = vmatpush1.msra.mxu0 0.0
        %4636 = vmatprep.subr.mxu0 0.0
        %4637 = vmatpush1.msra.mxu0 0.0
        %4638 = vmatprep.subr.mxu0 0.0
        %4639 = vmatpush1.msra.mxu0 0.0
        %4640 = vmatprep.subr.mxu0 0.0
        %4641 = vmatpush1.msra.mxu0 0.0
        %4642 = vmatprep.subr.mxu0 0.0
        %4643 = vmatpush1.msra.mxu0 0.0
        %4644 = vmatprep.subr.mxu0 0.0
        %4645 = vmatpush1.msra.mxu0 0.0
        %4646 = vmatprep.subr.mxu0 0.0
        %4647 = vmatpush1.msra.mxu0 0.0
        %4648 = vmatprep.subr.mxu0 0.0
        %4649 = vmatpush1.msra.mxu0 0.0
        %4650 = vmatprep.subr.mxu0 0.0
        %4651 = vmatpush1.msra.mxu0 0.0
        %4652 = vmatprep.subr.mxu0 0.0
        %4653 = vmatpush1.msra.mxu0 0.0
        %4654 = vmatprep.subr.mxu0 0.0
        %4655 = vmatpush1.msra.mxu0 0.0
        %4656 = vmatprep.subr.mxu0 0.0
        %4657 = vmatpush1.msra.mxu0 0.0
        %4658 = vmatprep.subr.mxu0 0.0
        %4659 = vmatpush1.msra.mxu0 0.0
        %4660 = vmatprep.mubr.f32.mxu0 0.0
        %4661 = vmatmul.mubr.f32.gmra.mrb[0].mxu0 %v4523
        %v4662 = vpop.f32.mrb[0].mxu0
        %v4663 = vadd.f32 0.0, %v4662
        %v4664 = vpop.f32.mrb[0].mxu0
        %v4665 = vadd.f32 0.0, %v4664
        %4666 = vdwg.mxu0
        %p4667 = scmp.eq.s32.totalorder %s24, 0
        // Predicated region
        $region41: #{tpu_custom_call.1} parent=39 // pred_check
          %p4668 = pneg %p4667
        $region42: #{tpu_custom_call.1} parent=39 // pred_check_branch
          %4670 = sbr.rel (%p4668) target = $region44
        $region43: #{tpu_custom_call.1} parent=39 // pred_region
          %4671 = vst [vmem:[%s242] sm:$0xff] 0.0
          %4672 = vst [vmem:[%s242 + $0x8] sm:$0xff] 0.0
        $region44: #{tpu_custom_call.1} parent=39 // pred_fallthru
          _
        %v4673 = vld [vmem:[%s242] sm:$0xff]
        %v4674 = vld [vmem:[%s242 + $0x8] sm:$0xff]
        %v4679 = vcombine.low %v4592, %v4594
        %v4680 = vcombine.low %v4663, %v4665
        %v4683 = vadd.f32 %v4673, %v4679
        %v4684 = vadd.f32 %v4674, %v4680
        %4685 = vst [vmem:[%s242] sm:$0xff] %v4683
        %4686 = vst [vmem:[%s242 + $0x8] sm:$0xff] %v4684
        // Predicated region
        $region45: #{tpu_custom_call.1} parent=39 // pred_check
          %p4687 = pneg %p4667
        $region46: #{tpu_custom_call.1} parent=39 // pred_check_branch
          %4689 = sbr.rel (%p4687) target = $region48
        $region47: #{tpu_custom_call.1} parent=39 // pred_region
          %v4690 = vld [vmem:[%s242] sm:$0xff]
          %v4691 = vld [vmem:[%s242 + $0x8] sm:$0xff]
          %v4692 = vld [vmem:[%s3] ss:$8 sm:$0xf]
          %v4694 = vlaneseq
          %v4695 = vshrl.u32 %v4694, 7
          %v4696 = vsub.s32 0, %v4695
          %v4697 = vrot.slane %v4692, %v4696
          %v4698 = vlaneseq
          %v4699 = vshrl.u32 %v4698, 7
          %v4700 = vsub.s32 1, %v4699
          %v4701 = vrot.slane %v4692, %v4700
          %v4702 = vlaneseq
          %v4703 = vshrl.u32 %v4702, 7
          %v4704 = vsub.s32 2, %v4703
          %v4705 = vrot.slane %v4692, %v4704
          %v4706 = vlaneseq
          %v4707 = vshrl.u32 %v4706, 7
          %v4708 = vsub.s32 3, %v4707
          %v4709 = vrot.slane %v4692, %v4708
          %v4710 = vcombine.low %v4697, %v4701
          %v4711 = vcombine.low %v4705, %v4709
          %v4714 = vmul.f32 %v4690, %v4710
          %v4715 = vmul.f32 %v4691, %v4711
          %s4716 = scalar_lea.vmem %s3, 1
          %v4717 = vld [vmem:[%s4716] ss:$8 sm:$0xf]
          %v4719 = vlaneseq
          %v4720 = vshrl.u32 %v4719, 7
          %v4721 = vsub.s32 0, %v4720
          %v4722 = vrot.slane %v4717, %v4721
          %v4723 = vlaneseq
          %v4724 = vshrl.u32 %v4723, 7
          %v4725 = vsub.s32 1, %v4724
          %v4726 = vrot.slane %v4717, %v4725
          %v4727 = vlaneseq
          %v4728 = vshrl.u32 %v4727, 7
          %v4729 = vsub.s32 2, %v4728
          %v4730 = vrot.slane %v4717, %v4729
          %v4731 = vlaneseq
          %v4732 = vshrl.u32 %v4731, 7
          %v4733 = vsub.s32 3, %v4732
          %v4734 = vrot.slane %v4717, %v4733
          %v4735 = vcombine.low %v4722, %v4726
          %v4736 = vcombine.low %v4730, %v4734
          %v4739 = vadd.f32 %v4714, %v4735
          %v4740 = vadd.f32 %v4715, %v4736
          %4741 = vst [vmem:[%s242] sm:$0xff] %v4739
          %4742 = vst [vmem:[%s242 + $0x8] sm:$0xff] %v4740
        $region48: #{tpu_custom_call.1} parent=39 // pred_fallthru
          _
        %s4743 = sand.u32 %s154, 1
        %s4744 = scalar_lea.sflag [#allocation3], %s4743
        %s4745 = sand.u32 %s154, 1
        %s4746 = smul.addr %s4745, 16
        %s4747 = scalar_lea.vmem [#allocation2], %s4746
        // Predicated region
        $region49: #{tpu_custom_call.1} parent=39 // pred_check
          %p4748 = pneg %p164
        $region50: #{tpu_custom_call.1} parent=39 // pred_check_branch
          %4750 = sbr.rel (%p4748) target = $region52
        $region51: #{tpu_custom_call.1} parent=39 // pred_region
          %s4752 = ssub.s32 256, 256
          %4753 = vsyncadd %s4744, %s4752
          %s4754 = smul.addr %s23, 4
          %s4755 = smul.addr %s4754, 64
          %s4756 = scalar_lea.hbm %s5, %s4755
          %s4758 = sshll.u32 %s4747, 4
          %s4759 = int_to_ptr.vmem [resolvable:$true] %s4758
          %4761 = dma.vmem_to_hbm [thread:$0]  %s4759, 256, %s4756, %s4744
        $region52: #{tpu_custom_call.1} parent=39 // pred_fallthru
          _
      $region40: #{tpu_custom_call.1} parent=5 // pred_fallthru
        _
      %p4762 = scmp.le.s32.totalorder 2, %s14
      // Predicated region
      $region53: #{tpu_custom_call.1} parent=5 // pred_check
        %p4763 = pneg %p4762
      $region54: #{tpu_custom_call.1} parent=5 // pred_check_branch
        %4765 = sbr.rel (%p4763) target = $region56
      $region55: #{tpu_custom_call.1} parent=5 // pred_region
        %s4766 = ssub.s32 %s14, 2
        // Predicated region
        $region57: #{tpu_custom_call.1} parent=55 // pred_check
          %p4767 = pneg %p170
        $region58: #{tpu_custom_call.1} parent=55 // pred_check_branch
          %4769 = sbr.rel (%p4767) target = $region60
        $region59: #{tpu_custom_call.1} parent=55 // pred_region
          %s4770 = sand.u32 %s155, 1
          %s4771 = scalar_lea.sflag [#allocation3], %s4770
          %s4772 = sand.u32 %s155, 1
          %s4773 = smul.addr %s4772, 16
          %s4774 = scalar_lea.vmem [#allocation2], %s4773
          %4775 = dma.done %s4771, 256
        $region60: #{tpu_custom_call.1} parent=55 // pred_fallthru
          _
      $region56: #{tpu_custom_call.1} parent=5 // pred_fallthru
        _
    $region6: #{tpu_custom_call.1} parent=1 // loop_footer
      %s18 = sadd.s32 1, %s14
    $region7: #{tpu_custom_call.1} parent=1 // loop_footer_branch
      %13 = sbr.rel target = $region3
    $region8: #{tpu_custom_call.1} parent=1 // loop_exit
      _
    %4776 = vsyncpa [#allocation3], 1
    %s4777 = scalar_lea.sflag [#allocation3], 1
    %4778 = vsyncpa %s4777, 1

</llo_original>
